<compile_context>
chip_gen: v5e
topology: v5e:2x2
jax: 0.10.0
libtpu: 0.0.40
codegen_flags: <defaults>
</compile_context>

<pallas_src>
import functools

import jax
import jax.numpy as jnp
from jax import lax
from jax.experimental import pallas as pl
from jax.experimental.pallas import tpu as pltpu


# ----------------------------------------------------------------------------
# Fused kernel
# ----------------------------------------------------------------------------
def _conv_3_1_kernel(
    x_ref,                  # (NB, H, W*Cin)         lane-dense input block
    w1_ref, ba_ref,         # (7*S1, W*C2), (1, W*C2)   fused layer-1 weights/bias
    w2_ref, bb_ref,         # (7*S2, W*C2), (1, W*C2)   fused layer-2 weights/bias
    wf_ref, bf_ref,         # (W*C2, W*Cout), (1, W*Cout)  block-diag 1x1 conv
    o_ref,                  # (NB, H, W*Cout)        lane-dense output block
    r1_ref,                 # VMEM (NB*H, 7*S1)  layer-1 row-patch staging
    y1_ref,                 # VMEM (NB*H, W*C2)  layer-1 activations
    r2_ref,                 # VMEM (NB*H, 7*S2)  layer-2 row-patch staging
    *, NB, H, W, Cin, C2, Cout, S1, S2):

    KY, PAD = 7, 3

    # Zero the staging scratches once; only the interiors are written below, so
    # the untouched halo columns/rows provide the conv zero padding.
    r1_ref[...] = jnp.zeros_like(r1_ref)
    r2_ref[...] = jnp.zeros_like(r2_ref)

    # ---- Layer 1: first conv of BOTH branches in one MXU matmul ------------
    # R1[n*H + py, ky*S1 + (px+PAD)*Cin + c] = x[n, py+ky-PAD, px, c]
    for n in range(NB):
        for ky in range(KY):
            lo = max(0, PAD - ky)
            hi = min(H, H + PAD - ky)
            c0 = ky * S1 + PAD * Cin
            r1_ref[n * H + lo: n * H + hi, c0: c0 + W * Cin] = (
                x_ref[n, lo + ky - PAD: hi + ky - PAD, :])
    y1 = jnp.dot(r1_ref[...], w1_ref[...], preferred_element_type=jnp.float32)
    # Per-pixel channel layout of y1: [y3a(0:Cout) | y7a(Cout:2*Cout)]
    y1_ref[...] = jnp.maximum(y1 + ba_ref[...], 0.0)

    # ---- Layer 2: second conv of both branches in one MXU matmul -----------
    for n in range(NB):
        for ky in range(KY):
            lo = max(0, PAD - ky)
            hi = min(H, H + PAD - ky)
            c0 = ky * S2 + PAD * C2
            r2_ref[n * H + lo: n * H + hi, c0: c0 + W * C2] = (
                y1_ref[n * H + lo + ky - PAD: n * H + hi + ky - PAD, :])
    y2 = jnp.dot(r2_ref[...], w2_ref[...], preferred_element_type=jnp.float32)
    y2 = jnp.maximum(y2 + bb_ref[...], 0.0)      # per-pixel [y3b | y7b]

    # ---- concat + 1x1 conv as a block-diagonal matmul (lane-dense output) --
    out = jnp.dot(y2, wf_ref[...], preferred_element_type=jnp.float32) + bf_ref[...]
    for n in range(NB):
        o_ref[n] = out[n * H: (n + 1) * H, :].astype(o_ref.dtype)


# ----------------------------------------------------------------------------
# Host-side weight packing for the fused formulation
# ----------------------------------------------------------------------------
def _round_up(x, m):
    return (x + m - 1) // m * m


def _build_fused_weights(params, W, Cin, Cout):
    """Pack the BN-folded conv weights into the row-patch / block-diag layout."""
    C2 = 2 * Cout
    KY, PAD = 7, 3
    S1 = _round_up((W + 2 * PAD) * Cin, 128)     # per-ky column stride, layer 1
    S2 = _round_up((W + 2 * PAD) * C2, 128)      # per-ky column stride, layer 2
    J1, J2 = S1 // Cin, S2 // C2                 # padded-row pixel counts

    w3a, b3a = params["c3_0"]
    w3b, b3b = params["c3_1"]
    w7a, b7a = params["c7_0"]
    w7b, b7b = params["c7_1"]
    w1, b1 = params["c1"]

    def place(K, J, off_x, off_y, w):
        # T[ky, j, ci, px, co] = w[ky-off_y, j-px-off_x, ci, co] (zero elsewhere)
        ci, co = w.shape[2], w.shape[3]
        wpad = jnp.zeros((KY, K, ci, co), jnp.float32).at[off_y:off_y + K].set(w)
        kx = jnp.arange(K)[:, None, None]
        j = jnp.arange(J)[None, :, None]
        p = jnp.arange(W)[None, None, :]
        ind = (j == p + kx + off_x).astype(jnp.float32)          # (K, J, W)
        return jnp.einsum("kjp,ykic->yjipc", ind, wpad)           # (KY,J,ci,W,co)

    # Layer 1: both branches read the raw Cin-channel input.
    big1 = jnp.zeros((KY, J1, Cin, W, C2), jnp.float32)
    big1 = big1.at[:, :, :, :, :Cout].add(place(3, J1, 2, 2, w3a))
    big1 = big1.at[:, :, :, :, Cout:].add(place(7, J1, 0, 0, w7a))
    Wbig1 = big1.reshape(KY * S1, W * C2)

    # Layer 2: branch-3 reads only the y3a channels, branch-7 only the y7a ones.
    big2 = jnp.zeros((KY, J2, C2, W, C2), jnp.float32)
    big2 = big2.at[:, :, :Cout, :, :Cout].add(place(3, J2, 2, 2, w3b))
    big2 = big2.at[:, :, Cout:, :, Cout:].add(place(7, J2, 0, 0, w7b))
    Wbig2 = big2.reshape(KY * S2, W * C2)

    # Final 1x1 conv as a per-pixel block-diagonal matmul.
    w1m = w1.reshape(C2, Cout)
    W1bd = jnp.einsum("pq,ic->piqc", jnp.eye(W, dtype=jnp.float32),
                      w1m).reshape(W * C2, W * Cout)

    ba = jnp.tile(jnp.concatenate([b3a, b7a]), W).reshape(1, W * C2)
    bb = jnp.tile(jnp.concatenate([b3b, b7b]), W).reshape(1, W * C2)
    b1t = jnp.tile(b1, W).reshape(1, W * Cout)
    return Wbig1, ba, Wbig2, bb, W1bd, b1t, S1, S2


def _tensorcores_per_chip():
    """2 on megacore-style chips (batch sharded across cores), else 1 (batch folded)."""
    try:
        kind = jax.devices()[0].device_kind.lower()
    except Exception:
        return 1
    return 2 if any(t in kind for t in ("v7", "v4", "v5p")) else 1


def conv_3_1_forward(params, x_nhwc):
    """Fused forward pass for conv_3_1 (NHWC input)."""
    N, H, W, Cin = x_nhwc.shape
    Cout = params["c3_0"][0].shape[-1]
    C2 = 2 * Cout

    Wbig1, ba, Wbig2, bb, W1bd, b1t, S1, S2 = _build_fused_weights(params, W, Cin, Cout)

    x2 = x_nhwc.reshape(N, H, W * Cin)           # lane-dense input

    nb = 1 if _tensorcores_per_chip() > 1 else N  # images per grid step
    ng = N // nb

    kernel = functools.partial(_conv_3_1_kernel, NB=nb, H=H, W=W,
                               Cin=Cin, C2=C2, Cout=Cout, S1=S1, S2=S2)
    const = lambda g: (0, 0)                     # grid-invariant weights/biases

    out2 = pl.pallas_call(
        kernel,
        out_shape=jax.ShapeDtypeStruct((N, H, W * Cout), x_nhwc.dtype),
        grid=(ng,),
        in_specs=[
            pl.BlockSpec((nb, H, W * Cin), lambda g: (g, 0, 0)),
            pl.BlockSpec(Wbig1.shape, const), pl.BlockSpec(ba.shape, const),
            pl.BlockSpec(Wbig2.shape, const), pl.BlockSpec(bb.shape, const),
            pl.BlockSpec(W1bd.shape, const),  pl.BlockSpec(b1t.shape, const),
        ],
        out_specs=pl.BlockSpec((nb, H, W * Cout), lambda g: (g, 0, 0)),
        scratch_shapes=[
            pltpu.VMEM((nb * H, 7 * S1), jnp.float32),   # layer-1 row-patch
            pltpu.VMEM((nb * H, W * C2), jnp.float32),   # layer-1 activations
            pltpu.VMEM((nb * H, 7 * S2), jnp.float32),   # layer-2 row-patch
        ],
        compiler_params=pltpu.CompilerParams(
            dimension_semantics=("parallel",)),
    )(x2, Wbig1, ba, Wbig2, bb, W1bd, b1t)

    return out2.reshape(N, H, W, Cout)


# ----------------------------------------------------------------------------
# Parameter construction (deterministic) and BN folding (plain-JAX glue).
# ----------------------------------------------------------------------------
def _make_conv_params(key, K, cin, cout):
    kw, kb = jax.random.split(key)
    fan_in = cin * K * K
    bound = 1.0 / jnp.sqrt(fan_in)
    w = jax.random.uniform(kw, (K, K, cin, cout), jnp.float32, -bound, bound)
    b = jax.random.uniform(kb, (cout,), jnp.float32, -bound, bound)
    return w, b


def _make_bn_params(key, c):
    k1, k2, k3, k4 = jax.random.split(key, 4)
    gamma = 1.0 + 0.1 * jax.random.normal(k1, (c,), jnp.float32)
    beta = 0.1 * jax.random.normal(k2, (c,), jnp.float32)
    mean = 0.1 * jax.random.normal(k3, (c,), jnp.float32)
    var = jnp.abs(jax.random.normal(k4, (c,), jnp.float32)) + 0.5
    return gamma, beta, mean, var


def _fold_bn(w, b, gamma, beta, mean, var, eps=1e-5):
    # TODO(synk): BatchNorm folded in inference mode; training-mode batch stats not modeled.
    scale = gamma / jnp.sqrt(var + eps)
    w_f = w * scale[None, None, None, :]
    b_f = (b - mean) * scale + beta
    return w_f, b_f


def init_conv_3_1_params(key, ch_in, ch_out):
    keys = jax.random.split(key, 9)
    params = {}
    for i, (k_conv, k_bn) in enumerate([(keys[0], keys[1]), (keys[2], keys[3])]):
        cin = ch_in if i == 0 else ch_out
        w, b = _make_conv_params(k_conv, 3, cin, ch_out)
        params[f"c3_{i}"] = _fold_bn(w, b, *_make_bn_params(k_bn, ch_out))
    for i, (k_conv, k_bn) in enumerate([(keys[4], keys[5]), (keys[6], keys[7])]):
        cin = ch_in if i == 0 else ch_out
        w, b = _make_conv_params(k_conv, 7, cin, ch_out)
        params[f"c7_{i}"] = _fold_bn(w, b, *_make_bn_params(k_bn, ch_out))
    params["c1"] = _make_conv_params(keys[8], 1, 2 * ch_out, ch_out)
    return params


# ----------------------------------------------------------------------------
# Pure-JAX reference (for sanity check)
# ----------------------------------------------------------------------------
def _conv_ref(x, w, b, pad, relu):
    y = lax.conv_general_dilated(
        x, w, window_strides=(1, 1), padding=[(pad, pad), (pad, pad)],
        dimension_numbers=("NHWC", "HWIO", "NHWC"),
        precision=lax.Precision.HIGHEST)
    y = y + b[None, None, None, :]
    return jnp.maximum(y, 0.0) if relu else y


def conv_3_1_ref(params, x_nhwc):
    x3 = _conv_ref(x_nhwc, *params["c3_0"], 1, True)
    x3 = _conv_ref(x3, *params["c3_1"], 1, True)
    x7 = _conv_ref(x_nhwc, *params["c7_0"], 3, True)
    x7 = _conv_ref(x7, *params["c7_1"], 3, True)
    xc = jnp.concatenate([x3, x7], axis=-1)
    return _conv_ref(xc, *params["c1"], 0, False)


if __name__ == "__main__":
    key = jax.random.PRNGKey(0)
    k_x, k_p = jax.random.split(key)

    N, C_IN, H, W = 2, 4, 16, 16      # matches PyTorch NCHW input (2, 4, 16, 16)
    C_OUT = 8

    x_nchw = jax.random.normal(k_x, (N, C_IN, H, W), jnp.float32)
    x_nhwc = jnp.transpose(x_nchw, (0, 2, 3, 1))      # NCHW -> NHWC

    params = init_conv_3_1_params(k_p, C_IN, C_OUT)

    fwd = jax.jit(conv_3_1_forward)
    out = jax.block_until_ready(fwd(params, x_nhwc))

    ref = conv_3_1_ref(params, x_nhwc)
    assert out.shape == (N, H, W, C_OUT), out.shape
    assert jnp.allclose(out, ref, rtol=2e-3, atol=2e-3), "mismatch vs JAX reference"

    print("KERNEL_OK")
</pallas_src>

<mosaic_0001>
module attributes {stable_mosaic.version = 11 : i64} {
  func.func @_conv_3_1_kernel(%arg0: i32, %arg1: memref<2x16x64xf32, #tpu.memory_space<vmem>>, %arg2: memref<896x256xf32, #tpu.memory_space<vmem>>, %arg3: memref<1x256xf32, #tpu.memory_space<vmem>>, %arg4: memref<2688x256xf32, #tpu.memory_space<vmem>>, %arg5: memref<1x256xf32, #tpu.memory_space<vmem>>, %arg6: memref<256x128xf32, #tpu.memory_space<vmem>>, %arg7: memref<1x128xf32, #tpu.memory_space<vmem>>, %arg8: memref<2x16x128xf32, #tpu.memory_space<vmem>>, %arg9: memref<32x896xf32, #tpu.memory_space<vmem>>, %arg10: memref<32x256xf32, #tpu.memory_space<vmem>>, %arg11: memref<32x2688xf32, #tpu.memory_space<vmem>>) attributes {dimension_semantics = [#tpu.dimension_semantics<parallel>], iteration_bounds = array<i64: 1>, scalar_prefetch = 0 : i64, scratch_operands = 3 : i64, tpu.core_type = #tpu.core_type<tc>, window_params = [{transform_indices = @transform_0, window_bounds = array<i64: 2, 16, 64>}, {pipeline_mode = #tpu.pipeline_mode<synchronous>, transform_indices = @transform_1, window_bounds = array<i64: 896, 256>}, {pipeline_mode = #tpu.pipeline_mode<synchronous>, transform_indices = @transform_2, window_bounds = array<i64: 1, 256>}, {pipeline_mode = #tpu.pipeline_mode<synchronous>, transform_indices = @transform_3, window_bounds = array<i64: 2688, 256>}, {pipeline_mode = #tpu.pipeline_mode<synchronous>, transform_indices = @transform_4, window_bounds = array<i64: 1, 256>}, {pipeline_mode = #tpu.pipeline_mode<synchronous>, transform_indices = @transform_5, window_bounds = array<i64: 256, 128>}, {pipeline_mode = #tpu.pipeline_mode<synchronous>, transform_indices = @transform_6, window_bounds = array<i64: 1, 128>}, {transform_indices = @transform_7, window_bounds = array<i64: 2, 16, 128>}]} {
    %cst = arith.constant 0.000000e+00 : f32
    %0 = vector.broadcast %cst : f32 to vector<32x896xf32>
    %c0 = arith.constant 0 : index
    %c0_0 = arith.constant 0 : index
    %1 = vector.load %arg9[%c0, %c0_0] : memref<32x896xf32, #tpu.memory_space<vmem>>, vector<32x896xf32>
    tpu.vector_store %arg9[%c0, %c0_0], %0 {strides = array<i32>} : memref<32x896xf32, #tpu.memory_space<vmem>>, vector<32x896xf32>,
    %cst_1 = arith.constant 0.000000e+00 : f32
    %2 = vector.broadcast %cst_1 : f32 to vector<32x2688xf32>
    %c0_2 = arith.constant 0 : index
    %c0_3 = arith.constant 0 : index
    %3 = vector.load %arg11[%c0_2, %c0_3] : memref<32x2688xf32, #tpu.memory_space<vmem>>, vector<32x2688xf32>
    tpu.vector_store %arg11[%c0_2, %c0_3], %2 {strides = array<i32>} : memref<32x2688xf32, #tpu.memory_space<vmem>>, vector<32x2688xf32>,
    %c0_4 = arith.constant 0 : index
    %c0_5 = arith.constant 0 : index
    %c0_6 = arith.constant 0 : index
    %4 = vector.load %arg1[%c0_4, %c0_5, %c0_6] : memref<2x16x64xf32, #tpu.memory_space<vmem>>, vector<1x13x64xf32>
    %5 = vector.shape_cast %4 : vector<1x13x64xf32> to vector<13x64xf32>
    %c3 = arith.constant 3 : index
    %c12 = arith.constant 12 : index
    %6 = vector.load %arg9[%c3, %c12] : memref<32x896xf32, #tpu.memory_space<vmem>>, vector<13x64xf32>
    tpu.vector_store %arg9[%c3, %c12], %5 {strides = array<i32>} : memref<32x896xf32, #tpu.memory_space<vmem>>, vector<13x64xf32>,
    %c0_7 = arith.constant 0 : index
    %c0_8 = arith.constant 0 : index
    %c0_9 = arith.constant 0 : index
    %7 = vector.load %arg1[%c0_7, %c0_8, %c0_9] : memref<2x16x64xf32, #tpu.memory_space<vmem>>, vector<1x14x64xf32>
    %8 = vector.shape_cast %7 : vector<1x14x64xf32> to vector<14x64xf32>
    %c2 = arith.constant 2 : index
    %c140 = arith.constant 140 : index
    %9 = vector.load %arg9[%c2, %c140] : memref<32x896xf32, #tpu.memory_space<vmem>>, vector<14x64xf32>
    tpu.vector_store %arg9[%c2, %c140], %8 {strides = array<i32>} : memref<32x896xf32, #tpu.memory_space<vmem>>, vector<14x64xf32>,
    %c0_10 = arith.constant 0 : index
    %c0_11 = arith.constant 0 : index
    %c0_12 = arith.constant 0 : index
    %10 = vector.load %arg1[%c0_10, %c0_11, %c0_12] : memref<2x16x64xf32, #tpu.memory_space<vmem>>, vector<1x15x64xf32>
    %11 = vector.shape_cast %10 : vector<1x15x64xf32> to vector<15x64xf32>
    %c1 = arith.constant 1 : index
    %c268 = arith.constant 268 : index
    %12 = vector.load %arg9[%c1, %c268] : memref<32x896xf32, #tpu.memory_space<vmem>>, vector<15x64xf32>
    tpu.vector_store %arg9[%c1, %c268], %11 {strides = array<i32>} : memref<32x896xf32, #tpu.memory_space<vmem>>, vector<15x64xf32>,
    %c0_13 = arith.constant 0 : index
    %c0_14 = arith.constant 0 : index
    %c0_15 = arith.constant 0 : index
    %13 = vector.load %arg1[%c0_13, %c0_14, %c0_15] : memref<2x16x64xf32, #tpu.memory_space<vmem>>, vector<1x16x64xf32>
    %14 = vector.shape_cast %13 : vector<1x16x64xf32> to vector<16x64xf32>
    %c0_16 = arith.constant 0 : index
    %c396 = arith.constant 396 : index
    %15 = vector.load %arg9[%c0_16, %c396] : memref<32x896xf32, #tpu.memory_space<vmem>>, vector<16x64xf32>
    tpu.vector_store %arg9[%c0_16, %c396], %14 {strides = array<i32>} : memref<32x896xf32, #tpu.memory_space<vmem>>, vector<16x64xf32>,
    %c0_17 = arith.constant 0 : index
    %c1_18 = arith.constant 1 : index
    %c0_19 = arith.constant 0 : index
    %16 = vector.load %arg1[%c0_17, %c1_18, %c0_19] : memref<2x16x64xf32, #tpu.memory_space<vmem>>, vector<1x15x64xf32>
    %17 = vector.shape_cast %16 : vector<1x15x64xf32> to vector<15x64xf32>
    %c0_20 = arith.constant 0 : index
    %c524 = arith.constant 524 : index
    %18 = vector.load %arg9[%c0_20, %c524] : memref<32x896xf32, #tpu.memory_space<vmem>>, vector<15x64xf32>
    tpu.vector_store %arg9[%c0_20, %c524], %17 {strides = array<i32>} : memref<32x896xf32, #tpu.memory_space<vmem>>, vector<15x64xf32>,
    %c0_21 = arith.constant 0 : index
    %c2_22 = arith.constant 2 : index
    %c0_23 = arith.constant 0 : index
    %19 = vector.load %arg1[%c0_21, %c2_22, %c0_23] : memref<2x16x64xf32, #tpu.memory_space<vmem>>, vector<1x14x64xf32>
    %20 = vector.shape_cast %19 : vector<1x14x64xf32> to vector<14x64xf32>
    %c0_24 = arith.constant 0 : index
    %c652 = arith.constant 652 : index
    %21 = vector.load %arg9[%c0_24, %c652] : memref<32x896xf32, #tpu.memory_space<vmem>>, vector<14x64xf32>
    tpu.vector_store %arg9[%c0_24, %c652], %20 {strides = array<i32>} : memref<32x896xf32, #tpu.memory_space<vmem>>, vector<14x64xf32>,
    %c0_25 = arith.constant 0 : index
    %c3_26 = arith.constant 3 : index
    %c0_27 = arith.constant 0 : index
    %22 = vector.load %arg1[%c0_25, %c3_26, %c0_27] : memref<2x16x64xf32, #tpu.memory_space<vmem>>, vector<1x13x64xf32>
    %23 = vector.shape_cast %22 : vector<1x13x64xf32> to vector<13x64xf32>
    %c0_28 = arith.constant 0 : index
    %c780 = arith.constant 780 : index
    %24 = vector.load %arg9[%c0_28, %c780] : memref<32x896xf32, #tpu.memory_space<vmem>>, vector<13x64xf32>
    tpu.vector_store %arg9[%c0_28, %c780], %23 {strides = array<i32>} : memref<32x896xf32, #tpu.memory_space<vmem>>, vector<13x64xf32>,
    %c1_29 = arith.constant 1 : index
    %c0_30 = arith.constant 0 : index
    %c0_31 = arith.constant 0 : index
    %25 = vector.load %arg1[%c1_29, %c0_30, %c0_31] : memref<2x16x64xf32, #tpu.memory_space<vmem>>, vector<1x13x64xf32>
    %26 = vector.shape_cast %25 : vector<1x13x64xf32> to vector<13x64xf32>
    %c19 = arith.constant 19 : index
    %c12_32 = arith.constant 12 : index
    %27 = vector.load %arg9[%c19, %c12_32] : memref<32x896xf32, #tpu.memory_space<vmem>>, vector<13x64xf32>
    tpu.vector_store %arg9[%c19, %c12_32], %26 {strides = array<i32>} : memref<32x896xf32, #tpu.memory_space<vmem>>, vector<13x64xf32>,
    %c1_33 = arith.constant 1 : index
    %c0_34 = arith.constant 0 : index
    %c0_35 = arith.constant 0 : index
    %28 = vector.load %arg1[%c1_33, %c0_34, %c0_35] : memref<2x16x64xf32, #tpu.memory_space<vmem>>, vector<1x14x64xf32>
    %29 = vector.shape_cast %28 : vector<1x14x64xf32> to vector<14x64xf32>
    %c18 = arith.constant 18 : index
    %c140_36 = arith.constant 140 : index
    %30 = vector.load %arg9[%c18, %c140_36] : memref<32x896xf32, #tpu.memory_space<vmem>>, vector<14x64xf32>
    tpu.vector_store %arg9[%c18, %c140_36], %29 {strides = array<i32>} : memref<32x896xf32, #tpu.memory_space<vmem>>, vector<14x64xf32>,
    %c1_37 = arith.constant 1 : index
    %c0_38 = arith.constant 0 : index
    %c0_39 = arith.constant 0 : index
    %31 = vector.load %arg1[%c1_37, %c0_38, %c0_39] : memref<2x16x64xf32, #tpu.memory_space<vmem>>, vector<1x15x64xf32>
    %32 = vector.shape_cast %31 : vector<1x15x64xf32> to vector<15x64xf32>
    %c17 = arith.constant 17 : index
    %c268_40 = arith.constant 268 : index
    %33 = vector.load %arg9[%c17, %c268_40] : memref<32x896xf32, #tpu.memory_space<vmem>>, vector<15x64xf32>
    tpu.vector_store %arg9[%c17, %c268_40], %32 {strides = array<i32>} : memref<32x896xf32, #tpu.memory_space<vmem>>, vector<15x64xf32>,
    %c1_41 = arith.constant 1 : index
    %c0_42 = arith.constant 0 : index
    %c0_43 = arith.constant 0 : index
    %34 = vector.load %arg1[%c1_41, %c0_42, %c0_43] : memref<2x16x64xf32, #tpu.memory_space<vmem>>, vector<1x16x64xf32>
    %35 = vector.shape_cast %34 : vector<1x16x64xf32> to vector<16x64xf32>
    %c16 = arith.constant 16 : index
    %c396_44 = arith.constant 396 : index
    %36 = vector.load %arg9[%c16, %c396_44] : memref<32x896xf32, #tpu.memory_space<vmem>>, vector<16x64xf32>
    tpu.vector_store %arg9[%c16, %c396_44], %35 {strides = array<i32>} : memref<32x896xf32, #tpu.memory_space<vmem>>, vector<16x64xf32>,
    %c1_45 = arith.constant 1 : index
    %c1_46 = arith.constant 1 : index
    %c0_47 = arith.constant 0 : index
    %37 = vector.load %arg1[%c1_45, %c1_46, %c0_47] : memref<2x16x64xf32, #tpu.memory_space<vmem>>, vector<1x15x64xf32>
    %38 = vector.shape_cast %37 : vector<1x15x64xf32> to vector<15x64xf32>
    %c16_48 = arith.constant 16 : index
    %c524_49 = arith.constant 524 : index
    %39 = vector.load %arg9[%c16_48, %c524_49] : memref<32x896xf32, #tpu.memory_space<vmem>>, vector<15x64xf32>
    tpu.vector_store %arg9[%c16_48, %c524_49], %38 {strides = array<i32>} : memref<32x896xf32, #tpu.memory_space<vmem>>, vector<15x64xf32>,
    %c1_50 = arith.constant 1 : index
    %c2_51 = arith.constant 2 : index
    %c0_52 = arith.constant 0 : index
    %40 = vector.load %arg1[%c1_50, %c2_51, %c0_52] : memref<2x16x64xf32, #tpu.memory_space<vmem>>, vector<1x14x64xf32>
    %41 = vector.shape_cast %40 : vector<1x14x64xf32> to vector<14x64xf32>
    %c16_53 = arith.constant 16 : index
    %c652_54 = arith.constant 652 : index
    %42 = vector.load %arg9[%c16_53, %c652_54] : memref<32x896xf32, #tpu.memory_space<vmem>>, vector<14x64xf32>
    tpu.vector_store %arg9[%c16_53, %c652_54], %41 {strides = array<i32>} : memref<32x896xf32, #tpu.memory_space<vmem>>, vector<14x64xf32>,
    %c1_55 = arith.constant 1 : index
    %c3_56 = arith.constant 3 : index
    %c0_57 = arith.constant 0 : index
    %43 = vector.load %arg1[%c1_55, %c3_56, %c0_57] : memref<2x16x64xf32, #tpu.memory_space<vmem>>, vector<1x13x64xf32>
    %44 = vector.shape_cast %43 : vector<1x13x64xf32> to vector<13x64xf32>
    %c16_58 = arith.constant 16 : index
    %c780_59 = arith.constant 780 : index
    %45 = vector.load %arg9[%c16_58, %c780_59] : memref<32x896xf32, #tpu.memory_space<vmem>>, vector<13x64xf32>
    tpu.vector_store %arg9[%c16_58, %c780_59], %44 {strides = array<i32>} : memref<32x896xf32, #tpu.memory_space<vmem>>, vector<13x64xf32>,
    %c0_60 = arith.constant 0 : index
    %c0_61 = arith.constant 0 : index
    %46 = vector.load %arg9[%c0_60, %c0_61] : memref<32x896xf32, #tpu.memory_space<vmem>>, vector<32x896xf32>
    %c0_62 = arith.constant 0 : index
    %c0_63 = arith.constant 0 : index
    %47 = vector.load %arg2[%c0_62, %c0_63] : memref<896x256xf32, #tpu.memory_space<vmem>>, vector<896x256xf32>
    %cst_64 = arith.constant dense<0.000000e+00> : vector<32x256xf32>
    %48 = tpu.matmul %46, %47, %cst_64 {dimension_numbers = #tpu.dot_dimension_numbers<[1], [0], [0], [1], [0, 0, 1, 1], [], []>} : vector<32x896xf32>, vector<896x256xf32>, vector<32x256xf32> -> vector<32x256xf32>
    %c0_65 = arith.constant 0 : index
    %c0_66 = arith.constant 0 : index
    %49 = vector.load %arg3[%c0_65, %c0_66] : memref<1x256xf32, #tpu.memory_space<vmem>>, vector<1x256xf32>
    %50 = vector.broadcast %49 : vector<1x256xf32> to vector<32x256xf32>
    %51 = arith.addf %48, %50 : vector<32x256xf32>
    %cst_67 = arith.constant 0.000000e+00 : f32
    %52 = vector.broadcast %cst_67 : f32 to vector<32x256xf32>
    %53 = arith.maximumf %51, %52 : vector<32x256xf32>
    %c0_68 = arith.constant 0 : index
    %c0_69 = arith.constant 0 : index
    %54 = vector.load %arg10[%c0_68, %c0_69] : memref<32x256xf32, #tpu.memory_space<vmem>>, vector<32x256xf32>
    tpu.vector_store %arg10[%c0_68, %c0_69], %53 {strides = array<i32>} : memref<32x256xf32, #tpu.memory_space<vmem>>, vector<32x256xf32>,
    %c0_70 = arith.constant 0 : index
    %c0_71 = arith.constant 0 : index
    %55 = vector.load %arg10[%c0_70, %c0_71] : memref<32x256xf32, #tpu.memory_space<vmem>>, vector<13x256xf32>
    %c3_72 = arith.constant 3 : index
    %c48 = arith.constant 48 : index
    %56 = vector.load %arg11[%c3_72, %c48] : memref<32x2688xf32, #tpu.memory_space<vmem>>, vector<13x256xf32>
    tpu.vector_store %arg11[%c3_72, %c48], %55 {strides = array<i32>} : memref<32x2688xf32, #tpu.memory_space<vmem>>, vector<13x256xf32>,
    %c0_73 = arith.constant 0 : index
    %c0_74 = arith.constant 0 : index
    %57 = vector.load %arg10[%c0_73, %c0_74] : memref<32x256xf32, #tpu.memory_space<vmem>>, vector<14x256xf32>
    %c2_75 = arith.constant 2 : index
    %c432 = arith.constant 432 : index
    %58 = vector.load %arg11[%c2_75, %c432] : memref<32x2688xf32, #tpu.memory_space<vmem>>, vector<14x256xf32>
    tpu.vector_store %arg11[%c2_75, %c432], %57 {strides = array<i32>} : memref<32x2688xf32, #tpu.memory_space<vmem>>, vector<14x256xf32>,
    %c0_76 = arith.constant 0 : index
    %c0_77 = arith.constant 0 : index
    %59 = vector.load %arg10[%c0_76, %c0_77] : memref<32x256xf32, #tpu.memory_space<vmem>>, vector<15x256xf32>
    %c1_78 = arith.constant 1 : index
    %c816 = arith.constant 816 : index
    %60 = vector.load %arg11[%c1_78, %c816] : memref<32x2688xf32, #tpu.memory_space<vmem>>, vector<15x256xf32>
    tpu.vector_store %arg11[%c1_78, %c816], %59 {strides = array<i32>} : memref<32x2688xf32, #tpu.memory_space<vmem>>, vector<15x256xf32>,
    %c0_79 = arith.constant 0 : index
    %c0_80 = arith.constant 0 : index
    %61 = vector.load %arg10[%c0_79, %c0_80] : memref<32x256xf32, #tpu.memory_space<vmem>>, vector<16x256xf32>
    %c0_81 = arith.constant 0 : index
    %c1200 = arith.constant 1200 : index
    %62 = vector.load %arg11[%c0_81, %c1200] : memref<32x2688xf32, #tpu.memory_space<vmem>>, vector<16x256xf32>
    tpu.vector_store %arg11[%c0_81, %c1200], %61 {strides = array<i32>} : memref<32x2688xf32, #tpu.memory_space<vmem>>, vector<16x256xf32>,
    %c1_82 = arith.constant 1 : index
    %c0_83 = arith.constant 0 : index
    %63 = vector.load %arg10[%c1_82, %c0_83] : memref<32x256xf32, #tpu.memory_space<vmem>>, vector<15x256xf32>
    %c0_84 = arith.constant 0 : index
    %c1584 = arith.constant 1584 : index
    %64 = vector.load %arg11[%c0_84, %c1584] : memref<32x2688xf32, #tpu.memory_space<vmem>>, vector<15x256xf32>
    tpu.vector_store %arg11[%c0_84, %c1584], %63 {strides = array<i32>} : memref<32x2688xf32, #tpu.memory_space<vmem>>, vector<15x256xf32>,
    %c2_85 = arith.constant 2 : index
    %c0_86 = arith.constant 0 : index
    %65 = vector.load %arg10[%c2_85, %c0_86] : memref<32x256xf32, #tpu.memory_space<vmem>>, vector<14x256xf32>
    %c0_87 = arith.constant 0 : index
    %c1968 = arith.constant 1968 : index
    %66 = vector.load %arg11[%c0_87, %c1968] : memref<32x2688xf32, #tpu.memory_space<vmem>>, vector<14x256xf32>
    tpu.vector_store %arg11[%c0_87, %c1968], %65 {strides = array<i32>} : memref<32x2688xf32, #tpu.memory_space<vmem>>, vector<14x256xf32>,
    %c3_88 = arith.constant 3 : index
    %c0_89 = arith.constant 0 : index
    %67 = vector.load %arg10[%c3_88, %c0_89] : memref<32x256xf32, #tpu.memory_space<vmem>>, vector<13x256xf32>
    %c0_90 = arith.constant 0 : index
    %c2352 = arith.constant 2352 : index
    %68 = vector.load %arg11[%c0_90, %c2352] : memref<32x2688xf32, #tpu.memory_space<vmem>>, vector<13x256xf32>
    tpu.vector_store %arg11[%c0_90, %c2352], %67 {strides = array<i32>} : memref<32x2688xf32, #tpu.memory_space<vmem>>, vector<13x256xf32>,
    %c16_91 = arith.constant 16 : index
    %c0_92 = arith.constant 0 : index
    %69 = vector.load %arg10[%c16_91, %c0_92] : memref<32x256xf32, #tpu.memory_space<vmem>>, vector<13x256xf32>
    %c19_93 = arith.constant 19 : index
    %c48_94 = arith.constant 48 : index
    %70 = vector.load %arg11[%c19_93, %c48_94] : memref<32x2688xf32, #tpu.memory_space<vmem>>, vector<13x256xf32>
    tpu.vector_store %arg11[%c19_93, %c48_94], %69 {strides = array<i32>} : memref<32x2688xf32, #tpu.memory_space<vmem>>, vector<13x256xf32>,
    %c16_95 = arith.constant 16 : index
    %c0_96 = arith.constant 0 : index
    %71 = vector.load %arg10[%c16_95, %c0_96] : memref<32x256xf32, #tpu.memory_space<vmem>>, vector<14x256xf32>
    %c18_97 = arith.constant 18 : index
    %c432_98 = arith.constant 432 : index
    %72 = vector.load %arg11[%c18_97, %c432_98] : memref<32x2688xf32, #tpu.memory_space<vmem>>, vector<14x256xf32>
    tpu.vector_store %arg11[%c18_97, %c432_98], %71 {strides = array<i32>} : memref<32x2688xf32, #tpu.memory_space<vmem>>, vector<14x256xf32>,
    %c16_99 = arith.constant 16 : index
    %c0_100 = arith.constant 0 : index
    %73 = vector.load %arg10[%c16_99, %c0_100] : memref<32x256xf32, #tpu.memory_space<vmem>>, vector<15x256xf32>
    %c17_101 = arith.constant 17 : index
    %c816_102 = arith.constant 816 : index
    %74 = vector.load %arg11[%c17_101, %c816_102] : memref<32x2688xf32, #tpu.memory_space<vmem>>, vector<15x256xf32>
    tpu.vector_store %arg11[%c17_101, %c816_102], %73 {strides = array<i32>} : memref<32x2688xf32, #tpu.memory_space<vmem>>, vector<15x256xf32>,
    %c16_103 = arith.constant 16 : index
    %c0_104 = arith.constant 0 : index
    %75 = vector.load %arg10[%c16_103, %c0_104] : memref<32x256xf32, #tpu.memory_space<vmem>>, vector<16x256xf32>
    %c16_105 = arith.constant 16 : index
    %c1200_106 = arith.constant 1200 : index
    %76 = vector.load %arg11[%c16_105, %c1200_106] : memref<32x2688xf32, #tpu.memory_space<vmem>>, vector<16x256xf32>
    tpu.vector_store %arg11[%c16_105, %c1200_106], %75 {strides = array<i32>} : memref<32x2688xf32, #tpu.memory_space<vmem>>, vector<16x256xf32>,
    %c17_107 = arith.constant 17 : index
    %c0_108 = arith.constant 0 : index
    %77 = vector.load %arg10[%c17_107, %c0_108] : memref<32x256xf32, #tpu.memory_space<vmem>>, vector<15x256xf32>
    %c16_109 = arith.constant 16 : index
    %c1584_110 = arith.constant 1584 : index
    %78 = vector.load %arg11[%c16_109, %c1584_110] : memref<32x2688xf32, #tpu.memory_space<vmem>>, vector<15x256xf32>
    tpu.vector_store %arg11[%c16_109, %c1584_110], %77 {strides = array<i32>} : memref<32x2688xf32, #tpu.memory_space<vmem>>, vector<15x256xf32>,
    %c18_111 = arith.constant 18 : index
    %c0_112 = arith.constant 0 : index
    %79 = vector.load %arg10[%c18_111, %c0_112] : memref<32x256xf32, #tpu.memory_space<vmem>>, vector<14x256xf32>
    %c16_113 = arith.constant 16 : index
    %c1968_114 = arith.constant 1968 : index
    %80 = vector.load %arg11[%c16_113, %c1968_114] : memref<32x2688xf32, #tpu.memory_space<vmem>>, vector<14x256xf32>
    tpu.vector_store %arg11[%c16_113, %c1968_114], %79 {strides = array<i32>} : memref<32x2688xf32, #tpu.memory_space<vmem>>, vector<14x256xf32>,
    %c19_115 = arith.constant 19 : index
    %c0_116 = arith.constant 0 : index
    %81 = vector.load %arg10[%c19_115, %c0_116] : memref<32x256xf32, #tpu.memory_space<vmem>>, vector<13x256xf32>
    %c16_117 = arith.constant 16 : index
    %c2352_118 = arith.constant 2352 : index
    %82 = vector.load %arg11[%c16_117, %c2352_118] : memref<32x2688xf32, #tpu.memory_space<vmem>>, vector<13x256xf32>
    tpu.vector_store %arg11[%c16_117, %c2352_118], %81 {strides = array<i32>} : memref<32x2688xf32, #tpu.memory_space<vmem>>, vector<13x256xf32>,
    %c0_119 = arith.constant 0 : index
    %c0_120 = arith.constant 0 : index
    %83 = vector.load %arg11[%c0_119, %c0_120] : memref<32x2688xf32, #tpu.memory_space<vmem>>, vector<32x2688xf32>
    %c0_121 = arith.constant 0 : index
    %c0_122 = arith.constant 0 : index
    %84 = vector.load %arg4[%c0_121, %c0_122] : memref<2688x256xf32, #tpu.memory_space<vmem>>, vector<2688x256xf32>
    %cst_123 = arith.constant dense<0.000000e+00> : vector<32x256xf32>
    %85 = tpu.matmul %83, %84, %cst_123 {dimension_numbers = #tpu.dot_dimension_numbers<[1], [0], [0], [1], [0, 0, 1, 1], [], []>} : vector<32x2688xf32>, vector<2688x256xf32>, vector<32x256xf32> -> vector<32x256xf32>
    %c0_124 = arith.constant 0 : index
    %c0_125 = arith.constant 0 : index
    %86 = vector.load %arg5[%c0_124, %c0_125] : memref<1x256xf32, #tpu.memory_space<vmem>>, vector<1x256xf32>
    %87 = vector.broadcast %86 : vector<1x256xf32> to vector<32x256xf32>
    %88 = arith.addf %85, %87 : vector<32x256xf32>
    %cst_126 = arith.constant 0.000000e+00 : f32
    %89 = vector.broadcast %cst_126 : f32 to vector<32x256xf32>
    %90 = arith.maximumf %88, %89 : vector<32x256xf32>
    %c0_127 = arith.constant 0 : index
    %c0_128 = arith.constant 0 : index
    %91 = vector.load %arg6[%c0_127, %c0_128] : memref<256x128xf32, #tpu.memory_space<vmem>>, vector<256x128xf32>
    %cst_129 = arith.constant dense<0.000000e+00> : vector<32x128xf32>
    %92 = tpu.matmul %90, %91, %cst_129 {dimension_numbers = #tpu.dot_dimension_numbers<[1], [0], [0], [1], [0, 0, 1, 1], [], []>} : vector<32x256xf32>, vector<256x128xf32>, vector<32x128xf32> -> vector<32x128xf32>
    %c0_130 = arith.constant 0 : index
    %c0_131 = arith.constant 0 : index
    %93 = vector.load %arg7[%c0_130, %c0_131] : memref<1x128xf32, #tpu.memory_space<vmem>>, vector<1x128xf32>
    %94 = vector.broadcast %93 : vector<1x128xf32> to vector<32x128xf32>
    %95 = arith.addf %92, %94 : vector<32x128xf32>
    %96 = vector.extract_strided_slice %95 {offsets = [0, 0], sizes = [16, 128], strides = [1, 1]} : vector<32x128xf32> to vector<16x128xf32>
    %c0_132 = arith.constant 0 : index
    %c0_133 = arith.constant 0 : index
    %c0_134 = arith.constant 0 : index
    %97 = vector.load %arg8[%c0_132, %c0_133, %c0_134] : memref<2x16x128xf32, #tpu.memory_space<vmem>>, vector<1x16x128xf32>
    %98 = vector.shape_cast %97 : vector<1x16x128xf32> to vector<16x128xf32>
    %99 = vector.shape_cast %96 : vector<16x128xf32> to vector<1x16x128xf32>
    tpu.vector_store %arg8[%c0_132, %c0_133, %c0_134], %99 {strides = array<i32>} : memref<2x16x128xf32, #tpu.memory_space<vmem>>, vector<1x16x128xf32>,
    %100 = vector.extract_strided_slice %95 {offsets = [16, 0], sizes = [16, 128], strides = [1, 1]} : vector<32x128xf32> to vector<16x128xf32>
    %c1_135 = arith.constant 1 : index
    %c0_136 = arith.constant 0 : index
    %c0_137 = arith.constant 0 : index
    %101 = vector.load %arg8[%c1_135, %c0_136, %c0_137] : memref<2x16x128xf32, #tpu.memory_space<vmem>>, vector<1x16x128xf32>
    %102 = vector.shape_cast %101 : vector<1x16x128xf32> to vector<16x128xf32>
    %103 = vector.shape_cast %100 : vector<16x128xf32> to vector<1x16x128xf32>
    tpu.vector_store %arg8[%c1_135, %c0_136, %c0_137], %103 {strides = array<i32>} : memref<2x16x128xf32, #tpu.memory_space<vmem>>, vector<1x16x128xf32>,
    return
  }
  func.func @transform_0(%arg0: i32) -> (i32, i32, i32) {
    %c0_i32 = arith.constant 0 : i32
    %c0_i32_0 = arith.constant 0 : i32
    %c0_i32_1 = arith.constant 0 : i32
    return %arg0, %c0_i32, %c0_i32_0 : i32, i32, i32
  }
  func.func @transform_1(%arg0: i32) -> (i32, i32) {
    %c0_i32 = arith.constant 0 : i32
    %c0_i32_0 = arith.constant 0 : i32
    %c0_i32_1 = arith.constant 0 : i32
    return %c0_i32, %c0_i32_0 : i32, i32
  }
  func.func @transform_2(%arg0: i32) -> (i32, i32) {
    %c0_i32 = arith.constant 0 : i32
    %c0_i32_0 = arith.constant 0 : i32
    %c0_i32_1 = arith.constant 0 : i32
    return %c0_i32, %c0_i32_0 : i32, i32
  }
  func.func @transform_3(%arg0: i32) -> (i32, i32) {
    %c0_i32 = arith.constant 0 : i32
    %c0_i32_0 = arith.constant 0 : i32
    %c0_i32_1 = arith.constant 0 : i32
    return %c0_i32, %c0_i32_0 : i32, i32
  }
  func.func @transform_4(%arg0: i32) -> (i32, i32) {
    %c0_i32 = arith.constant 0 : i32
    %c0_i32_0 = arith.constant 0 : i32
    %c0_i32_1 = arith.constant 0 : i32
    return %c0_i32, %c0_i32_0 : i32, i32
  }
  func.func @transform_5(%arg0: i32) -> (i32, i32) {
    %c0_i32 = arith.constant 0 : i32
    %c0_i32_0 = arith.constant 0 : i32
    %c0_i32_1 = arith.constant 0 : i32
    return %c0_i32, %c0_i32_0 : i32, i32
  }
  func.func @transform_6(%arg0: i32) -> (i32, i32) {
    %c0_i32 = arith.constant 0 : i32
    %c0_i32_0 = arith.constant 0 : i32
    %c0_i32_1 = arith.constant 0 : i32
    return %c0_i32, %c0_i32_0 : i32, i32
  }
  func.func @transform_7(%arg0: i32) -> (i32, i32, i32) {
    %c0_i32 = arith.constant 0 : i32
    %c0_i32_0 = arith.constant 0 : i32
    %c0_i32_1 = arith.constant 0 : i32
    return %arg0, %c0_i32, %c0_i32_0 : i32, i32, i32
  }
}

</mosaic_0001>

<llo_original>
// kernel: tile.18
$region0: #{tile.18}
  #allocation0 [shape = 's32[1]{0}', space=sflag, size = 0x4, scoped, tag = 'scoped memory for tile.18']
  %s0 = inlined_call_operand.vmem [shape: f32[16], index: 0, kind: input, shape index: {}]
  %s1 = inlined_call_operand.vmem [shape: f32[16,16], index: 1, kind: output, shape index: {}]
  // Predicated region
  $region2: #{tile.18} parent=0 // pred_check
    _
  $region3: #{tile.18} parent=0 // pred_check_branch
    %3 = sbr.rel (0) target = $region5
  $region4: #{tile.18} parent=0 // pred_region
    _
  $region5: #{tile.18} parent=0 // pred_fallthru
    _
  %v4 = vld [vmem:[%s0] ss:$0 sm:$0xff]
  %5 = vst [vmem:[%s1] sm:$0xff] %v4
  %s6 = scalar_lea.vmem %s1, 8
  %7 = vst [vmem:[%s6] sm:$0xff] %v4

// kernel: tile.19
$region0: #{tile.19}
  %s0 = inlined_call_operand.vmem [shape: f32[16,16], index: 0, kind: input, shape index: {}]
  %s1 = inlined_call_operand.vmem [shape: f32[1,256], index: 1, kind: output, shape index: {}]
  $region1: #{tile.19} parent=0
    #allocation0 [shape = 'u8[8192]{0}', space=vmem, size = 0x2000, scoped, tag = 'scoped mem for output reshape']
    %s2 = smov 3
    %v3 = vld [vmem:[%s0] ss:$8 sm:%s2]
    %vm4 = vcmask 130048
    %5 = vst.msk [vmem:[#allocation0] ss:$8 sm:$0x3] %vm4, %v3
    %s6 = scalar_lea.vmem %s0, 7
    %s7 = smov 3
    %v8 = vld [vmem:[%s6] ss:$8 sm:%s7]
    %9 = vrot.lane.b32.xlu0 %v8, 112
    %v10 = vpop.permute.xlu0 %9
    %vm11 = vcmask 1048448
    %12 = vst.msk [vmem:[#allocation0] ss:$8 sm:$0x3] %vm11, %v10
    %s13 = scalar_lea.vmem %s0, 6
    %s14 = smov 3
    %v15 = vld [vmem:[%s13] ss:$8 sm:%s14]
    %16 = vrot.lane.b32.xlu0 %v15, 96
    %v17 = vpop.permute.xlu0 %16
    %vm18 = vcmask 917248
    %19 = vst.msk [vmem:[#allocation0] ss:$8 sm:$0x3] %vm18, %v17
    %s20 = scalar_lea.vmem %s0, 5
    %s21 = smov 3
    %v22 = vld [vmem:[%s20] ss:$8 sm:%s21]
    %23 = vrot.lane.b32.xlu0 %v22, 80
    %v24 = vpop.permute.xlu0 %23
    %vm25 = vcmask 786048
    %26 = vst.msk [vmem:[#allocation0] ss:$8 sm:$0x3] %vm25, %v24
    %s27 = scalar_lea.vmem %s0, 4
    %s28 = smov 3
    %v29 = vld [vmem:[%s27] ss:$8 sm:%s28]
    %30 = vrot.lane.b32.xlu0 %v29, 64
    %v31 = vpop.permute.xlu0 %30
    %vm32 = vcmask 654848
    %33 = vst.msk [vmem:[#allocation0] ss:$8 sm:$0x3] %vm32, %v31
    %s34 = scalar_lea.vmem %s0, 3
    %s35 = smov 3
    %v36 = vld [vmem:[%s34] ss:$8 sm:%s35]
    %37 = vrot.lane.b32.xlu0 %v36, 48
    %v38 = vpop.permute.xlu0 %37
    %vm39 = vcmask 523648
    %40 = vst.msk [vmem:[#allocation0] ss:$8 sm:$0x3] %vm39, %v38
    %s41 = scalar_lea.vmem %s0, 2
    %s42 = smov 3
    %v43 = vld [vmem:[%s41] ss:$8 sm:%s42]
    %44 = vrot.lane.b32.xlu0 %v43, 32
    %v45 = vpop.permute.xlu0 %44
    %vm46 = vcmask 392448
    %47 = vst.msk [vmem:[#allocation0] ss:$8 sm:$0x3] %vm46, %v45
    %s48 = scalar_lea.vmem %s0, 1
    %s49 = smov 3
    %v50 = vld [vmem:[%s48] ss:$8 sm:%s49]
    %51 = vrot.lane.b32.xlu0 %v50, 16
    %v52 = vpop.permute.xlu0 %51
    %vm53 = vcmask 261248
    %54 = vst.msk [vmem:[#allocation0] ss:$8 sm:$0x3] %vm53, %v52
    %s56 = ssub.s32 2, 1
    %v57 = vld [vmem:[#allocation0] sm:%s56]
    %s59 = ssub.s32 2, 1
    %60 = vst [vmem:[%s1] sm:%s59] %v57
    %s61 = scalar_lea.vmem [#allocation0], 8
    %v62 = vld [vmem:[%s61] sm:%s56]
    %s64 = ssub.s32 2, 1
    %s65 = scalar_lea.vmem %s1, 1
    %66 = vst [vmem:[%s65] sm:%s64] %v62

// kernel: tile.28
$region0: #{tile.28}
  #allocation0 [shape = 's32[1]{0}', space=sflag, size = 0x4, scoped, tag = 'scoped memory for tile.28']
  %s0 = inlined_call_operand.vmem [shape: f32[8], index: 0, kind: input, shape index: {}]
  %s1 = inlined_call_operand.vmem [shape: f32[16,8], index: 1, kind: output, shape index: {}]
  // Predicated region
  $region2: #{tile.28} parent=0 // pred_check
    _
  $region3: #{tile.28} parent=0 // pred_check_branch
    %3 = sbr.rel (0) target = $region5
  $region4: #{tile.28} parent=0 // pred_region
    _
  $region5: #{tile.28} parent=0 // pred_fallthru
    _
  %v4 = vld [vmem:[%s0] ss:$0 sm:$0xff]
  %5 = vst [vmem:[%s1] sm:$0xff] %v4
  %s6 = scalar_lea.vmem %s1, 8
  %7 = vst [vmem:[%s6] sm:$0xff] %v4

// kernel: tile.29
$region0: #{tile.29}
  %s0 = inlined_call_operand.vmem [shape: f32[16,8], index: 0, kind: input, shape index: {}]
  %s1 = inlined_call_operand.vmem [shape: f32[1,128], index: 1, kind: output, shape index: {}]
  $region1: #{tile.29} parent=0
    #allocation0 [shape = 'u8[4096]{0}', space=vmem, size = 0x1000, scoped, tag = 'scoped mem for output reshape']
    %v2 = vld [vmem:[%s0] sm:$0x1]
    %vm3 = vcmask 64512
    %4 = vst.msk [vmem:[#allocation0] sm:$0x1] %vm3, %v2
    %s5 = scalar_lea.vmem %s0, 15
    %v6 = vld [vmem:[%s5] sm:$0x1]
    %7 = vrot.lane.b32.xlu0 %v6, 120
    %v8 = vpop.permute.xlu0 %7
    %vm9 = vcmask 1048512
    %10 = vst.msk [vmem:[#allocation0] sm:$0x1] %vm9, %v8
    %s11 = scalar_lea.vmem %s0, 14
    %v12 = vld [vmem:[%s11] sm:$0x1]
    %13 = vrot.lane.b32.xlu0 %v12, 112
    %v14 = vpop.permute.xlu0 %13
    %vm15 = vcmask 982912
    %16 = vst.msk [vmem:[#allocation0] sm:$0x1] %vm15, %v14
    %s17 = scalar_lea.vmem %s0, 13
    %v18 = vld [vmem:[%s17] sm:$0x1]
    %19 = vrot.lane.b32.xlu0 %v18, 104
    %v20 = vpop.permute.xlu0 %19
    %vm21 = vcmask 917312
    %22 = vst.msk [vmem:[#allocation0] sm:$0x1] %vm21, %v20
    %s23 = scalar_lea.vmem %s0, 12
    %v24 = vld [vmem:[%s23] sm:$0x1]
    %25 = vrot.lane.b32.xlu0 %v24, 96
    %v26 = vpop.permute.xlu0 %25
    %vm27 = vcmask 851712
    %28 = vst.msk [vmem:[#allocation0] sm:$0x1] %vm27, %v26
    %s29 = scalar_lea.vmem %s0, 11
    %v30 = vld [vmem:[%s29] sm:$0x1]
    %31 = vrot.lane.b32.xlu0 %v30, 88
    %v32 = vpop.permute.xlu0 %31
    %vm33 = vcmask 786112
    %34 = vst.msk [vmem:[#allocation0] sm:$0x1] %vm33, %v32
    %s35 = scalar_lea.vmem %s0, 10
    %v36 = vld [vmem:[%s35] sm:$0x1]
    %37 = vrot.lane.b32.xlu0 %v36, 80
    %v38 = vpop.permute.xlu0 %37
    %vm39 = vcmask 720512
    %40 = vst.msk [vmem:[#allocation0] sm:$0x1] %vm39, %v38
    %s41 = scalar_lea.vmem %s0, 9
    %v42 = vld [vmem:[%s41] sm:$0x1]
    %43 = vrot.lane.b32.xlu0 %v42, 72
    %v44 = vpop.permute.xlu0 %43
    %vm45 = vcmask 654912
    %46 = vst.msk [vmem:[#allocation0] sm:$0x1] %vm45, %v44
    %s47 = scalar_lea.vmem %s0, 8
    %v48 = vld [vmem:[%s47] sm:$0x1]
    %49 = vrot.lane.b32.xlu0 %v48, 64
    %v50 = vpop.permute.xlu0 %49
    %vm51 = vcmask 589312
    %52 = vst.msk [vmem:[#allocation0] sm:$0x1] %vm51, %v50
    %s53 = scalar_lea.vmem %s0, 7
    %v54 = vld [vmem:[%s53] sm:$0x1]
    %55 = vrot.lane.b32.xlu0 %v54, 56
    %v56 = vpop.permute.xlu0 %55
    %vm57 = vcmask 523712
    %58 = vst.msk [vmem:[#allocation0] sm:$0x1] %vm57, %v56
    %s59 = scalar_lea.vmem %s0, 6
    %v60 = vld [vmem:[%s59] sm:$0x1]
    %61 = vrot.lane.b32.xlu0 %v60, 48
    %v62 = vpop.permute.xlu0 %61
    %vm63 = vcmask 458112
    %64 = vst.msk [vmem:[#allocation0] sm:$0x1] %vm63, %v62
    %s65 = scalar_lea.vmem %s0, 5
    %v66 = vld [vmem:[%s65] sm:$0x1]
    %67 = vrot.lane.b32.xlu0 %v66, 40
    %v68 = vpop.permute.xlu0 %67
    %vm69 = vcmask 392512
    %70 = vst.msk [vmem:[#allocation0] sm:$0x1] %vm69, %v68
    %s71 = scalar_lea.vmem %s0, 4
    %v72 = vld [vmem:[%s71] sm:$0x1]
    %73 = vrot.lane.b32.xlu0 %v72, 32
    %v74 = vpop.permute.xlu0 %73
    %vm75 = vcmask 326912
    %76 = vst.msk [vmem:[#allocation0] sm:$0x1] %vm75, %v74
    %s77 = scalar_lea.vmem %s0, 3
    %v78 = vld [vmem:[%s77] sm:$0x1]
    %79 = vrot.lane.b32.xlu0 %v78, 24
    %v80 = vpop.permute.xlu0 %79
    %vm81 = vcmask 261312
    %82 = vst.msk [vmem:[#allocation0] sm:$0x1] %vm81, %v80
    %s83 = scalar_lea.vmem %s0, 2
    %v84 = vld [vmem:[%s83] sm:$0x1]
    %85 = vrot.lane.b32.xlu0 %v84, 16
    %v86 = vpop.permute.xlu0 %85
    %vm87 = vcmask 195712
    %88 = vst.msk [vmem:[#allocation0] sm:$0x1] %vm87, %v86
    %s89 = scalar_lea.vmem %s0, 1
    %v90 = vld [vmem:[%s89] sm:$0x1]
    %91 = vrot.lane.b32.xlu0 %v90, 8
    %v92 = vpop.permute.xlu0 %91
    %vm93 = vcmask 130112
    %94 = vst.msk [vmem:[#allocation0] sm:$0x1] %vm93, %v92
    %s96 = ssub.s32 2, 1
    %v97 = vld [vmem:[#allocation0] sm:%s96]
    %s99 = ssub.s32 2, 1
    %100 = vst [vmem:[%s1] sm:%s99] %v97

// kernel: conv_3_1_forward.1
$region0: #{conv_3_1_forward.1}
  #allocation0 [shape = 'u32[]', space=smem, size = 0x4, offset = 0x4, fixed_abs, tag = 'smem constant byte address 0x4 - core index']
  #allocation1 [shape = 'u32[72,128]{1,0:T(1,128)}', space=vmem, size = 0x9000, scoped, tag = 'internal scratch']
  #allocation2 [shape = 'f32[32,896]{1,0:T(8,128)}', space=vmem, size = 0x1c000, scoped, tag = 'scratch operand']
  #allocation3 [shape = 'f32[32,256]{1,0:T(8,128)}', space=vmem, size = 0x8000, scoped, tag = 'scratch operand']
  #allocation4 [shape = 'f32[32,2688]{1,0:T(8,128)}', space=vmem, size = 0x54000, scoped, tag = 'scratch operand']
  %s0 = inlined_call_operand.vmem [shape: f32[2,16,64], index: 0, kind: input, shape index: {}]
  %s1 = inlined_call_operand.vmem [shape: f32[896,256], index: 1, kind: input, shape index: {}]
  %s2 = inlined_call_operand.vmem [shape: f32[1,256], index: 2, kind: input, shape index: {}]
  %s3 = inlined_call_operand.vmem [shape: f32[2688,256], index: 3, kind: input, shape index: {}]
  %s4 = inlined_call_operand.vmem [shape: f32[1,256], index: 4, kind: input, shape index: {}]
  %s5 = inlined_call_operand.vmem [shape: f32[256,128], index: 5, kind: input, shape index: {}]
  %s6 = inlined_call_operand.vmem [shape: f32[1,128], index: 6, kind: input, shape index: {}]
  %s7 = inlined_call_operand.vmem [shape: f32[2,16,128], index: 7, kind: output, shape index: {}]
  %s8 = sld [smem:[#allocation0]]
  $region38: #{conv_3_1_forward.1} parent=0
    _
  %s10 = ssub.s32 1, %s8
  %s11 = scalar_select 0, %s10, %s8
  // Predicated region
  $region2: #{conv_3_1_forward.1} parent=0 // pred_check
    _
  $region3: #{conv_3_1_forward.1} parent=0 // pred_check_branch
    %13 = sbr.rel (0) target = $region5
  $region4: #{conv_3_1_forward.1} parent=0 // pred_region
    _
  $region5: #{conv_3_1_forward.1} parent=0 // pred_fallthru
    _
  // Predicated region
  $region6: #{conv_3_1_forward.1} parent=0 // pred_check
    _
  $region7: #{conv_3_1_forward.1} parent=0 // pred_check_branch
    %15 = sbr.rel (0) target = $region9
  $region8: #{conv_3_1_forward.1} parent=0 // pred_region
    _
  $region9: #{conv_3_1_forward.1} parent=0 // pred_fallthru
    _
  // Predicated region
  $region10: #{conv_3_1_forward.1} parent=0 // pred_check
    _
  $region11: #{conv_3_1_forward.1} parent=0 // pred_check_branch
    %17 = sbr.rel (0) target = $region13
  $region12: #{conv_3_1_forward.1} parent=0 // pred_region
    _
  $region13: #{conv_3_1_forward.1} parent=0 // pred_fallthru
    _
  // Predicated region
  $region14: #{conv_3_1_forward.1} parent=0 // pred_check
    _
  $region15: #{conv_3_1_forward.1} parent=0 // pred_check_branch
    %19 = sbr.rel (0) target = $region17
  $region16: #{conv_3_1_forward.1} parent=0 // pred_region
    _
  $region17: #{conv_3_1_forward.1} parent=0 // pred_fallthru
    _
  // Predicated region
  $region18: #{conv_3_1_forward.1} parent=0 // pred_check
    _
  $region19: #{conv_3_1_forward.1} parent=0 // pred_check_branch
    %21 = sbr.rel (0) target = $region21
  $region20: #{conv_3_1_forward.1} parent=0 // pred_region
    _
  $region21: #{conv_3_1_forward.1} parent=0 // pred_fallthru
    _
  // Predicated region
  $region22: #{conv_3_1_forward.1} parent=0 // pred_check
    _
  $region23: #{conv_3_1_forward.1} parent=0 // pred_check_branch
    %23 = sbr.rel (0) target = $region25
  $region24: #{conv_3_1_forward.1} parent=0 // pred_region
    _
  $region25: #{conv_3_1_forward.1} parent=0 // pred_fallthru
    _
  // Predicated region
  $region26: #{conv_3_1_forward.1} parent=0 // pred_check
    _
  $region27: #{conv_3_1_forward.1} parent=0 // pred_check_branch
    %25 = sbr.rel (0) target = $region29
  $region28: #{conv_3_1_forward.1} parent=0 // pred_region
    _
  $region29: #{conv_3_1_forward.1} parent=0 // pred_fallthru
    _
  %26 = vst [vmem:[#allocation2] sm:$0xff] 0.0
  %27 = vst [vmem:[#allocation2 + $0x8] sm:$0xff] 0.0
  %28 = vst [vmem:[#allocation2 + $0x10] sm:$0xff] 0.0
  %29 = vst [vmem:[#allocation2 + $0x18] sm:$0xff] 0.0
  %30 = vst [vmem:[#allocation2 + $0x20] sm:$0xff] 0.0
  %31 = vst [vmem:[#allocation2 + $0x28] sm:$0xff] 0.0
  %32 = vst [vmem:[#allocation2 + $0x30] sm:$0xff] 0.0
  %33 = vst [vmem:[#allocation2 + $0x38] sm:$0xff] 0.0
  %34 = vst [vmem:[#allocation2 + $0x40] sm:$0xff] 0.0
  %35 = vst [vmem:[#allocation2 + $0x48] sm:$0xff] 0.0
  %36 = vst [vmem:[#allocation2 + $0x50] sm:$0xff] 0.0
  %37 = vst [vmem:[#allocation2 + $0x58] sm:$0xff] 0.0
  %38 = vst [vmem:[#allocation2 + $0x60] sm:$0xff] 0.0
  %39 = vst [vmem:[#allocation2 + $0x68] sm:$0xff] 0.0
  %40 = vst [vmem:[#allocation2 + $0x70] sm:$0xff] 0.0
  %41 = vst [vmem:[#allocation2 + $0x78] sm:$0xff] 0.0
  %42 = vst [vmem:[#allocation2 + $0x80] sm:$0xff] 0.0
  %43 = vst [vmem:[#allocation2 + $0x88] sm:$0xff] 0.0
  %44 = vst [vmem:[#allocation2 + $0x90] sm:$0xff] 0.0
  %45 = vst [vmem:[#allocation2 + $0x98] sm:$0xff] 0.0
  %46 = vst [vmem:[#allocation2 + $0xa0] sm:$0xff] 0.0
  %47 = vst [vmem:[#allocation2 + $0xa8] sm:$0xff] 0.0
  %48 = vst [vmem:[#allocation2 + $0xb0] sm:$0xff] 0.0
  %49 = vst [vmem:[#allocation2 + $0xb8] sm:$0xff] 0.0
  %50 = vst [vmem:[#allocation2 + $0xc0] sm:$0xff] 0.0
  %51 = vst [vmem:[#allocation2 + $0xc8] sm:$0xff] 0.0
  %52 = vst [vmem:[#allocation2 + $0xd0] sm:$0xff] 0.0
  %53 = vst [vmem:[#allocation2 + $0xd8] sm:$0xff] 0.0
  %54 = vst [vmem:[#allocation4] sm:$0xff] 0.0
  %55 = vst [vmem:[#allocation4 + $0x8] sm:$0xff] 0.0
  %56 = vst [vmem:[#allocation4 + $0x10] sm:$0xff] 0.0
  %57 = vst [vmem:[#allocation4 + $0x18] sm:$0xff] 0.0
  %58 = vst [vmem:[#allocation4 + $0x20] sm:$0xff] 0.0
  %59 = vst [vmem:[#allocation4 + $0x28] sm:$0xff] 0.0
  %60 = vst [vmem:[#allocation4 + $0x30] sm:$0xff] 0.0
  %61 = vst [vmem:[#allocation4 + $0x38] sm:$0xff] 0.0
  %62 = vst [vmem:[#allocation4 + $0x40] sm:$0xff] 0.0
  %63 = vst [vmem:[#allocation4 + $0x48] sm:$0xff] 0.0
  %64 = vst [vmem:[#allocation4 + $0x50] sm:$0xff] 0.0
  %65 = vst [vmem:[#allocation4 + $0x58] sm:$0xff] 0.0
  %66 = vst [vmem:[#allocation4 + $0x60] sm:$0xff] 0.0
  %67 = vst [vmem:[#allocation4 + $0x68] sm:$0xff] 0.0
  %68 = vst [vmem:[#allocation4 + $0x70] sm:$0xff] 0.0
  %69 = vst [vmem:[#allocation4 + $0x78] sm:$0xff] 0.0
  %70 = vst [vmem:[#allocation4 + $0x80] sm:$0xff] 0.0
  %71 = vst [vmem:[#allocation4 + $0x88] sm:$0xff] 0.0
  %72 = vst [vmem:[#allocation4 + $0x90] sm:$0xff] 0.0
  %73 = vst [vmem:[#allocation4 + $0x98] sm:$0xff] 0.0
  %74 = vst [vmem:[#allocation4 + $0xa0] sm:$0xff] 0.0
  %75 = vst [vmem:[#allocation4 + $0xa8] sm:$0xff] 0.0
  %76 = vst [vmem:[#allocation4 + $0xb0] sm:$0xff] 0.0
  %77 = vst [vmem:[#allocation4 + $0xb8] sm:$0xff] 0.0
  %78 = vst [vmem:[#allocation4 + $0xc0] sm:$0xff] 0.0
  %79 = vst [vmem:[#allocation4 + $0xc8] sm:$0xff] 0.0
  %80 = vst [vmem:[#allocation4 + $0xd0] sm:$0xff] 0.0
  %81 = vst [vmem:[#allocation4 + $0xd8] sm:$0xff] 0.0
  %82 = vst [vmem:[#allocation4 + $0xe0] sm:$0xff] 0.0
  %83 = vst [vmem:[#allocation4 + $0xe8] sm:$0xff] 0.0
  %84 = vst [vmem:[#allocation4 + $0xf0] sm:$0xff] 0.0
  %85 = vst [vmem:[#allocation4 + $0xf8] sm:$0xff] 0.0
  %86 = vst [vmem:[#allocation4 + $0x100] sm:$0xff] 0.0
  %87 = vst [vmem:[#allocation4 + $0x108] sm:$0xff] 0.0
  %88 = vst [vmem:[#allocation4 + $0x110] sm:$0xff] 0.0
  %89 = vst [vmem:[#allocation4 + $0x118] sm:$0xff] 0.0
  %90 = vst [vmem:[#allocation4 + $0x120] sm:$0xff] 0.0
  %91 = vst [vmem:[#allocation4 + $0x128] sm:$0xff] 0.0
  %92 = vst [vmem:[#allocation4 + $0x130] sm:$0xff] 0.0
  %93 = vst [vmem:[#allocation4 + $0x138] sm:$0xff] 0.0
  %94 = vst [vmem:[#allocation4 + $0x140] sm:$0xff] 0.0
  %95 = vst [vmem:[#allocation4 + $0x148] sm:$0xff] 0.0
  %96 = vst [vmem:[#allocation4 + $0x150] sm:$0xff] 0.0
  %97 = vst [vmem:[#allocation4 + $0x158] sm:$0xff] 0.0
  %98 = vst [vmem:[#allocation4 + $0x160] sm:$0xff] 0.0
  %99 = vst [vmem:[#allocation4 + $0x168] sm:$0xff] 0.0
  %100 = vst [vmem:[#allocation4 + $0x170] sm:$0xff] 0.0
  %101 = vst [vmem:[#allocation4 + $0x178] sm:$0xff] 0.0
  %102 = vst [vmem:[#allocation4 + $0x180] sm:$0xff] 0.0
  %103 = vst [vmem:[#allocation4 + $0x188] sm:$0xff] 0.0
  %104 = vst [vmem:[#allocation4 + $0x190] sm:$0xff] 0.0
  %105 = vst [vmem:[#allocation4 + $0x198] sm:$0xff] 0.0
  %106 = vst [vmem:[#allocation4 + $0x1a0] sm:$0xff] 0.0
  %107 = vst [vmem:[#allocation4 + $0x1a8] sm:$0xff] 0.0
  %108 = vst [vmem:[#allocation4 + $0x1b0] sm:$0xff] 0.0
  %109 = vst [vmem:[#allocation4 + $0x1b8] sm:$0xff] 0.0
  %110 = vst [vmem:[#allocation4 + $0x1c0] sm:$0xff] 0.0
  %111 = vst [vmem:[#allocation4 + $0x1c8] sm:$0xff] 0.0
  %112 = vst [vmem:[#allocation4 + $0x1d0] sm:$0xff] 0.0
  %113 = vst [vmem:[#allocation4 + $0x1d8] sm:$0xff] 0.0
  %114 = vst [vmem:[#allocation4 + $0x1e0] sm:$0xff] 0.0
  %115 = vst [vmem:[#allocation4 + $0x1e8] sm:$0xff] 0.0
  %116 = vst [vmem:[#allocation4 + $0x1f0] sm:$0xff] 0.0
  %117 = vst [vmem:[#allocation4 + $0x1f8] sm:$0xff] 0.0
  %118 = vst [vmem:[#allocation4 + $0x200] sm:$0xff] 0.0
  %119 = vst [vmem:[#allocation4 + $0x208] sm:$0xff] 0.0
  %120 = vst [vmem:[#allocation4 + $0x210] sm:$0xff] 0.0
  %121 = vst [vmem:[#allocation4 + $0x218] sm:$0xff] 0.0
  %122 = vst [vmem:[#allocation4 + $0x220] sm:$0xff] 0.0
  %123 = vst [vmem:[#allocation4 + $0x228] sm:$0xff] 0.0
  %124 = vst [vmem:[#allocation4 + $0x230] sm:$0xff] 0.0
  %125 = vst [vmem:[#allocation4 + $0x238] sm:$0xff] 0.0
  %126 = vst [vmem:[#allocation4 + $0x240] sm:$0xff] 0.0
  %127 = vst [vmem:[#allocation4 + $0x248] sm:$0xff] 0.0
  %128 = vst [vmem:[#allocation4 + $0x250] sm:$0xff] 0.0
  %129 = vst [vmem:[#allocation4 + $0x258] sm:$0xff] 0.0
  %130 = vst [vmem:[#allocation4 + $0x260] sm:$0xff] 0.0
  %131 = vst [vmem:[#allocation4 + $0x268] sm:$0xff] 0.0
  %132 = vst [vmem:[#allocation4 + $0x270] sm:$0xff] 0.0
  %133 = vst [vmem:[#allocation4 + $0x278] sm:$0xff] 0.0
  %134 = vst [vmem:[#allocation4 + $0x280] sm:$0xff] 0.0
  %135 = vst [vmem:[#allocation4 + $0x288] sm:$0xff] 0.0
  %136 = vst [vmem:[#allocation4 + $0x290] sm:$0xff] 0.0
  %137 = vst [vmem:[#allocation4 + $0x298] sm:$0xff] 0.0
  %v138 = vld [vmem:[%s0] sm:$0xff]
  %v139 = vld [vmem:[%s0 + $0x8] sm:$0x1f]
  %vm142 = vcmask 1042432
  %v143 = vrot.slane %v138, 5
  %v144 = vrot.slane %v139, 5
  %v145 = vsel %vm142, %v143, %v144
  %146 = vrot.lane.b32.xlu0 %v143, 12
  %v147 = vpop.permute.xlu0 %146
  %148 = vrot.lane.b32.xlu0 %v145, 12
  %v149 = vpop.permute.xlu0 %148
  %vm152 = vcmask 621667
  %153 = vst.msk [vmem:[#allocation2] sm:$0xf8] %vm152, %v147
  %vm154 = vcmask 621664
  %155 = vst.msk [vmem:[#allocation2 + $0x38] sm:$0xff] %vm154, %v149
  %v156 = vld [vmem:[%s0] sm:$0xff]
  %v157 = vld [vmem:[%s0 + $0x8] sm:$0x3f]
  %vm160 = vcmask 1041408
  %v161 = vrot.slane %v156, 6
  %v162 = vrot.slane %v157, 6
  %v163 = vsel %vm160, %v161, %v162
  %164 = vrot.lane.b32.xlu0 %v161, 12
  %v165 = vpop.permute.xlu0 %164
  %166 = vrot.lane.b32.xlu0 %v163, 12
  %v167 = vpop.permute.xlu0 %166
  %vm170 = vcmask 621666
  %171 = vst.msk [vmem:[#allocation2 + $0x8] sm:$0xfc] %vm170, %v165
  %172 = vst.msk [vmem:[#allocation2 + $0x40] sm:$0xff] %vm154, %v167
  %v173 = vld [vmem:[%s0] sm:$0xff]
  %v174 = vld [vmem:[%s0 + $0x8] sm:$0x7f]
  %vm177 = vcmask 1040384
  %v178 = vrot.slane %v173, 7
  %v179 = vrot.slane %v174, 7
  %v180 = vsel %vm177, %v178, %v179
  %181 = vrot.lane.b32.xlu0 %v178, 12
  %v182 = vpop.permute.xlu0 %181
  %183 = vrot.lane.b32.xlu0 %v180, 12
  %v184 = vpop.permute.xlu0 %183
  %vm187 = vcmask 621665
  %188 = vst.msk [vmem:[#allocation2 + $0x10] sm:$0xfe] %vm187, %v182
  %189 = vst.msk [vmem:[#allocation2 + $0x48] sm:$0xff] %vm154, %v184
  %v190 = vld [vmem:[%s0] sm:$0xff]
  %v191 = vld [vmem:[%s0 + $0x8] sm:$0xff]
  %194 = vrot.lane.b32.xlu0 %v190, 12
  %v195 = vpop.permute.xlu0 %194
  %196 = vrot.lane.b32.xlu0 %v191, 12
  %v197 = vpop.permute.xlu0 %196
  %200 = vst.msk [vmem:[#allocation2 + $0x18] sm:$0xff] %vm154, %v195
  %201 = vst.msk [vmem:[#allocation2 + $0x50] sm:$0xff] %vm154, %v197
  %v202 = vld [vmem:[%s0 + $0x1] sm:$0xff]
  %v203 = vld [vmem:[%s0 + $0x9] sm:$0x7f]
  %206 = vrot.lane.b32.xlu0 %v202, 12
  %v207 = vpop.permute.xlu0 %206
  %208 = vrot.lane.b32.xlu0 %v203, 12
  %v209 = vpop.permute.xlu0 %208
  %212 = vst.msk [vmem:[#allocation2 + $0x20] sm:$0xff] %vm154, %v207
  %vm213 = vcmask 620640
  %214 = vst.msk [vmem:[#allocation2 + $0x58] sm:$0x7f] %vm213, %v209
  %v215 = vld [vmem:[%s0 + $0x2] sm:$0xff]
  %v216 = vld [vmem:[%s0 + $0xa] sm:$0x3f]
  %219 = vrot.lane.b32.xlu0 %v215, 12
  %v220 = vpop.permute.xlu0 %219
  %221 = vrot.lane.b32.xlu0 %v216, 12
  %v222 = vpop.permute.xlu0 %221
  %225 = vst.msk [vmem:[#allocation2 + $0x28] sm:$0xff] %vm154, %v220
  %vm226 = vcmask 619616
  %227 = vst.msk [vmem:[#allocation2 + $0x60] sm:$0x3f] %vm226, %v222
  %v228 = vld [vmem:[%s0 + $0x3] sm:$0xff]
  %v229 = vld [vmem:[%s0 + $0xb] sm:$0x1f]
  %232 = vrot.lane.b32.xlu0 %v228, 12
  %v233 = vpop.permute.xlu0 %232
  %234 = vrot.lane.b32.xlu0 %v229, 12
  %v235 = vpop.permute.xlu0 %234
  %238 = vst.msk [vmem:[#allocation2 + $0x30] sm:$0xff] %vm154, %v233
  %vm239 = vcmask 618592
  %240 = vst.msk [vmem:[#allocation2 + $0x68] sm:$0x1f] %vm239, %v235
  %s241 = scalar_lea.vmem %s0, 16
  %v242 = vld [vmem:[%s241] sm:$0xff]
  %v243 = vld [vmem:[%s241 + $0x8] sm:$0x1f]
  %v246 = vrot.slane %v242, 5
  %v247 = vrot.slane %v243, 5
  %v248 = vsel %vm142, %v246, %v247
  %249 = vrot.lane.b32.xlu0 %v246, 12
  %v250 = vpop.permute.xlu0 %249
  %251 = vrot.lane.b32.xlu0 %v248, 12
  %v252 = vpop.permute.xlu0 %251
  %255 = vst.msk [vmem:[#allocation2 + $0x70] sm:$0xf8] %vm152, %v250
  %256 = vst.msk [vmem:[#allocation2 + $0xa8] sm:$0xff] %vm154, %v252
  %v257 = vld [vmem:[%s241] sm:$0xff]
  %v258 = vld [vmem:[%s241 + $0x8] sm:$0x3f]
  %v261 = vrot.slane %v257, 6
  %v262 = vrot.slane %v258, 6
  %v263 = vsel %vm160, %v261, %v262
  %264 = vrot.lane.b32.xlu0 %v261, 12
  %v265 = vpop.permute.xlu0 %264
  %266 = vrot.lane.b32.xlu0 %v263, 12
  %v267 = vpop.permute.xlu0 %266
  %270 = vst.msk [vmem:[#allocation2 + $0x78] sm:$0xfc] %vm170, %v265
  %271 = vst.msk [vmem:[#allocation2 + $0xb0] sm:$0xff] %vm154, %v267
  %v272 = vld [vmem:[%s241] sm:$0xff]
  %v273 = vld [vmem:[%s241 + $0x8] sm:$0x7f]
  %v276 = vrot.slane %v272, 7
  %v277 = vrot.slane %v273, 7
  %v278 = vsel %vm177, %v276, %v277
  %279 = vrot.lane.b32.xlu0 %v276, 12
  %v280 = vpop.permute.xlu0 %279
  %281 = vrot.lane.b32.xlu0 %v278, 12
  %v282 = vpop.permute.xlu0 %281
  %285 = vst.msk [vmem:[#allocation2 + $0x80] sm:$0xfe] %vm187, %v280
  %286 = vst.msk [vmem:[#allocation2 + $0xb8] sm:$0xff] %vm154, %v282
  %v287 = vld [vmem:[%s241] sm:$0xff]
  %v288 = vld [vmem:[%s241 + $0x8] sm:$0xff]
  %291 = vrot.lane.b32.xlu0 %v287, 12
  %v292 = vpop.permute.xlu0 %291
  %293 = vrot.lane.b32.xlu0 %v288, 12
  %v294 = vpop.permute.xlu0 %293
  %297 = vst.msk [vmem:[#allocation2 + $0x88] sm:$0xff] %vm154, %v292
  %298 = vst.msk [vmem:[#allocation2 + $0xc0] sm:$0xff] %vm154, %v294
  %v299 = vld [vmem:[%s241 + $0x1] sm:$0xff]
  %v300 = vld [vmem:[%s241 + $0x9] sm:$0x7f]
  %303 = vrot.lane.b32.xlu0 %v299, 12
  %v304 = vpop.permute.xlu0 %303
  %305 = vrot.lane.b32.xlu0 %v300, 12
  %v306 = vpop.permute.xlu0 %305
  %309 = vst.msk [vmem:[#allocation2 + $0x90] sm:$0xff] %vm154, %v304
  %310 = vst.msk [vmem:[#allocation2 + $0xc8] sm:$0x7f] %vm213, %v306
  %v311 = vld [vmem:[%s241 + $0x2] sm:$0xff]
  %v312 = vld [vmem:[%s241 + $0xa] sm:$0x3f]
  %315 = vrot.lane.b32.xlu0 %v311, 12
  %v316 = vpop.permute.xlu0 %315
  %317 = vrot.lane.b32.xlu0 %v312, 12
  %v318 = vpop.permute.xlu0 %317
  %321 = vst.msk [vmem:[#allocation2 + $0x98] sm:$0xff] %vm154, %v316
  %322 = vst.msk [vmem:[#allocation2 + $0xd0] sm:$0x3f] %vm226, %v318
  %v323 = vld [vmem:[%s241 + $0x3] sm:$0xff]
  %v324 = vld [vmem:[%s241 + $0xb] sm:$0x1f]
  %327 = vrot.lane.b32.xlu0 %v323, 12
  %v328 = vpop.permute.xlu0 %327
  %329 = vrot.lane.b32.xlu0 %v324, 12
  %v330 = vpop.permute.xlu0 %329
  %333 = vst.msk [vmem:[#allocation2 + $0xa0] sm:$0xff] %vm154, %v328
  %334 = vst.msk [vmem:[#allocation2 + $0xd8] sm:$0x1f] %vm239, %v330
  %v335 = vld [vmem:[#allocation2] sm:$0xff]
  %v336 = vld [vmem:[#allocation2 + $0x8] sm:$0xff]
  %v337 = vld [vmem:[#allocation2 + $0x10] sm:$0xff]
  %v338 = vld [vmem:[#allocation2 + $0x18] sm:$0xff]
  %v339 = vld [vmem:[#allocation2 + $0x20] sm:$0xff]
  %v340 = vld [vmem:[#allocation2 + $0x28] sm:$0xff]
  %v341 = vld [vmem:[#allocation2 + $0x30] sm:$0xff]
  %v342 = vld [vmem:[#allocation2 + $0x38] sm:$0xff]
  %v343 = vld [vmem:[#allocation2 + $0x40] sm:$0xff]
  %v344 = vld [vmem:[#allocation2 + $0x48] sm:$0xff]
  %v345 = vld [vmem:[#allocation2 + $0x50] sm:$0xff]
  %v346 = vld [vmem:[#allocation2 + $0x58] sm:$0xff]
  %v347 = vld [vmem:[#allocation2 + $0x60] sm:$0xff]
  %v348 = vld [vmem:[#allocation2 + $0x68] sm:$0xff]
  %v349 = vld [vmem:[#allocation2 + $0x70] sm:$0xff]
  %v350 = vld [vmem:[#allocation2 + $0x78] sm:$0xff]
  %v351 = vld [vmem:[#allocation2 + $0x80] sm:$0xff]
  %v352 = vld [vmem:[#allocation2 + $0x88] sm:$0xff]
  %v353 = vld [vmem:[#allocation2 + $0x90] sm:$0xff]
  %v354 = vld [vmem:[#allocation2 + $0x98] sm:$0xff]
  %v355 = vld [vmem:[#allocation2 + $0xa0] sm:$0xff]
  %v356 = vld [vmem:[#allocation2 + $0xa8] sm:$0xff]
  %v357 = vld [vmem:[#allocation2 + $0xb0] sm:$0xff]
  %v358 = vld [vmem:[#allocation2 + $0xb8] sm:$0xff]
  %v359 = vld [vmem:[#allocation2 + $0xc0] sm:$0xff]
  %v360 = vld [vmem:[#allocation2 + $0xc8] sm:$0xff]
  %v361 = vld [vmem:[#allocation2 + $0xd0] sm:$0xff]
  %v362 = vld [vmem:[#allocation2 + $0xd8] sm:$0xff]
  %v363 = vld [vmem:[%s1] sm:$0xff]
  %v364 = vld [vmem:[%s1 + $0x8] sm:$0xff]
  %v365 = vld [vmem:[%s1 + $0x10] sm:$0xff]
  %v366 = vld [vmem:[%s1 + $0x18] sm:$0xff]
  %v367 = vld [vmem:[%s1 + $0x20] sm:$0xff]
  %v368 = vld [vmem:[%s1 + $0x28] sm:$0xff]
  %v369 = vld [vmem:[%s1 + $0x30] sm:$0xff]
  %v370 = vld [vmem:[%s1 + $0x38] sm:$0xff]
  %v371 = vld [vmem:[%s1 + $0x40] sm:$0xff]
  %v372 = vld [vmem:[%s1 + $0x48] sm:$0xff]
  %v373 = vld [vmem:[%s1 + $0x50] sm:$0xff]
  %v374 = vld [vmem:[%s1 + $0x58] sm:$0xff]
  %v375 = vld [vmem:[%s1 + $0x60] sm:$0xff]
  %v376 = vld [vmem:[%s1 + $0x68] sm:$0xff]
  %v377 = vld [vmem:[%s1 + $0x70] sm:$0xff]
  %v378 = vld [vmem:[%s1 + $0x78] sm:$0xff]
  %v379 = vld [vmem:[%s1 + $0x80] sm:$0xff]
  %v380 = vld [vmem:[%s1 + $0x88] sm:$0xff]
  %v381 = vld [vmem:[%s1 + $0x90] sm:$0xff]
  %v382 = vld [vmem:[%s1 + $0x98] sm:$0xff]
  %v383 = vld [vmem:[%s1 + $0xa0] sm:$0xff]
  %v384 = vld [vmem:[%s1 + $0xa8] sm:$0xff]
  %v385 = vld [vmem:[%s1 + $0xb0] sm:$0xff]
  %v386 = vld [vmem:[%s1 + $0xb8] sm:$0xff]
  %v387 = vld [vmem:[%s1 + $0xc0] sm:$0xff]
  %v388 = vld [vmem:[%s1 + $0xc8] sm:$0xff]
  %v389 = vld [vmem:[%s1 + $0xd0] sm:$0xff]
  %v390 = vld [vmem:[%s1 + $0xd8] sm:$0xff]
  %v391 = vld [vmem:[%s1 + $0xe0] sm:$0xff]
  %v392 = vld [vmem:[%s1 + $0xe8] sm:$0xff]
  %v393 = vld [vmem:[%s1 + $0xf0] sm:$0xff]
  %v394 = vld [vmem:[%s1 + $0xf8] sm:$0xff]
  %v395 = vld [vmem:[%s1 + $0x100] sm:$0xff]
  %v396 = vld [vmem:[%s1 + $0x108] sm:$0xff]
  %v397 = vld [vmem:[%s1 + $0x110] sm:$0xff]
  %v398 = vld [vmem:[%s1 + $0x118] sm:$0xff]
  %v399 = vld [vmem:[%s1 + $0x120] sm:$0xff]
  %v400 = vld [vmem:[%s1 + $0x128] sm:$0xff]
  %v401 = vld [vmem:[%s1 + $0x130] sm:$0xff]
  %v402 = vld [vmem:[%s1 + $0x138] sm:$0xff]
  %v403 = vld [vmem:[%s1 + $0x140] sm:$0xff]
  %v404 = vld [vmem:[%s1 + $0x148] sm:$0xff]
  %v405 = vld [vmem:[%s1 + $0x150] sm:$0xff]
  %v406 = vld [vmem:[%s1 + $0x158] sm:$0xff]
  %v407 = vld [vmem:[%s1 + $0x160] sm:$0xff]
  %v408 = vld [vmem:[%s1 + $0x168] sm:$0xff]
  %v409 = vld [vmem:[%s1 + $0x170] sm:$0xff]
  %v410 = vld [vmem:[%s1 + $0x178] sm:$0xff]
  %v411 = vld [vmem:[%s1 + $0x180] sm:$0xff]
  %v412 = vld [vmem:[%s1 + $0x188] sm:$0xff]
  %v413 = vld [vmem:[%s1 + $0x190] sm:$0xff]
  %v414 = vld [vmem:[%s1 + $0x198] sm:$0xff]
  %v415 = vld [vmem:[%s1 + $0x1a0] sm:$0xff]
  %v416 = vld [vmem:[%s1 + $0x1a8] sm:$0xff]
  %v417 = vld [vmem:[%s1 + $0x1b0] sm:$0xff]
  %v418 = vld [vmem:[%s1 + $0x1b8] sm:$0xff]
  %v419 = vld [vmem:[%s1 + $0x1c0] sm:$0xff]
  %v420 = vld [vmem:[%s1 + $0x1c8] sm:$0xff]
  %v421 = vld [vmem:[%s1 + $0x1d0] sm:$0xff]
  %v422 = vld [vmem:[%s1 + $0x1d8] sm:$0xff]
  %v423 = vld [vmem:[%s1 + $0x1e0] sm:$0xff]
  %v424 = vld [vmem:[%s1 + $0x1e8] sm:$0xff]
  %v425 = vld [vmem:[%s1 + $0x1f0] sm:$0xff]
  %v426 = vld [vmem:[%s1 + $0x1f8] sm:$0xff]
  %v427 = vld [vmem:[%s1 + $0x200] sm:$0xff]
  %v428 = vld [vmem:[%s1 + $0x208] sm:$0xff]
  %v429 = vld [vmem:[%s1 + $0x210] sm:$0xff]
  %v430 = vld [vmem:[%s1 + $0x218] sm:$0xff]
  %v431 = vld [vmem:[%s1 + $0x220] sm:$0xff]
  %v432 = vld [vmem:[%s1 + $0x228] sm:$0xff]
  %v433 = vld [vmem:[%s1 + $0x230] sm:$0xff]
  %v434 = vld [vmem:[%s1 + $0x238] sm:$0xff]
  %v435 = vld [vmem:[%s1 + $0x240] sm:$0xff]
  %v436 = vld [vmem:[%s1 + $0x248] sm:$0xff]
  %v437 = vld [vmem:[%s1 + $0x250] sm:$0xff]
  %v438 = vld [vmem:[%s1 + $0x258] sm:$0xff]
  %v439 = vld [vmem:[%s1 + $0x260] sm:$0xff]
  %v440 = vld [vmem:[%s1 + $0x268] sm:$0xff]
  %v441 = vld [vmem:[%s1 + $0x270] sm:$0xff]
  %v442 = vld [vmem:[%s1 + $0x278] sm:$0xff]
  %v443 = vld [vmem:[%s1 + $0x280] sm:$0xff]
  %v444 = vld [vmem:[%s1 + $0x288] sm:$0xff]
  %v445 = vld [vmem:[%s1 + $0x290] sm:$0xff]
  %v446 = vld [vmem:[%s1 + $0x298] sm:$0xff]
  %v447 = vld [vmem:[%s1 + $0x2a0] sm:$0xff]
  %v448 = vld [vmem:[%s1 + $0x2a8] sm:$0xff]
  %v449 = vld [vmem:[%s1 + $0x2b0] sm:$0xff]
  %v450 = vld [vmem:[%s1 + $0x2b8] sm:$0xff]
  %v451 = vld [vmem:[%s1 + $0x2c0] sm:$0xff]
  %v452 = vld [vmem:[%s1 + $0x2c8] sm:$0xff]
  %v453 = vld [vmem:[%s1 + $0x2d0] sm:$0xff]
  %v454 = vld [vmem:[%s1 + $0x2d8] sm:$0xff]
  %v455 = vld [vmem:[%s1 + $0x2e0] sm:$0xff]
  %v456 = vld [vmem:[%s1 + $0x2e8] sm:$0xff]
  %v457 = vld [vmem:[%s1 + $0x2f0] sm:$0xff]
  %v458 = vld [vmem:[%s1 + $0x2f8] sm:$0xff]
  %v459 = vld [vmem:[%s1 + $0x300] sm:$0xff]
  %v460 = vld [vmem:[%s1 + $0x308] sm:$0xff]
  %v461 = vld [vmem:[%s1 + $0x310] sm:$0xff]
  %v462 = vld [vmem:[%s1 + $0x318] sm:$0xff]
  %v463 = vld [vmem:[%s1 + $0x320] sm:$0xff]
  %v464 = vld [vmem:[%s1 + $0x328] sm:$0xff]
  %v465 = vld [vmem:[%s1 + $0x330] sm:$0xff]
  %v466 = vld [vmem:[%s1 + $0x338] sm:$0xff]
  %v467 = vld [vmem:[%s1 + $0x340] sm:$0xff]
  %v468 = vld [vmem:[%s1 + $0x348] sm:$0xff]
  %v469 = vld [vmem:[%s1 + $0x350] sm:$0xff]
  %v470 = vld [vmem:[%s1 + $0x358] sm:$0xff]
  %v471 = vld [vmem:[%s1 + $0x360] sm:$0xff]
  %v472 = vld [vmem:[%s1 + $0x368] sm:$0xff]
  %v473 = vld [vmem:[%s1 + $0x370] sm:$0xff]
  %v474 = vld [vmem:[%s1 + $0x378] sm:$0xff]
  %v475 = vld [vmem:[%s1 + $0x380] sm:$0xff]
  %v476 = vld [vmem:[%s1 + $0x388] sm:$0xff]
  %v477 = vld [vmem:[%s1 + $0x390] sm:$0xff]
  %v478 = vld [vmem:[%s1 + $0x398] sm:$0xff]
  %v479 = vld [vmem:[%s1 + $0x3a0] sm:$0xff]
  %v480 = vld [vmem:[%s1 + $0x3a8] sm:$0xff]
  %v481 = vld [vmem:[%s1 + $0x3b0] sm:$0xff]
  %v482 = vld [vmem:[%s1 + $0x3b8] sm:$0xff]
  %v483 = vld [vmem:[%s1 + $0x3c0] sm:$0xff]
  %v484 = vld [vmem:[%s1 + $0x3c8] sm:$0xff]
  %v485 = vld [vmem:[%s1 + $0x3d0] sm:$0xff]
  %v486 = vld [vmem:[%s1 + $0x3d8] sm:$0xff]
  %v487 = vld [vmem:[%s1 + $0x3e0] sm:$0xff]
  %v488 = vld [vmem:[%s1 + $0x3e8] sm:$0xff]
  %v489 = vld [vmem:[%s1 + $0x3f0] sm:$0xff]
  %v490 = vld [vmem:[%s1 + $0x3f8] sm:$0xff]
  %v491 = vld [vmem:[%s1 + $0x400] sm:$0xff]
  %v492 = vld [vmem:[%s1 + $0x408] sm:$0xff]
  %v493 = vld [vmem:[%s1 + $0x410] sm:$0xff]
  %v494 = vld [vmem:[%s1 + $0x418] sm:$0xff]
  %v495 = vld [vmem:[%s1 + $0x420] sm:$0xff]
  %v496 = vld [vmem:[%s1 + $0x428] sm:$0xff]
  %v497 = vld [vmem:[%s1 + $0x430] sm:$0xff]
  %v498 = vld [vmem:[%s1 + $0x438] sm:$0xff]
  %v499 = vld [vmem:[%s1 + $0x440] sm:$0xff]
  %v500 = vld [vmem:[%s1 + $0x448] sm:$0xff]
  %v501 = vld [vmem:[%s1 + $0x450] sm:$0xff]
  %v502 = vld [vmem:[%s1 + $0x458] sm:$0xff]
  %v503 = vld [vmem:[%s1 + $0x460] sm:$0xff]
  %v504 = vld [vmem:[%s1 + $0x468] sm:$0xff]
  %v505 = vld [vmem:[%s1 + $0x470] sm:$0xff]
  %v506 = vld [vmem:[%s1 + $0x478] sm:$0xff]
  %v507 = vld [vmem:[%s1 + $0x480] sm:$0xff]
  %v508 = vld [vmem:[%s1 + $0x488] sm:$0xff]
  %v509 = vld [vmem:[%s1 + $0x490] sm:$0xff]
  %v510 = vld [vmem:[%s1 + $0x498] sm:$0xff]
  %v511 = vld [vmem:[%s1 + $0x4a0] sm:$0xff]
  %v512 = vld [vmem:[%s1 + $0x4a8] sm:$0xff]
  %v513 = vld [vmem:[%s1 + $0x4b0] sm:$0xff]
  %v514 = vld [vmem:[%s1 + $0x4b8] sm:$0xff]
  %v515 = vld [vmem:[%s1 + $0x4c0] sm:$0xff]
  %v516 = vld [vmem:[%s1 + $0x4c8] sm:$0xff]
  %v517 = vld [vmem:[%s1 + $0x4d0] sm:$0xff]
  %v518 = vld [vmem:[%s1 + $0x4d8] sm:$0xff]
  %v519 = vld [vmem:[%s1 + $0x4e0] sm:$0xff]
  %v520 = vld [vmem:[%s1 + $0x4e8] sm:$0xff]
  %v521 = vld [vmem:[%s1 + $0x4f0] sm:$0xff]
  %v522 = vld [vmem:[%s1 + $0x4f8] sm:$0xff]
  %v523 = vld [vmem:[%s1 + $0x500] sm:$0xff]
  %v524 = vld [vmem:[%s1 + $0x508] sm:$0xff]
  %v525 = vld [vmem:[%s1 + $0x510] sm:$0xff]
  %v526 = vld [vmem:[%s1 + $0x518] sm:$0xff]
  %v527 = vld [vmem:[%s1 + $0x520] sm:$0xff]
  %v528 = vld [vmem:[%s1 + $0x528] sm:$0xff]
  %v529 = vld [vmem:[%s1 + $0x530] sm:$0xff]
  %v530 = vld [vmem:[%s1 + $0x538] sm:$0xff]
  %v531 = vld [vmem:[%s1 + $0x540] sm:$0xff]
  %v532 = vld [vmem:[%s1 + $0x548] sm:$0xff]
  %v533 = vld [vmem:[%s1 + $0x550] sm:$0xff]
  %v534 = vld [vmem:[%s1 + $0x558] sm:$0xff]
  %v535 = vld [vmem:[%s1 + $0x560] sm:$0xff]
  %v536 = vld [vmem:[%s1 + $0x568] sm:$0xff]
  %v537 = vld [vmem:[%s1 + $0x570] sm:$0xff]
  %v538 = vld [vmem:[%s1 + $0x578] sm:$0xff]
  %v539 = vld [vmem:[%s1 + $0x580] sm:$0xff]
  %v540 = vld [vmem:[%s1 + $0x588] sm:$0xff]
  %v541 = vld [vmem:[%s1 + $0x590] sm:$0xff]
  %v542 = vld [vmem:[%s1 + $0x598] sm:$0xff]
  %v543 = vld [vmem:[%s1 + $0x5a0] sm:$0xff]
  %v544 = vld [vmem:[%s1 + $0x5a8] sm:$0xff]
  %v545 = vld [vmem:[%s1 + $0x5b0] sm:$0xff]
  %v546 = vld [vmem:[%s1 + $0x5b8] sm:$0xff]
  %v547 = vld [vmem:[%s1 + $0x5c0] sm:$0xff]
  %v548 = vld [vmem:[%s1 + $0x5c8] sm:$0xff]
  %v549 = vld [vmem:[%s1 + $0x5d0] sm:$0xff]
  %v550 = vld [vmem:[%s1 + $0x5d8] sm:$0xff]
  %v551 = vld [vmem:[%s1 + $0x5e0] sm:$0xff]
  %v552 = vld [vmem:[%s1 + $0x5e8] sm:$0xff]
  %v553 = vld [vmem:[%s1 + $0x5f0] sm:$0xff]
  %v554 = vld [vmem:[%s1 + $0x5f8] sm:$0xff]
  %v555 = vld [vmem:[%s1 + $0x600] sm:$0xff]
  %v556 = vld [vmem:[%s1 + $0x608] sm:$0xff]
  %v557 = vld [vmem:[%s1 + $0x610] sm:$0xff]
  %v558 = vld [vmem:[%s1 + $0x618] sm:$0xff]
  %v559 = vld [vmem:[%s1 + $0x620] sm:$0xff]
  %v560 = vld [vmem:[%s1 + $0x628] sm:$0xff]
  %v561 = vld [vmem:[%s1 + $0x630] sm:$0xff]
  %v562 = vld [vmem:[%s1 + $0x638] sm:$0xff]
  %v563 = vld [vmem:[%s1 + $0x640] sm:$0xff]
  %v564 = vld [vmem:[%s1 + $0x648] sm:$0xff]
  %v565 = vld [vmem:[%s1 + $0x650] sm:$0xff]
  %v566 = vld [vmem:[%s1 + $0x658] sm:$0xff]
  %v567 = vld [vmem:[%s1 + $0x660] sm:$0xff]
  %v568 = vld [vmem:[%s1 + $0x668] sm:$0xff]
  %v569 = vld [vmem:[%s1 + $0x670] sm:$0xff]
  %v570 = vld [vmem:[%s1 + $0x678] sm:$0xff]
  %v571 = vld [vmem:[%s1 + $0x680] sm:$0xff]
  %v572 = vld [vmem:[%s1 + $0x688] sm:$0xff]
  %v573 = vld [vmem:[%s1 + $0x690] sm:$0xff]
  %v574 = vld [vmem:[%s1 + $0x698] sm:$0xff]
  %v575 = vld [vmem:[%s1 + $0x6a0] sm:$0xff]
  %v576 = vld [vmem:[%s1 + $0x6a8] sm:$0xff]
  %v577 = vld [vmem:[%s1 + $0x6b0] sm:$0xff]
  %v578 = vld [vmem:[%s1 + $0x6b8] sm:$0xff]
  %v579 = vld [vmem:[%s1 + $0x6c0] sm:$0xff]
  %v580 = vld [vmem:[%s1 + $0x6c8] sm:$0xff]
  %v581 = vld [vmem:[%s1 + $0x6d0] sm:$0xff]
  %v582 = vld [vmem:[%s1 + $0x6d8] sm:$0xff]
  %v583 = vld [vmem:[%s1 + $0x6e0] sm:$0xff]
  %v584 = vld [vmem:[%s1 + $0x6e8] sm:$0xff]
  %v585 = vld [vmem:[%s1 + $0x6f0] sm:$0xff]
  %v586 = vld [vmem:[%s1 + $0x6f8] sm:$0xff]
  %v587 = vld [vmem:[%s2] sm:$0x3]
  %v589 = vperm.slane %v587, 0
  %v590 = vperm.slane %v587, 1
  %593 = vmatpush.msra.mxu0 %v393
  %594 = vmatpush.msra.mxu0 %v391
  %595 = vmatpush.msra.mxu0 %v389
  %596 = vmatpush.msra.mxu0 %v387
  %597 = vmatpush.msra.mxu0 %v385
  %598 = vmatpush.msra.mxu0 %v383
  %599 = vmatpush.msra.mxu0 %v381
  %600 = vmatpush.msra.mxu0 %v379
  %601 = vmatpush.msra.mxu0 %v377
  %602 = vmatpush.msra.mxu0 %v375
  %603 = vmatpush.msra.mxu0 %v373
  %604 = vmatpush.msra.mxu0 %v371
  %605 = vmatpush.msra.mxu0 %v369
  %606 = vmatpush.msra.mxu0 %v367
  %607 = vmatpush.msra.mxu0 %v365
  %608 = vmatpush.msra.mxu0 %v363
  %609 = vmatmul.f32.gmra.mxu0 %v335
  %v610 = vpop.f32.mrf.mxu0
  %v611 = vadd.f32 %v589, %v610
  %612 = vmatmul.f32.gmra.mxu0 %v342
  %v613 = vpop.f32.mrf.mxu0
  %v614 = vadd.f32 %v589, %v613
  %615 = vmatmul.f32.gmra.mxu0 %v349
  %v616 = vpop.f32.mrf.mxu0
  %v617 = vadd.f32 %v589, %v616
  %618 = vmatmul.f32.gmra.mxu0 %v356
  %v619 = vpop.f32.mrf.mxu0
  %v620 = vadd.f32 %v589, %v619
  %621 = vdwg.mxu0
  %622 = vmatpush.msra.mxu0 %v425
  %623 = vmatpush.msra.mxu0 %v423
  %624 = vmatpush.msra.mxu0 %v421
  %625 = vmatpush.msra.mxu0 %v419
  %626 = vmatpush.msra.mxu0 %v417
  %627 = vmatpush.msra.mxu0 %v415
  %628 = vmatpush.msra.mxu0 %v413
  %629 = vmatpush.msra.mxu0 %v411
  %630 = vmatpush.msra.mxu0 %v409
  %631 = vmatpush.msra.mxu0 %v407
  %632 = vmatpush.msra.mxu0 %v405
  %633 = vmatpush.msra.mxu0 %v403
  %634 = vmatpush.msra.mxu0 %v401
  %635 = vmatpush.msra.mxu0 %v399
  %636 = vmatpush.msra.mxu0 %v397
  %637 = vmatpush.msra.mxu0 %v395
  %638 = vmatmul.f32.gmra.mxu0 %v336
  %v639 = vpop.f32.mrf.mxu0
  %v640 = vadd.f32 %v611, %v639
  %641 = vmatmul.f32.gmra.mxu0 %v343
  %v642 = vpop.f32.mrf.mxu0
  %v643 = vadd.f32 %v614, %v642
  %644 = vmatmul.f32.gmra.mxu0 %v350
  %v645 = vpop.f32.mrf.mxu0
  %v646 = vadd.f32 %v617, %v645
  %647 = vmatmul.f32.gmra.mxu0 %v357
  %v648 = vpop.f32.mrf.mxu0
  %v649 = vadd.f32 %v620, %v648
  %650 = vdwg.mxu0
  %651 = vmatpush.msra.mxu0 %v457
  %652 = vmatpush.msra.mxu0 %v455
  %653 = vmatpush.msra.mxu0 %v453
  %654 = vmatpush.msra.mxu0 %v451
  %655 = vmatpush.msra.mxu0 %v449
  %656 = vmatpush.msra.mxu0 %v447
  %657 = vmatpush.msra.mxu0 %v445
  %658 = vmatpush.msra.mxu0 %v443
  %659 = vmatpush.msra.mxu0 %v441
  %660 = vmatpush.msra.mxu0 %v439
  %661 = vmatpush.msra.mxu0 %v437
  %662 = vmatpush.msra.mxu0 %v435
  %663 = vmatpush.msra.mxu0 %v433
  %664 = vmatpush.msra.mxu0 %v431
  %665 = vmatpush.msra.mxu0 %v429
  %666 = vmatpush.msra.mxu0 %v427
  %667 = vmatmul.f32.gmra.mxu0 %v337
  %v668 = vpop.f32.mrf.mxu0
  %v669 = vadd.f32 %v640, %v668
  %670 = vmatmul.f32.gmra.mxu0 %v344
  %v671 = vpop.f32.mrf.mxu0
  %v672 = vadd.f32 %v643, %v671
  %673 = vmatmul.f32.gmra.mxu0 %v351
  %v674 = vpop.f32.mrf.mxu0
  %v675 = vadd.f32 %v646, %v674
  %676 = vmatmul.f32.gmra.mxu0 %v358
  %v677 = vpop.f32.mrf.mxu0
  %v678 = vadd.f32 %v649, %v677
  %679 = vdwg.mxu0
  %680 = vmatpush.msra.mxu0 %v489
  %681 = vmatpush.msra.mxu0 %v487
  %682 = vmatpush.msra.mxu0 %v485
  %683 = vmatpush.msra.mxu0 %v483
  %684 = vmatpush.msra.mxu0 %v481
  %685 = vmatpush.msra.mxu0 %v479
  %686 = vmatpush.msra.mxu0 %v477
  %687 = vmatpush.msra.mxu0 %v475
  %688 = vmatpush.msra.mxu0 %v473
  %689 = vmatpush.msra.mxu0 %v471
  %690 = vmatpush.msra.mxu0 %v469
  %691 = vmatpush.msra.mxu0 %v467
  %692 = vmatpush.msra.mxu0 %v465
  %693 = vmatpush.msra.mxu0 %v463
  %694 = vmatpush.msra.mxu0 %v461
  %695 = vmatpush.msra.mxu0 %v459
  %696 = vmatmul.f32.gmra.mxu0 %v338
  %v697 = vpop.f32.mrf.mxu0
  %v698 = vadd.f32 %v669, %v697
  %699 = vmatmul.f32.gmra.mxu0 %v345
  %v700 = vpop.f32.mrf.mxu0
  %v701 = vadd.f32 %v672, %v700
  %702 = vmatmul.f32.gmra.mxu0 %v352
  %v703 = vpop.f32.mrf.mxu0
  %v704 = vadd.f32 %v675, %v703
  %705 = vmatmul.f32.gmra.mxu0 %v359
  %v706 = vpop.f32.mrf.mxu0
  %v707 = vadd.f32 %v678, %v706
  %708 = vdwg.mxu0
  %709 = vmatpush.msra.mxu0 %v521
  %710 = vmatpush.msra.mxu0 %v519
  %711 = vmatpush.msra.mxu0 %v517
  %712 = vmatpush.msra.mxu0 %v515
  %713 = vmatpush.msra.mxu0 %v513
  %714 = vmatpush.msra.mxu0 %v511
  %715 = vmatpush.msra.mxu0 %v509
  %716 = vmatpush.msra.mxu0 %v507
  %717 = vmatpush.msra.mxu0 %v505
  %718 = vmatpush.msra.mxu0 %v503
  %719 = vmatpush.msra.mxu0 %v501
  %720 = vmatpush.msra.mxu0 %v499
  %721 = vmatpush.msra.mxu0 %v497
  %722 = vmatpush.msra.mxu0 %v495
  %723 = vmatpush.msra.mxu0 %v493
  %724 = vmatpush.msra.mxu0 %v491
  %725 = vmatmul.f32.gmra.mxu0 %v339
  %v726 = vpop.f32.mrf.mxu0
  %v727 = vadd.f32 %v698, %v726
  %728 = vmatmul.f32.gmra.mxu0 %v346
  %v729 = vpop.f32.mrf.mxu0
  %v730 = vadd.f32 %v701, %v729
  %731 = vmatmul.f32.gmra.mxu0 %v353
  %v732 = vpop.f32.mrf.mxu0
  %v733 = vadd.f32 %v704, %v732
  %734 = vmatmul.f32.gmra.mxu0 %v360
  %v735 = vpop.f32.mrf.mxu0
  %v736 = vadd.f32 %v707, %v735
  %737 = vdwg.mxu0
  %738 = vmatpush.msra.mxu0 %v553
  %739 = vmatpush.msra.mxu0 %v551
  %740 = vmatpush.msra.mxu0 %v549
  %741 = vmatpush.msra.mxu0 %v547
  %742 = vmatpush.msra.mxu0 %v545
  %743 = vmatpush.msra.mxu0 %v543
  %744 = vmatpush.msra.mxu0 %v541
  %745 = vmatpush.msra.mxu0 %v539
  %746 = vmatpush.msra.mxu0 %v537
  %747 = vmatpush.msra.mxu0 %v535
  %748 = vmatpush.msra.mxu0 %v533
  %749 = vmatpush.msra.mxu0 %v531
  %750 = vmatpush.msra.mxu0 %v529
  %751 = vmatpush.msra.mxu0 %v527
  %752 = vmatpush.msra.mxu0 %v525
  %753 = vmatpush.msra.mxu0 %v523
  %754 = vmatmul.f32.gmra.mxu0 %v340
  %v755 = vpop.f32.mrf.mxu0
  %v756 = vadd.f32 %v727, %v755
  %757 = vmatmul.f32.gmra.mxu0 %v347
  %v758 = vpop.f32.mrf.mxu0
  %v759 = vadd.f32 %v730, %v758
  %760 = vmatmul.f32.gmra.mxu0 %v354
  %v761 = vpop.f32.mrf.mxu0
  %v762 = vadd.f32 %v733, %v761
  %763 = vmatmul.f32.gmra.mxu0 %v361
  %v764 = vpop.f32.mrf.mxu0
  %v765 = vadd.f32 %v736, %v764
  %766 = vdwg.mxu0
  %767 = vmatpush.msra.mxu0 %v585
  %768 = vmatpush.msra.mxu0 %v583
  %769 = vmatpush.msra.mxu0 %v581
  %770 = vmatpush.msra.mxu0 %v579
  %771 = vmatpush.msra.mxu0 %v577
  %772 = vmatpush.msra.mxu0 %v575
  %773 = vmatpush.msra.mxu0 %v573
  %774 = vmatpush.msra.mxu0 %v571
  %775 = vmatpush.msra.mxu0 %v569
  %776 = vmatpush.msra.mxu0 %v567
  %777 = vmatpush.msra.mxu0 %v565
  %778 = vmatpush.msra.mxu0 %v563
  %779 = vmatpush.msra.mxu0 %v561
  %780 = vmatpush.msra.mxu0 %v559
  %781 = vmatpush.msra.mxu0 %v557
  %782 = vmatpush.msra.mxu0 %v555
  %783 = vmatmul.f32.gmra.mxu0 %v341
  %v784 = vpop.f32.mrf.mxu0
  %v785 = vadd.f32 %v756, %v784
  %786 = vmatmul.f32.gmra.mxu0 %v348
  %v787 = vpop.f32.mrf.mxu0
  %v788 = vadd.f32 %v759, %v787
  %789 = vmatmul.f32.gmra.mxu0 %v355
  %v790 = vpop.f32.mrf.mxu0
  %v791 = vadd.f32 %v762, %v790
  %792 = vmatmul.f32.gmra.mxu0 %v362
  %v793 = vpop.f32.mrf.mxu0
  %v794 = vadd.f32 %v765, %v793
  %795 = vdwg.mxu0
  %796 = vmatpush.msra.mxu0 %v394
  %797 = vmatpush.msra.mxu0 %v392
  %798 = vmatpush.msra.mxu0 %v390
  %799 = vmatpush.msra.mxu0 %v388
  %800 = vmatpush.msra.mxu0 %v386
  %801 = vmatpush.msra.mxu0 %v384
  %802 = vmatpush.msra.mxu0 %v382
  %803 = vmatpush.msra.mxu0 %v380
  %804 = vmatpush.msra.mxu0 %v378
  %805 = vmatpush.msra.mxu0 %v376
  %806 = vmatpush.msra.mxu0 %v374
  %807 = vmatpush.msra.mxu0 %v372
  %808 = vmatpush.msra.mxu0 %v370
  %809 = vmatpush.msra.mxu0 %v368
  %810 = vmatpush.msra.mxu0 %v366
  %811 = vmatpush.msra.mxu0 %v364
  %812 = vmatmul.f32.gmra.mxu0 %v335
  %v813 = vpop.f32.mrf.mxu0
  %v814 = vadd.f32 %v590, %v813
  %815 = vmatmul.f32.gmra.mxu0 %v342
  %v816 = vpop.f32.mrf.mxu0
  %v817 = vadd.f32 %v590, %v816
  %818 = vmatmul.f32.gmra.mxu0 %v349
  %v819 = vpop.f32.mrf.mxu0
  %v820 = vadd.f32 %v590, %v819
  %821 = vmatmul.f32.gmra.mxu0 %v356
  %v822 = vpop.f32.mrf.mxu0
  %v823 = vadd.f32 %v590, %v822
  %824 = vdwg.mxu0
  %825 = vmatpush.msra.mxu0 %v426
  %826 = vmatpush.msra.mxu0 %v424
  %827 = vmatpush.msra.mxu0 %v422
  %828 = vmatpush.msra.mxu0 %v420
  %829 = vmatpush.msra.mxu0 %v418
  %830 = vmatpush.msra.mxu0 %v416
  %831 = vmatpush.msra.mxu0 %v414
  %832 = vmatpush.msra.mxu0 %v412
  %833 = vmatpush.msra.mxu0 %v410
  %834 = vmatpush.msra.mxu0 %v408
  %835 = vmatpush.msra.mxu0 %v406
  %836 = vmatpush.msra.mxu0 %v404
  %837 = vmatpush.msra.mxu0 %v402
  %838 = vmatpush.msra.mxu0 %v400
  %839 = vmatpush.msra.mxu0 %v398
  %840 = vmatpush.msra.mxu0 %v396
  %841 = vmatmul.f32.gmra.mxu0 %v336
  %v842 = vpop.f32.mrf.mxu0
  %v843 = vadd.f32 %v814, %v842
  %844 = vmatmul.f32.gmra.mxu0 %v343
  %v845 = vpop.f32.mrf.mxu0
  %v846 = vadd.f32 %v817, %v845
  %847 = vmatmul.f32.gmra.mxu0 %v350
  %v848 = vpop.f32.mrf.mxu0
  %v849 = vadd.f32 %v820, %v848
  %850 = vmatmul.f32.gmra.mxu0 %v357
  %v851 = vpop.f32.mrf.mxu0
  %v852 = vadd.f32 %v823, %v851
  %853 = vdwg.mxu0
  %854 = vmatpush.msra.mxu0 %v458
  %855 = vmatpush.msra.mxu0 %v456
  %856 = vmatpush.msra.mxu0 %v454
  %857 = vmatpush.msra.mxu0 %v452
  %858 = vmatpush.msra.mxu0 %v450
  %859 = vmatpush.msra.mxu0 %v448
  %860 = vmatpush.msra.mxu0 %v446
  %861 = vmatpush.msra.mxu0 %v444
  %862 = vmatpush.msra.mxu0 %v442
  %863 = vmatpush.msra.mxu0 %v440
  %864 = vmatpush.msra.mxu0 %v438
  %865 = vmatpush.msra.mxu0 %v436
  %866 = vmatpush.msra.mxu0 %v434
  %867 = vmatpush.msra.mxu0 %v432
  %868 = vmatpush.msra.mxu0 %v430
  %869 = vmatpush.msra.mxu0 %v428
  %870 = vmatmul.f32.gmra.mxu0 %v337
  %v871 = vpop.f32.mrf.mxu0
  %v872 = vadd.f32 %v843, %v871
  %873 = vmatmul.f32.gmra.mxu0 %v344
  %v874 = vpop.f32.mrf.mxu0
  %v875 = vadd.f32 %v846, %v874
  %876 = vmatmul.f32.gmra.mxu0 %v351
  %v877 = vpop.f32.mrf.mxu0
  %v878 = vadd.f32 %v849, %v877
  %879 = vmatmul.f32.gmra.mxu0 %v358
  %v880 = vpop.f32.mrf.mxu0
  %v881 = vadd.f32 %v852, %v880
  %882 = vdwg.mxu0
  %883 = vmatpush.msra.mxu0 %v490
  %884 = vmatpush.msra.mxu0 %v488
  %885 = vmatpush.msra.mxu0 %v486
  %886 = vmatpush.msra.mxu0 %v484
  %887 = vmatpush.msra.mxu0 %v482
  %888 = vmatpush.msra.mxu0 %v480
  %889 = vmatpush.msra.mxu0 %v478
  %890 = vmatpush.msra.mxu0 %v476
  %891 = vmatpush.msra.mxu0 %v474
  %892 = vmatpush.msra.mxu0 %v472
  %893 = vmatpush.msra.mxu0 %v470
  %894 = vmatpush.msra.mxu0 %v468
  %895 = vmatpush.msra.mxu0 %v466
  %896 = vmatpush.msra.mxu0 %v464
  %897 = vmatpush.msra.mxu0 %v462
  %898 = vmatpush.msra.mxu0 %v460
  %899 = vmatmul.f32.gmra.mxu0 %v338
  %v900 = vpop.f32.mrf.mxu0
  %v901 = vadd.f32 %v872, %v900
  %902 = vmatmul.f32.gmra.mxu0 %v345
  %v903 = vpop.f32.mrf.mxu0
  %v904 = vadd.f32 %v875, %v903
  %905 = vmatmul.f32.gmra.mxu0 %v352
  %v906 = vpop.f32.mrf.mxu0
  %v907 = vadd.f32 %v878, %v906
  %908 = vmatmul.f32.gmra.mxu0 %v359
  %v909 = vpop.f32.mrf.mxu0
  %v910 = vadd.f32 %v881, %v909
  %911 = vdwg.mxu0
  %912 = vmatpush.msra.mxu0 %v522
  %913 = vmatpush.msra.mxu0 %v520
  %914 = vmatpush.msra.mxu0 %v518
  %915 = vmatpush.msra.mxu0 %v516
  %916 = vmatpush.msra.mxu0 %v514
  %917 = vmatpush.msra.mxu0 %v512
  %918 = vmatpush.msra.mxu0 %v510
  %919 = vmatpush.msra.mxu0 %v508
  %920 = vmatpush.msra.mxu0 %v506
  %921 = vmatpush.msra.mxu0 %v504
  %922 = vmatpush.msra.mxu0 %v502
  %923 = vmatpush.msra.mxu0 %v500
  %924 = vmatpush.msra.mxu0 %v498
  %925 = vmatpush.msra.mxu0 %v496
  %926 = vmatpush.msra.mxu0 %v494
  %927 = vmatpush.msra.mxu0 %v492
  %928 = vmatmul.f32.gmra.mxu0 %v339
  %v929 = vpop.f32.mrf.mxu0
  %v930 = vadd.f32 %v901, %v929
  %931 = vmatmul.f32.gmra.mxu0 %v346
  %v932 = vpop.f32.mrf.mxu0
  %v933 = vadd.f32 %v904, %v932
  %934 = vmatmul.f32.gmra.mxu0 %v353
  %v935 = vpop.f32.mrf.mxu0
  %v936 = vadd.f32 %v907, %v935
  %937 = vmatmul.f32.gmra.mxu0 %v360
  %v938 = vpop.f32.mrf.mxu0
  %v939 = vadd.f32 %v910, %v938
  %940 = vdwg.mxu0
  %941 = vmatpush.msra.mxu0 %v554
  %942 = vmatpush.msra.mxu0 %v552
  %943 = vmatpush.msra.mxu0 %v550
  %944 = vmatpush.msra.mxu0 %v548
  %945 = vmatpush.msra.mxu0 %v546
  %946 = vmatpush.msra.mxu0 %v544
  %947 = vmatpush.msra.mxu0 %v542
  %948 = vmatpush.msra.mxu0 %v540
  %949 = vmatpush.msra.mxu0 %v538
  %950 = vmatpush.msra.mxu0 %v536
  %951 = vmatpush.msra.mxu0 %v534
  %952 = vmatpush.msra.mxu0 %v532
  %953 = vmatpush.msra.mxu0 %v530
  %954 = vmatpush.msra.mxu0 %v528
  %955 = vmatpush.msra.mxu0 %v526
  %956 = vmatpush.msra.mxu0 %v524
  %957 = vmatmul.f32.gmra.mxu0 %v340
  %v958 = vpop.f32.mrf.mxu0
  %v959 = vadd.f32 %v930, %v958
  %960 = vmatmul.f32.gmra.mxu0 %v347
  %v961 = vpop.f32.mrf.mxu0
  %v962 = vadd.f32 %v933, %v961
  %963 = vmatmul.f32.gmra.mxu0 %v354
  %v964 = vpop.f32.mrf.mxu0
  %v965 = vadd.f32 %v936, %v964
  %966 = vmatmul.f32.gmra.mxu0 %v361
  %v967 = vpop.f32.mrf.mxu0
  %v968 = vadd.f32 %v939, %v967
  %969 = vdwg.mxu0
  %970 = vmatpush.msra.mxu0 %v586
  %971 = vmatpush.msra.mxu0 %v584
  %972 = vmatpush.msra.mxu0 %v582
  %973 = vmatpush.msra.mxu0 %v580
  %974 = vmatpush.msra.mxu0 %v578
  %975 = vmatpush.msra.mxu0 %v576
  %976 = vmatpush.msra.mxu0 %v574
  %977 = vmatpush.msra.mxu0 %v572
  %978 = vmatpush.msra.mxu0 %v570
  %979 = vmatpush.msra.mxu0 %v568
  %980 = vmatpush.msra.mxu0 %v566
  %981 = vmatpush.msra.mxu0 %v564
  %982 = vmatpush.msra.mxu0 %v562
  %983 = vmatpush.msra.mxu0 %v560
  %984 = vmatpush.msra.mxu0 %v558
  %985 = vmatpush.msra.mxu0 %v556
  %986 = vmatmul.f32.gmra.mxu0 %v341
  %v987 = vpop.f32.mrf.mxu0
  %v988 = vadd.f32 %v959, %v987
  %989 = vmatmul.f32.gmra.mxu0 %v348
  %v990 = vpop.f32.mrf.mxu0
  %v991 = vadd.f32 %v962, %v990
  %992 = vmatmul.f32.gmra.mxu0 %v355
  %v993 = vpop.f32.mrf.mxu0
  %v994 = vadd.f32 %v965, %v993
  %995 = vmatmul.f32.gmra.mxu0 %v362
  %v996 = vpop.f32.mrf.mxu0
  %v997 = vadd.f32 %v968, %v996
  %998 = vdwg.mxu0
  %v999 = vmax.f32 %v785, 0.0
  %v1000 = vmax.f32 %v988, 0.0
  %v1001 = vmax.f32 %v788, 0.0
  %v1002 = vmax.f32 %v991, 0.0
  %v1003 = vmax.f32 %v791, 0.0
  %v1004 = vmax.f32 %v994, 0.0
  %v1005 = vmax.f32 %v794, 0.0
  %v1006 = vmax.f32 %v997, 0.0
  %1007 = vst [vmem:[#allocation3] sm:$0xff] %v999
  %1008 = vst [vmem:[#allocation3 + $0x8] sm:$0xff] %v1000
  %1009 = vst [vmem:[#allocation3 + $0x10] sm:$0xff] %v1001
  %1010 = vst [vmem:[#allocation3 + $0x18] sm:$0xff] %v1002
  %1011 = vst [vmem:[#allocation3 + $0x20] sm:$0xff] %v1003
  %1012 = vst [vmem:[#allocation3 + $0x28] sm:$0xff] %v1004
  %1013 = vst [vmem:[#allocation3 + $0x30] sm:$0xff] %v1005
  %1014 = vst [vmem:[#allocation3 + $0x38] sm:$0xff] %v1006
  %v1015 = vld [vmem:[#allocation3] sm:$0xff]
  %v1016 = vld [vmem:[#allocation3 + $0x8] sm:$0xff]
  %v1017 = vld [vmem:[#allocation3 + $0x10] sm:$0x1f]
  %v1018 = vld [vmem:[#allocation3 + $0x18] sm:$0x1f]
  %v1023 = vrot.slane %v1015, 5
  %v1024 = vrot.slane %v1016, 5
  %v1025 = vrot.slane %v1017, 5
  %v1026 = vsel %vm142, %v1023, %v1025
  %v1027 = vrot.slane %v1018, 5
  %v1028 = vsel %vm142, %v1024, %v1027
  %1029 = vrot.lane.b32.xlu0 %v1023, 48
  %v1030 = vpop.permute.xlu0 %1029
  %1031 = vrot.lane.b32.xlu0 %v1024, 48
  %v1032 = vpop.permute.xlu0 %1031
  %1033 = vrot.lane.b32.xlu0 %v1026, 48
  %v1034 = vpop.permute.xlu0 %1033
  %1035 = vrot.lane.b32.xlu0 %v1028, 48
  %v1036 = vpop.permute.xlu0 %1035
  %vm1037 = vcmask 392192
  %v1038 = vsel %vm1037, %v1030, %v1032
  %v1039 = vsel %vm1037, %v1034, %v1036
  %vm1046 = vcmask 1047939
  %1047 = vst.msk [vmem:[#allocation4] sm:$0xf8] %vm1046, %v1030
  %1048 = vst [vmem:[#allocation4 + $0x8] sm:$0xf8] %v1038
  %vm1049 = vcmask 392195
  %1050 = vst.msk [vmem:[#allocation4 + $0x10] sm:$0xf8] %vm1049, %v1032
  %vm1051 = vcmask 1047936
  %1052 = vst.msk [vmem:[#allocation4 + $0xa8] sm:$0xff] %vm1051, %v1034
  %1053 = vst [vmem:[#allocation4 + $0xb0] sm:$0xff] %v1039
  %1054 = vst.msk [vmem:[#allocation4 + $0xb8] sm:$0xff] %vm1037, %v1036
  %v1055 = vld [vmem:[#allocation3] sm:$0xff]
  %v1056 = vld [vmem:[#allocation3 + $0x8] sm:$0xff]
  %v1057 = vld [vmem:[#allocation3 + $0x10] sm:$0x3f]
  %v1058 = vld [vmem:[#allocation3 + $0x18] sm:$0x3f]
  %v1063 = vrot.slane %v1055, 6
  %v1064 = vrot.slane %v1056, 6
  %v1065 = vrot.slane %v1057, 6
  %v1066 = vsel %vm160, %v1063, %v1065
  %v1067 = vrot.slane %v1058, 6
  %v1068 = vsel %vm160, %v1064, %v1067
  %1069 = vrot.lane.b32.xlu0 %v1063, 48
  %v1070 = vpop.permute.xlu0 %1069
  %1071 = vrot.lane.b32.xlu0 %v1064, 48
  %v1072 = vpop.permute.xlu0 %1071
  %1073 = vrot.lane.b32.xlu0 %v1066, 48
  %v1074 = vpop.permute.xlu0 %1073
  %1075 = vrot.lane.b32.xlu0 %v1068, 48
  %v1076 = vpop.permute.xlu0 %1075
  %v1077 = vsel %vm1037, %v1070, %v1072
  %v1078 = vsel %vm1037, %v1074, %v1076
  %vm1085 = vcmask 1047938
  %1086 = vst.msk [vmem:[#allocation4 + $0x18] sm:$0xfc] %vm1085, %v1070
  %1087 = vst [vmem:[#allocation4 + $0x20] sm:$0xfc] %v1077
  %vm1088 = vcmask 392194
  %1089 = vst.msk [vmem:[#allocation4 + $0x28] sm:$0xfc] %vm1088, %v1072
  %1090 = vst.msk [vmem:[#allocation4 + $0xc0] sm:$0xff] %vm1051, %v1074
  %1091 = vst [vmem:[#allocation4 + $0xc8] sm:$0xff] %v1078
  %1092 = vst.msk [vmem:[#allocation4 + $0xd0] sm:$0xff] %vm1037, %v1076
  %v1093 = vld [vmem:[#allocation3] sm:$0xff]
  %v1094 = vld [vmem:[#allocation3 + $0x8] sm:$0xff]
  %v1095 = vld [vmem:[#allocation3 + $0x10] sm:$0x7f]
  %v1096 = vld [vmem:[#allocation3 + $0x18] sm:$0x7f]
  %v1101 = vrot.slane %v1093, 7
  %v1102 = vrot.slane %v1094, 7
  %v1103 = vrot.slane %v1095, 7
  %v1104 = vsel %vm177, %v1101, %v1103
  %v1105 = vrot.slane %v1096, 7
  %v1106 = vsel %vm177, %v1102, %v1105
  %1107 = vrot.lane.b32.xlu0 %v1101, 48
  %v1108 = vpop.permute.xlu0 %1107
  %1109 = vrot.lane.b32.xlu0 %v1102, 48
  %v1110 = vpop.permute.xlu0 %1109
  %1111 = vrot.lane.b32.xlu0 %v1104, 48
  %v1112 = vpop.permute.xlu0 %1111
  %1113 = vrot.lane.b32.xlu0 %v1106, 48
  %v1114 = vpop.permute.xlu0 %1113
  %v1115 = vsel %vm1037, %v1108, %v1110
  %v1116 = vsel %vm1037, %v1112, %v1114
  %vm1123 = vcmask 1047937
  %1124 = vst.msk [vmem:[#allocation4 + $0x30] sm:$0xfe] %vm1123, %v1108
  %1125 = vst [vmem:[#allocation4 + $0x38] sm:$0xfe] %v1115
  %vm1126 = vcmask 392193
  %1127 = vst.msk [vmem:[#allocation4 + $0x40] sm:$0xfe] %vm1126, %v1110
  %1128 = vst.msk [vmem:[#allocation4 + $0xd8] sm:$0xff] %vm1051, %v1112
  %1129 = vst [vmem:[#allocation4 + $0xe0] sm:$0xff] %v1116
  %1130 = vst.msk [vmem:[#allocation4 + $0xe8] sm:$0xff] %vm1037, %v1114
  %v1131 = vld [vmem:[#allocation3] sm:$0xff]
  %v1132 = vld [vmem:[#allocation3 + $0x8] sm:$0xff]
  %v1133 = vld [vmem:[#allocation3 + $0x10] sm:$0xff]
  %v1134 = vld [vmem:[#allocation3 + $0x18] sm:$0xff]
  %1139 = vrot.lane.b32.xlu0 %v1131, 48
  %v1140 = vpop.permute.xlu0 %1139
  %1141 = vrot.lane.b32.xlu0 %v1132, 48
  %v1142 = vpop.permute.xlu0 %1141
  %1143 = vrot.lane.b32.xlu0 %v1133, 48
  %v1144 = vpop.permute.xlu0 %1143
  %1145 = vrot.lane.b32.xlu0 %v1134, 48
  %v1146 = vpop.permute.xlu0 %1145
  %v1147 = vsel %vm1037, %v1140, %v1142
  %v1148 = vsel %vm1037, %v1144, %v1146
  %1155 = vst.msk [vmem:[#allocation4 + $0x48] sm:$0xff] %vm1051, %v1140
  %1156 = vst [vmem:[#allocation4 + $0x50] sm:$0xff] %v1147
  %1157 = vst.msk [vmem:[#allocation4 + $0x58] sm:$0xff] %vm1037, %v1142
  %1158 = vst.msk [vmem:[#allocation4 + $0xf0] sm:$0xff] %vm1051, %v1144
  %1159 = vst [vmem:[#allocation4 + $0xf8] sm:$0xff] %v1148
  %1160 = vst.msk [vmem:[#allocation4 + $0x100] sm:$0xff] %vm1037, %v1146
  %v1161 = vld [vmem:[#allocation3] sm:$0xfe]
  %v1162 = vld [vmem:[#allocation3 + $0x8] sm:$0xfe]
  %v1163 = vld [vmem:[#allocation3 + $0x10] sm:$0xff]
  %v1164 = vld [vmem:[#allocation3 + $0x18] sm:$0xff]
  %vm1169 = vcmask 1046528
  %v1170 = vrot.slane %v1161, 1
  %v1171 = vrot.slane %v1163, 1
  %v1172 = vsel %vm1169, %v1170, %v1171
  %v1173 = vrot.slane %v1162, 1
  %v1174 = vrot.slane %v1164, 1
  %v1175 = vsel %vm1169, %v1173, %v1174
  %1176 = vrot.lane.b32.xlu0 %v1172, 48
  %v1177 = vpop.permute.xlu0 %1176
  %1178 = vrot.lane.b32.xlu0 %v1175, 48
  %v1179 = vpop.permute.xlu0 %1178
  %1180 = vrot.lane.b32.xlu0 %v1171, 48
  %v1181 = vpop.permute.xlu0 %1180
  %1182 = vrot.lane.b32.xlu0 %v1174, 48
  %v1183 = vpop.permute.xlu0 %1182
  %v1184 = vsel %vm1037, %v1177, %v1179
  %v1185 = vsel %vm1037, %v1181, %v1183
  %1192 = vst.msk [vmem:[#allocation4 + $0x60] sm:$0xff] %vm1051, %v1177
  %1193 = vst [vmem:[#allocation4 + $0x68] sm:$0xff] %v1184
  %1194 = vst.msk [vmem:[#allocation4 + $0x70] sm:$0xff] %vm1037, %v1179
  %vm1195 = vcmask 1046912
  %1196 = vst.msk [vmem:[#allocation4 + $0x108] sm:$0x7f] %vm1195, %v1181
  %1197 = vst [vmem:[#allocation4 + $0x110] sm:$0x7f] %v1185
  %vm1198 = vcmask 391168
  %1199 = vst.msk [vmem:[#allocation4 + $0x118] sm:$0x7f] %vm1198, %v1183
  %v1200 = vld [vmem:[#allocation3] sm:$0xfc]
  %v1201 = vld [vmem:[#allocation3 + $0x8] sm:$0xfc]
  %v1202 = vld [vmem:[#allocation3 + $0x10] sm:$0xff]
  %v1203 = vld [vmem:[#allocation3 + $0x18] sm:$0xff]
  %vm1208 = vcmask 1045504
  %v1209 = vrot.slane %v1200, 2
  %v1210 = vrot.slane %v1202, 2
  %v1211 = vsel %vm1208, %v1209, %v1210
  %v1212 = vrot.slane %v1201, 2
  %v1213 = vrot.slane %v1203, 2
  %v1214 = vsel %vm1208, %v1212, %v1213
  %1215 = vrot.lane.b32.xlu0 %v1211, 48
  %v1216 = vpop.permute.xlu0 %1215
  %1217 = vrot.lane.b32.xlu0 %v1214, 48
  %v1218 = vpop.permute.xlu0 %1217
  %1219 = vrot.lane.b32.xlu0 %v1210, 48
  %v1220 = vpop.permute.xlu0 %1219
  %1221 = vrot.lane.b32.xlu0 %v1213, 48
  %v1222 = vpop.permute.xlu0 %1221
  %v1223 = vsel %vm1037, %v1216, %v1218
  %v1224 = vsel %vm1037, %v1220, %v1222
  %1231 = vst.msk [vmem:[#allocation4 + $0x78] sm:$0xff] %vm1051, %v1216
  %1232 = vst [vmem:[#allocation4 + $0x80] sm:$0xff] %v1223
  %1233 = vst.msk [vmem:[#allocation4 + $0x88] sm:$0xff] %vm1037, %v1218
  %vm1234 = vcmask 1045888
  %1235 = vst.msk [vmem:[#allocation4 + $0x120] sm:$0x3f] %vm1234, %v1220
  %1236 = vst [vmem:[#allocation4 + $0x128] sm:$0x3f] %v1224
  %vm1237 = vcmask 390144
  %1238 = vst.msk [vmem:[#allocation4 + $0x130] sm:$0x3f] %vm1237, %v1222
  %v1239 = vld [vmem:[#allocation3] sm:$0xf8]
  %v1240 = vld [vmem:[#allocation3 + $0x8] sm:$0xf8]
  %v1241 = vld [vmem:[#allocation3 + $0x10] sm:$0xff]
  %v1242 = vld [vmem:[#allocation3 + $0x18] sm:$0xff]
  %vm1247 = vcmask 1044480
  %v1248 = vrot.slane %v1239, 3
  %v1249 = vrot.slane %v1241, 3
  %v1250 = vsel %vm1247, %v1248, %v1249
  %v1251 = vrot.slane %v1240, 3
  %v1252 = vrot.slane %v1242, 3
  %v1253 = vsel %vm1247, %v1251, %v1252
  %1254 = vrot.lane.b32.xlu0 %v1250, 48
  %v1255 = vpop.permute.xlu0 %1254
  %1256 = vrot.lane.b32.xlu0 %v1253, 48
  %v1257 = vpop.permute.xlu0 %1256
  %1258 = vrot.lane.b32.xlu0 %v1249, 48
  %v1259 = vpop.permute.xlu0 %1258
  %1260 = vrot.lane.b32.xlu0 %v1252, 48
  %v1261 = vpop.permute.xlu0 %1260
  %v1262 = vsel %vm1037, %v1255, %v1257
  %v1263 = vsel %vm1037, %v1259, %v1261
  %1270 = vst.msk [vmem:[#allocation4 + $0x90] sm:$0xff] %vm1051, %v1255
  %1271 = vst [vmem:[#allocation4 + $0x98] sm:$0xff] %v1262
  %1272 = vst.msk [vmem:[#allocation4 + $0xa0] sm:$0xff] %vm1037, %v1257
  %vm1273 = vcmask 1044864
  %1274 = vst.msk [vmem:[#allocation4 + $0x138] sm:$0x1f] %vm1273, %v1259
  %1275 = vst [vmem:[#allocation4 + $0x140] sm:$0x1f] %v1263
  %vm1276 = vcmask 389120
  %1277 = vst.msk [vmem:[#allocation4 + $0x148] sm:$0x1f] %vm1276, %v1261
  %v1278 = vld [vmem:[#allocation3 + $0x20] sm:$0xff]
  %v1279 = vld [vmem:[#allocation3 + $0x28] sm:$0xff]
  %v1280 = vld [vmem:[#allocation3 + $0x30] sm:$0x1f]
  %v1281 = vld [vmem:[#allocation3 + $0x38] sm:$0x1f]
  %v1286 = vrot.slane %v1278, 5
  %v1287 = vrot.slane %v1279, 5
  %v1288 = vrot.slane %v1280, 5
  %v1289 = vsel %vm142, %v1286, %v1288
  %v1290 = vrot.slane %v1281, 5
  %v1291 = vsel %vm142, %v1287, %v1290
  %1292 = vrot.lane.b32.xlu0 %v1286, 48
  %v1293 = vpop.permute.xlu0 %1292
  %1294 = vrot.lane.b32.xlu0 %v1287, 48
  %v1295 = vpop.permute.xlu0 %1294
  %1296 = vrot.lane.b32.xlu0 %v1289, 48
  %v1297 = vpop.permute.xlu0 %1296
  %1298 = vrot.lane.b32.xlu0 %v1291, 48
  %v1299 = vpop.permute.xlu0 %1298
  %v1300 = vsel %vm1037, %v1293, %v1295
  %v1301 = vsel %vm1037, %v1297, %v1299
  %1308 = vst.msk [vmem:[#allocation4 + $0x150] sm:$0xf8] %vm1046, %v1293
  %1309 = vst [vmem:[#allocation4 + $0x158] sm:$0xf8] %v1300
  %1310 = vst.msk [vmem:[#allocation4 + $0x160] sm:$0xf8] %vm1049, %v1295
  %1311 = vst.msk [vmem:[#allocation4 + $0x1f8] sm:$0xff] %vm1051, %v1297
  %1312 = vst [vmem:[#allocation4 + $0x200] sm:$0xff] %v1301
  %1313 = vst.msk [vmem:[#allocation4 + $0x208] sm:$0xff] %vm1037, %v1299
  %v1314 = vld [vmem:[#allocation3 + $0x20] sm:$0xff]
  %v1315 = vld [vmem:[#allocation3 + $0x28] sm:$0xff]
  %v1316 = vld [vmem:[#allocation3 + $0x30] sm:$0x3f]
  %v1317 = vld [vmem:[#allocation3 + $0x38] sm:$0x3f]
  %v1322 = vrot.slane %v1314, 6
  %v1323 = vrot.slane %v1315, 6
  %v1324 = vrot.slane %v1316, 6
  %v1325 = vsel %vm160, %v1322, %v1324
  %v1326 = vrot.slane %v1317, 6
  %v1327 = vsel %vm160, %v1323, %v1326
  %1328 = vrot.lane.b32.xlu0 %v1322, 48
  %v1329 = vpop.permute.xlu0 %1328
  %1330 = vrot.lane.b32.xlu0 %v1323, 48
  %v1331 = vpop.permute.xlu0 %1330
  %1332 = vrot.lane.b32.xlu0 %v1325, 48
  %v1333 = vpop.permute.xlu0 %1332
  %1334 = vrot.lane.b32.xlu0 %v1327, 48
  %v1335 = vpop.permute.xlu0 %1334
  %v1336 = vsel %vm1037, %v1329, %v1331
  %v1337 = vsel %vm1037, %v1333, %v1335
  %1344 = vst.msk [vmem:[#allocation4 + $0x168] sm:$0xfc] %vm1085, %v1329
  %1345 = vst [vmem:[#allocation4 + $0x170] sm:$0xfc] %v1336
  %1346 = vst.msk [vmem:[#allocation4 + $0x178] sm:$0xfc] %vm1088, %v1331
  %1347 = vst.msk [vmem:[#allocation4 + $0x210] sm:$0xff] %vm1051, %v1333
  %1348 = vst [vmem:[#allocation4 + $0x218] sm:$0xff] %v1337
  %1349 = vst.msk [vmem:[#allocation4 + $0x220] sm:$0xff] %vm1037, %v1335
  %v1350 = vld [vmem:[#allocation3 + $0x20] sm:$0xff]
  %v1351 = vld [vmem:[#allocation3 + $0x28] sm:$0xff]
  %v1352 = vld [vmem:[#allocation3 + $0x30] sm:$0x7f]
  %v1353 = vld [vmem:[#allocation3 + $0x38] sm:$0x7f]
  %v1358 = vrot.slane %v1350, 7
  %v1359 = vrot.slane %v1351, 7
  %v1360 = vrot.slane %v1352, 7
  %v1361 = vsel %vm177, %v1358, %v1360
  %v1362 = vrot.slane %v1353, 7
  %v1363 = vsel %vm177, %v1359, %v1362
  %1364 = vrot.lane.b32.xlu0 %v1358, 48
  %v1365 = vpop.permute.xlu0 %1364
  %1366 = vrot.lane.b32.xlu0 %v1359, 48
  %v1367 = vpop.permute.xlu0 %1366
  %1368 = vrot.lane.b32.xlu0 %v1361, 48
  %v1369 = vpop.permute.xlu0 %1368
  %1370 = vrot.lane.b32.xlu0 %v1363, 48
  %v1371 = vpop.permute.xlu0 %1370
  %v1372 = vsel %vm1037, %v1365, %v1367
  %v1373 = vsel %vm1037, %v1369, %v1371
  %1380 = vst.msk [vmem:[#allocation4 + $0x180] sm:$0xfe] %vm1123, %v1365
  %1381 = vst [vmem:[#allocation4 + $0x188] sm:$0xfe] %v1372
  %1382 = vst.msk [vmem:[#allocation4 + $0x190] sm:$0xfe] %vm1126, %v1367
  %1383 = vst.msk [vmem:[#allocation4 + $0x228] sm:$0xff] %vm1051, %v1369
  %1384 = vst [vmem:[#allocation4 + $0x230] sm:$0xff] %v1373
  %1385 = vst.msk [vmem:[#allocation4 + $0x238] sm:$0xff] %vm1037, %v1371
  %v1386 = vld [vmem:[#allocation3 + $0x20] sm:$0xff]
  %v1387 = vld [vmem:[#allocation3 + $0x28] sm:$0xff]
  %v1388 = vld [vmem:[#allocation3 + $0x30] sm:$0xff]
  %v1389 = vld [vmem:[#allocation3 + $0x38] sm:$0xff]
  %1394 = vrot.lane.b32.xlu0 %v1386, 48
  %v1395 = vpop.permute.xlu0 %1394
  %1396 = vrot.lane.b32.xlu0 %v1387, 48
  %v1397 = vpop.permute.xlu0 %1396
  %1398 = vrot.lane.b32.xlu0 %v1388, 48
  %v1399 = vpop.permute.xlu0 %1398
  %1400 = vrot.lane.b32.xlu0 %v1389, 48
  %v1401 = vpop.permute.xlu0 %1400
  %v1402 = vsel %vm1037, %v1395, %v1397
  %v1403 = vsel %vm1037, %v1399, %v1401
  %1410 = vst.msk [vmem:[#allocation4 + $0x198] sm:$0xff] %vm1051, %v1395
  %1411 = vst [vmem:[#allocation4 + $0x1a0] sm:$0xff] %v1402
  %1412 = vst.msk [vmem:[#allocation4 + $0x1a8] sm:$0xff] %vm1037, %v1397
  %1413 = vst.msk [vmem:[#allocation4 + $0x240] sm:$0xff] %vm1051, %v1399
  %1414 = vst [vmem:[#allocation4 + $0x248] sm:$0xff] %v1403
  %1415 = vst.msk [vmem:[#allocation4 + $0x250] sm:$0xff] %vm1037, %v1401
  %v1416 = vld [vmem:[#allocation3 + $0x20] sm:$0xfe]
  %v1417 = vld [vmem:[#allocation3 + $0x28] sm:$0xfe]
  %v1418 = vld [vmem:[#allocation3 + $0x30] sm:$0xff]
  %v1419 = vld [vmem:[#allocation3 + $0x38] sm:$0xff]
  %v1424 = vrot.slane %v1416, 1
  %v1425 = vrot.slane %v1418, 1
  %v1426 = vsel %vm1169, %v1424, %v1425
  %v1427 = vrot.slane %v1417, 1
  %v1428 = vrot.slane %v1419, 1
  %v1429 = vsel %vm1169, %v1427, %v1428
  %1430 = vrot.lane.b32.xlu0 %v1426, 48
  %v1431 = vpop.permute.xlu0 %1430
  %1432 = vrot.lane.b32.xlu0 %v1429, 48
  %v1433 = vpop.permute.xlu0 %1432
  %1434 = vrot.lane.b32.xlu0 %v1425, 48
  %v1435 = vpop.permute.xlu0 %1434
  %1436 = vrot.lane.b32.xlu0 %v1428, 48
  %v1437 = vpop.permute.xlu0 %1436
  %v1438 = vsel %vm1037, %v1431, %v1433
  %v1439 = vsel %vm1037, %v1435, %v1437
  %1446 = vst.msk [vmem:[#allocation4 + $0x1b0] sm:$0xff] %vm1051, %v1431
  %1447 = vst [vmem:[#allocation4 + $0x1b8] sm:$0xff] %v1438
  %1448 = vst.msk [vmem:[#allocation4 + $0x1c0] sm:$0xff] %vm1037, %v1433
  %1449 = vst.msk [vmem:[#allocation4 + $0x258] sm:$0x7f] %vm1195, %v1435
  %1450 = vst [vmem:[#allocation4 + $0x260] sm:$0x7f] %v1439
  %1451 = vst.msk [vmem:[#allocation4 + $0x268] sm:$0x7f] %vm1198, %v1437
  %v1452 = vld [vmem:[#allocation3 + $0x20] sm:$0xfc]
  %v1453 = vld [vmem:[#allocation3 + $0x28] sm:$0xfc]
  %v1454 = vld [vmem:[#allocation3 + $0x30] sm:$0xff]
  %v1455 = vld [vmem:[#allocation3 + $0x38] sm:$0xff]
  %v1460 = vrot.slane %v1452, 2
  %v1461 = vrot.slane %v1454, 2
  %v1462 = vsel %vm1208, %v1460, %v1461
  %v1463 = vrot.slane %v1453, 2
  %v1464 = vrot.slane %v1455, 2
  %v1465 = vsel %vm1208, %v1463, %v1464
  %1466 = vrot.lane.b32.xlu0 %v1462, 48
  %v1467 = vpop.permute.xlu0 %1466
  %1468 = vrot.lane.b32.xlu0 %v1465, 48
  %v1469 = vpop.permute.xlu0 %1468
  %1470 = vrot.lane.b32.xlu0 %v1461, 48
  %v1471 = vpop.permute.xlu0 %1470
  %1472 = vrot.lane.b32.xlu0 %v1464, 48
  %v1473 = vpop.permute.xlu0 %1472
  %v1474 = vsel %vm1037, %v1467, %v1469
  %v1475 = vsel %vm1037, %v1471, %v1473
  %1482 = vst.msk [vmem:[#allocation4 + $0x1c8] sm:$0xff] %vm1051, %v1467
  %1483 = vst [vmem:[#allocation4 + $0x1d0] sm:$0xff] %v1474
  %1484 = vst.msk [vmem:[#allocation4 + $0x1d8] sm:$0xff] %vm1037, %v1469
  %1485 = vst.msk [vmem:[#allocation4 + $0x270] sm:$0x3f] %vm1234, %v1471
  %1486 = vst [vmem:[#allocation4 + $0x278] sm:$0x3f] %v1475
  %1487 = vst.msk [vmem:[#allocation4 + $0x280] sm:$0x3f] %vm1237, %v1473
  %v1488 = vld [vmem:[#allocation3 + $0x20] sm:$0xf8]
  %v1489 = vld [vmem:[#allocation3 + $0x28] sm:$0xf8]
  %v1490 = vld [vmem:[#allocation3 + $0x30] sm:$0xff]
  %v1491 = vld [vmem:[#allocation3 + $0x38] sm:$0xff]
  %v1496 = vrot.slane %v1488, 3
  %v1497 = vrot.slane %v1490, 3
  %v1498 = vsel %vm1247, %v1496, %v1497
  %v1499 = vrot.slane %v1489, 3
  %v1500 = vrot.slane %v1491, 3
  %v1501 = vsel %vm1247, %v1499, %v1500
  %1502 = vrot.lane.b32.xlu0 %v1498, 48
  %v1503 = vpop.permute.xlu0 %1502
  %1504 = vrot.lane.b32.xlu0 %v1501, 48
  %v1505 = vpop.permute.xlu0 %1504
  %1506 = vrot.lane.b32.xlu0 %v1497, 48
  %v1507 = vpop.permute.xlu0 %1506
  %1508 = vrot.lane.b32.xlu0 %v1500, 48
  %v1509 = vpop.permute.xlu0 %1508
  %v1510 = vsel %vm1037, %v1503, %v1505
  %v1511 = vsel %vm1037, %v1507, %v1509
  %1518 = vst.msk [vmem:[#allocation4 + $0x1e0] sm:$0xff] %vm1051, %v1503
  %1519 = vst [vmem:[#allocation4 + $0x1e8] sm:$0xff] %v1510
  %1520 = vst.msk [vmem:[#allocation4 + $0x1f0] sm:$0xff] %vm1037, %v1505
  %1521 = vst.msk [vmem:[#allocation4 + $0x288] sm:$0x1f] %vm1273, %v1507
  %1522 = vst [vmem:[#allocation4 + $0x290] sm:$0x1f] %v1511
  %1523 = vst.msk [vmem:[#allocation4 + $0x298] sm:$0x1f] %vm1276, %v1509
  %v1524 = vld [vmem:[#allocation4] sm:$0xff]
  %v1525 = vld [vmem:[#allocation4 + $0x8] sm:$0xff]
  %v1526 = vld [vmem:[#allocation4 + $0x10] sm:$0xff]
  %v1527 = vld [vmem:[#allocation4 + $0x18] sm:$0xff]
  %v1528 = vld [vmem:[#allocation4 + $0x20] sm:$0xff]
  %v1529 = vld [vmem:[#allocation4 + $0x28] sm:$0xff]
  %v1530 = vld [vmem:[#allocation4 + $0x30] sm:$0xff]
  %v1531 = vld [vmem:[#allocation4 + $0x38] sm:$0xff]
  %v1532 = vld [vmem:[#allocation4 + $0x40] sm:$0xff]
  %v1533 = vld [vmem:[#allocation4 + $0x48] sm:$0xff]
  %v1534 = vld [vmem:[#allocation4 + $0x50] sm:$0xff]
  %v1535 = vld [vmem:[#allocation4 + $0x58] sm:$0xff]
  %v1536 = vld [vmem:[#allocation4 + $0x60] sm:$0xff]
  %v1537 = vld [vmem:[#allocation4 + $0x68] sm:$0xff]
  %v1538 = vld [vmem:[#allocation4 + $0x70] sm:$0xff]
  %v1539 = vld [vmem:[#allocation4 + $0x78] sm:$0xff]
  %v1540 = vld [vmem:[#allocation4 + $0x80] sm:$0xff]
  %v1541 = vld [vmem:[#allocation4 + $0x88] sm:$0xff]
  %v1542 = vld [vmem:[#allocation4 + $0x90] sm:$0xff]
  %v1543 = vld [vmem:[#allocation4 + $0x98] sm:$0xff]
  %v1544 = vld [vmem:[#allocation4 + $0xa0] sm:$0xff]
  %v1545 = vld [vmem:[#allocation4 + $0xa8] sm:$0xff]
  %v1546 = vld [vmem:[#allocation4 + $0xb0] sm:$0xff]
  %v1547 = vld [vmem:[#allocation4 + $0xb8] sm:$0xff]
  %v1548 = vld [vmem:[#allocation4 + $0xc0] sm:$0xff]
  %v1549 = vld [vmem:[#allocation4 + $0xc8] sm:$0xff]
  %v1550 = vld [vmem:[#allocation4 + $0xd0] sm:$0xff]
  %v1551 = vld [vmem:[#allocation4 + $0xd8] sm:$0xff]
  %v1552 = vld [vmem:[#allocation4 + $0xe0] sm:$0xff]
  %v1553 = vld [vmem:[#allocation4 + $0xe8] sm:$0xff]
  %v1554 = vld [vmem:[#allocation4 + $0xf0] sm:$0xff]
  %v1555 = vld [vmem:[#allocation4 + $0xf8] sm:$0xff]
  %v1556 = vld [vmem:[#allocation4 + $0x100] sm:$0xff]
  %v1557 = vld [vmem:[#allocation4 + $0x108] sm:$0xff]
  %v1558 = vld [vmem:[#allocation4 + $0x110] sm:$0xff]
  %v1559 = vld [vmem:[#allocation4 + $0x118] sm:$0xff]
  %v1560 = vld [vmem:[#allocation4 + $0x120] sm:$0xff]
  %v1561 = vld [vmem:[#allocation4 + $0x128] sm:$0xff]
  %v1562 = vld [vmem:[#allocation4 + $0x130] sm:$0xff]
  %v1563 = vld [vmem:[#allocation4 + $0x138] sm:$0xff]
  %v1564 = vld [vmem:[#allocation4 + $0x140] sm:$0xff]
  %v1565 = vld [vmem:[#allocation4 + $0x148] sm:$0xff]
  %v1566 = vld [vmem:[#allocation4 + $0x150] sm:$0xff]
  %v1567 = vld [vmem:[#allocation4 + $0x158] sm:$0xff]
  %v1568 = vld [vmem:[#allocation4 + $0x160] sm:$0xff]
  %v1569 = vld [vmem:[#allocation4 + $0x168] sm:$0xff]
  %v1570 = vld [vmem:[#allocation4 + $0x170] sm:$0xff]
  %v1571 = vld [vmem:[#allocation4 + $0x178] sm:$0xff]
  %v1572 = vld [vmem:[#allocation4 + $0x180] sm:$0xff]
  %v1573 = vld [vmem:[#allocation4 + $0x188] sm:$0xff]
  %v1574 = vld [vmem:[#allocation4 + $0x190] sm:$0xff]
  %v1575 = vld [vmem:[#allocation4 + $0x198] sm:$0xff]
  %v1576 = vld [vmem:[#allocation4 + $0x1a0] sm:$0xff]
  %v1577 = vld [vmem:[#allocation4 + $0x1a8] sm:$0xff]
  %v1578 = vld [vmem:[#allocation4 + $0x1b0] sm:$0xff]
  %v1579 = vld [vmem:[#allocation4 + $0x1b8] sm:$0xff]
  %v1580 = vld [vmem:[#allocation4 + $0x1c0] sm:$0xff]
  %v1581 = vld [vmem:[#allocation4 + $0x1c8] sm:$0xff]
  %v1582 = vld [vmem:[#allocation4 + $0x1d0] sm:$0xff]
  %v1583 = vld [vmem:[#allocation4 + $0x1d8] sm:$0xff]
  %v1584 = vld [vmem:[#allocation4 + $0x1e0] sm:$0xff]
  %v1585 = vld [vmem:[#allocation4 + $0x1e8] sm:$0xff]
  %v1586 = vld [vmem:[#allocation4 + $0x1f0] sm:$0xff]
  %v1587 = vld [vmem:[#allocation4 + $0x1f8] sm:$0xff]
  %v1588 = vld [vmem:[#allocation4 + $0x200] sm:$0xff]
  %v1589 = vld [vmem:[#allocation4 + $0x208] sm:$0xff]
  %v1590 = vld [vmem:[#allocation4 + $0x210] sm:$0xff]
  %v1591 = vld [vmem:[#allocation4 + $0x218] sm:$0xff]
  %v1592 = vld [vmem:[#allocation4 + $0x220] sm:$0xff]
  %v1593 = vld [vmem:[#allocation4 + $0x228] sm:$0xff]
  %v1594 = vld [vmem:[#allocation4 + $0x230] sm:$0xff]
  %v1595 = vld [vmem:[#allocation4 + $0x238] sm:$0xff]
  %v1596 = vld [vmem:[#allocation4 + $0x240] sm:$0xff]
  %v1597 = vld [vmem:[#allocation4 + $0x248] sm:$0xff]
  %v1598 = vld [vmem:[#allocation4 + $0x250] sm:$0xff]
  %v1599 = vld [vmem:[#allocation4 + $0x258] sm:$0xff]
  %v1600 = vld [vmem:[#allocation4 + $0x260] sm:$0xff]
  %v1601 = vld [vmem:[#allocation4 + $0x268] sm:$0xff]
  %v1602 = vld [vmem:[#allocation4 + $0x270] sm:$0xff]
  %v1603 = vld [vmem:[#allocation4 + $0x278] sm:$0xff]
  %v1604 = vld [vmem:[#allocation4 + $0x280] sm:$0xff]
  %v1605 = vld [vmem:[#allocation4 + $0x288] sm:$0xff]
  %v1606 = vld [vmem:[#allocation4 + $0x290] sm:$0xff]
  %v1607 = vld [vmem:[#allocation4 + $0x298] sm:$0xff]
  %v1608 = vld [vmem:[%s3] sm:$0xff]
  %v1609 = vld [vmem:[%s3 + $0x8] sm:$0xff]
  %v1610 = vld [vmem:[%s3 + $0x10] sm:$0xff]
  %v1611 = vld [vmem:[%s3 + $0x18] sm:$0xff]
  %v1612 = vld [vmem:[%s3 + $0x20] sm:$0xff]
  %v1613 = vld [vmem:[%s3 + $0x28] sm:$0xff]
  %v1614 = vld [vmem:[%s3 + $0x30] sm:$0xff]
  %v1615 = vld [vmem:[%s3 + $0x38] sm:$0xff]
  %v1616 = vld [vmem:[%s3 + $0x40] sm:$0xff]
  %v1617 = vld [vmem:[%s3 + $0x48] sm:$0xff]
  %v1618 = vld [vmem:[%s3 + $0x50] sm:$0xff]
  %v1619 = vld [vmem:[%s3 + $0x58] sm:$0xff]
  %v1620 = vld [vmem:[%s3 + $0x60] sm:$0xff]
  %v1621 = vld [vmem:[%s3 + $0x68] sm:$0xff]
  %v1622 = vld [vmem:[%s3 + $0x70] sm:$0xff]
  %v1623 = vld [vmem:[%s3 + $0x78] sm:$0xff]
  %v1624 = vld [vmem:[%s3 + $0x80] sm:$0xff]
  %v1625 = vld [vmem:[%s3 + $0x88] sm:$0xff]
  %v1626 = vld [vmem:[%s3 + $0x90] sm:$0xff]
  %v1627 = vld [vmem:[%s3 + $0x98] sm:$0xff]
  %v1628 = vld [vmem:[%s3 + $0xa0] sm:$0xff]
  %v1629 = vld [vmem:[%s3 + $0xa8] sm:$0xff]
  %v1630 = vld [vmem:[%s3 + $0xb0] sm:$0xff]
  %v1631 = vld [vmem:[%s3 + $0xb8] sm:$0xff]
  %v1632 = vld [vmem:[%s3 + $0xc0] sm:$0xff]
  %v1633 = vld [vmem:[%s3 + $0xc8] sm:$0xff]
  %v1634 = vld [vmem:[%s3 + $0xd0] sm:$0xff]
  %v1635 = vld [vmem:[%s3 + $0xd8] sm:$0xff]
  %v1636 = vld [vmem:[%s3 + $0xe0] sm:$0xff]
  %v1637 = vld [vmem:[%s3 + $0xe8] sm:$0xff]
  %v1638 = vld [vmem:[%s3 + $0xf0] sm:$0xff]
  %v1639 = vld [vmem:[%s3 + $0xf8] sm:$0xff]
  %v1640 = vld [vmem:[%s3 + $0x100] sm:$0xff]
  %v1641 = vld [vmem:[%s3 + $0x108] sm:$0xff]
  %v1642 = vld [vmem:[%s3 + $0x110] sm:$0xff]
  %v1643 = vld [vmem:[%s3 + $0x118] sm:$0xff]
  %v1644 = vld [vmem:[%s3 + $0x120] sm:$0xff]
  %v1645 = vld [vmem:[%s3 + $0x128] sm:$0xff]
  %v1646 = vld [vmem:[%s3 + $0x130] sm:$0xff]
  %v1647 = vld [vmem:[%s3 + $0x138] sm:$0xff]
  %v1648 = vld [vmem:[%s3 + $0x140] sm:$0xff]
  %v1649 = vld [vmem:[%s3 + $0x148] sm:$0xff]
  %v1650 = vld [vmem:[%s3 + $0x150] sm:$0xff]
  %v1651 = vld [vmem:[%s3 + $0x158] sm:$0xff]
  %v1652 = vld [vmem:[%s3 + $0x160] sm:$0xff]
  %v1653 = vld [vmem:[%s3 + $0x168] sm:$0xff]
  %v1654 = vld [vmem:[%s3 + $0x170] sm:$0xff]
  %v1655 = vld [vmem:[%s3 + $0x178] sm:$0xff]
  %v1656 = vld [vmem:[%s3 + $0x180] sm:$0xff]
  %v1657 = vld [vmem:[%s3 + $0x188] sm:$0xff]
  %v1658 = vld [vmem:[%s3 + $0x190] sm:$0xff]
  %v1659 = vld [vmem:[%s3 + $0x198] sm:$0xff]
  %v1660 = vld [vmem:[%s3 + $0x1a0] sm:$0xff]
  %v1661 = vld [vmem:[%s3 + $0x1a8] sm:$0xff]
  %v1662 = vld [vmem:[%s3 + $0x1b0] sm:$0xff]
  %v1663 = vld [vmem:[%s3 + $0x1b8] sm:$0xff]
  %v1664 = vld [vmem:[%s3 + $0x1c0] sm:$0xff]
  %v1665 = vld [vmem:[%s3 + $0x1c8] sm:$0xff]
  %v1666 = vld [vmem:[%s3 + $0x1d0] sm:$0xff]
  %v1667 = vld [vmem:[%s3 + $0x1d8] sm:$0xff]
  %v1668 = vld [vmem:[%s3 + $0x1e0] sm:$0xff]
  %v1669 = vld [vmem:[%s3 + $0x1e8] sm:$0xff]
  %v1670 = vld [vmem:[%s3 + $0x1f0] sm:$0xff]
  %v1671 = vld [vmem:[%s3 + $0x1f8] sm:$0xff]
  %v1672 = vld [vmem:[%s3 + $0x200] sm:$0xff]
  %v1673 = vld [vmem:[%s3 + $0x208] sm:$0xff]
  %v1674 = vld [vmem:[%s3 + $0x210] sm:$0xff]
  %v1675 = vld [vmem:[%s3 + $0x218] sm:$0xff]
  %v1676 = vld [vmem:[%s3 + $0x220] sm:$0xff]
  %v1677 = vld [vmem:[%s3 + $0x228] sm:$0xff]
  %v1678 = vld [vmem:[%s3 + $0x230] sm:$0xff]
  %v1679 = vld [vmem:[%s3 + $0x238] sm:$0xff]
  %v1680 = vld [vmem:[%s3 + $0x240] sm:$0xff]
  %v1681 = vld [vmem:[%s3 + $0x248] sm:$0xff]
  %v1682 = vld [vmem:[%s3 + $0x250] sm:$0xff]
  %v1683 = vld [vmem:[%s3 + $0x258] sm:$0xff]
  %v1684 = vld [vmem:[%s3 + $0x260] sm:$0xff]
  %v1685 = vld [vmem:[%s3 + $0x268] sm:$0xff]
  %v1686 = vld [vmem:[%s3 + $0x270] sm:$0xff]
  %v1687 = vld [vmem:[%s3 + $0x278] sm:$0xff]
  %v1688 = vld [vmem:[%s3 + $0x280] sm:$0xff]
  %v1689 = vld [vmem:[%s3 + $0x288] sm:$0xff]
  %v1690 = vld [vmem:[%s3 + $0x290] sm:$0xff]
  %v1691 = vld [vmem:[%s3 + $0x298] sm:$0xff]
  %v1692 = vld [vmem:[%s3 + $0x2a0] sm:$0xff]
  %v1693 = vld [vmem:[%s3 + $0x2a8] sm:$0xff]
  %v1694 = vld [vmem:[%s3 + $0x2b0] sm:$0xff]
  %v1695 = vld [vmem:[%s3 + $0x2b8] sm:$0xff]
  %v1696 = vld [vmem:[%s3 + $0x2c0] sm:$0xff]
  %v1697 = vld [vmem:[%s3 + $0x2c8] sm:$0xff]
  %v1698 = vld [vmem:[%s3 + $0x2d0] sm:$0xff]
  %v1699 = vld [vmem:[%s3 + $0x2d8] sm:$0xff]
  %v1700 = vld [vmem:[%s3 + $0x2e0] sm:$0xff]
  %v1701 = vld [vmem:[%s3 + $0x2e8] sm:$0xff]
  %v1702 = vld [vmem:[%s3 + $0x2f0] sm:$0xff]
  %v1703 = vld [vmem:[%s3 + $0x2f8] sm:$0xff]
  %v1704 = vld [vmem:[%s3 + $0x300] sm:$0xff]
  %v1705 = vld [vmem:[%s3 + $0x308] sm:$0xff]
  %v1706 = vld [vmem:[%s3 + $0x310] sm:$0xff]
  %v1707 = vld [vmem:[%s3 + $0x318] sm:$0xff]
  %v1708 = vld [vmem:[%s3 + $0x320] sm:$0xff]
  %v1709 = vld [vmem:[%s3 + $0x328] sm:$0xff]
  %v1710 = vld [vmem:[%s3 + $0x330] sm:$0xff]
  %v1711 = vld [vmem:[%s3 + $0x338] sm:$0xff]
  %v1712 = vld [vmem:[%s3 + $0x340] sm:$0xff]
  %v1713 = vld [vmem:[%s3 + $0x348] sm:$0xff]
  %v1714 = vld [vmem:[%s3 + $0x350] sm:$0xff]
  %v1715 = vld [vmem:[%s3 + $0x358] sm:$0xff]
  %v1716 = vld [vmem:[%s3 + $0x360] sm:$0xff]
  %v1717 = vld [vmem:[%s3 + $0x368] sm:$0xff]
  %v1718 = vld [vmem:[%s3 + $0x370] sm:$0xff]
  %v1719 = vld [vmem:[%s3 + $0x378] sm:$0xff]
  %v1720 = vld [vmem:[%s3 + $0x380] sm:$0xff]
  %v1721 = vld [vmem:[%s3 + $0x388] sm:$0xff]
  %v1722 = vld [vmem:[%s3 + $0x390] sm:$0xff]
  %v1723 = vld [vmem:[%s3 + $0x398] sm:$0xff]
  %v1724 = vld [vmem:[%s3 + $0x3a0] sm:$0xff]
  %v1725 = vld [vmem:[%s3 + $0x3a8] sm:$0xff]
  %v1726 = vld [vmem:[%s3 + $0x3b0] sm:$0xff]
  %v1727 = vld [vmem:[%s3 + $0x3b8] sm:$0xff]
  %v1728 = vld [vmem:[%s3 + $0x3c0] sm:$0xff]
  %v1729 = vld [vmem:[%s3 + $0x3c8] sm:$0xff]
  %v1730 = vld [vmem:[%s3 + $0x3d0] sm:$0xff]
  %v1731 = vld [vmem:[%s3 + $0x3d8] sm:$0xff]
  %v1732 = vld [vmem:[%s3 + $0x3e0] sm:$0xff]
  %v1733 = vld [vmem:[%s3 + $0x3e8] sm:$0xff]
  %v1734 = vld [vmem:[%s3 + $0x3f0] sm:$0xff]
  %v1735 = vld [vmem:[%s3 + $0x3f8] sm:$0xff]
  %v1736 = vld [vmem:[%s3 + $0x400] sm:$0xff]
  %v1737 = vld [vmem:[%s3 + $0x408] sm:$0xff]
  %v1738 = vld [vmem:[%s3 + $0x410] sm:$0xff]
  %v1739 = vld [vmem:[%s3 + $0x418] sm:$0xff]
  %v1740 = vld [vmem:[%s3 + $0x420] sm:$0xff]
  %v1741 = vld [vmem:[%s3 + $0x428] sm:$0xff]
  %v1742 = vld [vmem:[%s3 + $0x430] sm:$0xff]
  %v1743 = vld [vmem:[%s3 + $0x438] sm:$0xff]
  %v1744 = vld [vmem:[%s3 + $0x440] sm:$0xff]
  %v1745 = vld [vmem:[%s3 + $0x448] sm:$0xff]
  %v1746 = vld [vmem:[%s3 + $0x450] sm:$0xff]
  %v1747 = vld [vmem:[%s3 + $0x458] sm:$0xff]
  %v1748 = vld [vmem:[%s3 + $0x460] sm:$0xff]
  %v1749 = vld [vmem:[%s3 + $0x468] sm:$0xff]
  %v1750 = vld [vmem:[%s3 + $0x470] sm:$0xff]
  %v1751 = vld [vmem:[%s3 + $0x478] sm:$0xff]
  %v1752 = vld [vmem:[%s3 + $0x480] sm:$0xff]
  %v1753 = vld [vmem:[%s3 + $0x488] sm:$0xff]
  %v1754 = vld [vmem:[%s3 + $0x490] sm:$0xff]
  %v1755 = vld [vmem:[%s3 + $0x498] sm:$0xff]
  %v1756 = vld [vmem:[%s3 + $0x4a0] sm:$0xff]
  %v1757 = vld [vmem:[%s3 + $0x4a8] sm:$0xff]
  %v1758 = vld [vmem:[%s3 + $0x4b0] sm:$0xff]
  %v1759 = vld [vmem:[%s3 + $0x4b8] sm:$0xff]
  %v1760 = vld [vmem:[%s3 + $0x4c0] sm:$0xff]
  %v1761 = vld [vmem:[%s3 + $0x4c8] sm:$0xff]
  %v1762 = vld [vmem:[%s3 + $0x4d0] sm:$0xff]
  %v1763 = vld [vmem:[%s3 + $0x4d8] sm:$0xff]
  %v1764 = vld [vmem:[%s3 + $0x4e0] sm:$0xff]
  %v1765 = vld [vmem:[%s3 + $0x4e8] sm:$0xff]
  %v1766 = vld [vmem:[%s3 + $0x4f0] sm:$0xff]
  %v1767 = vld [vmem:[%s3 + $0x4f8] sm:$0xff]
  %v1768 = vld [vmem:[%s3 + $0x500] sm:$0xff]
  %v1769 = vld [vmem:[%s3 + $0x508] sm:$0xff]
  %v1770 = vld [vmem:[%s3 + $0x510] sm:$0xff]
  %v1771 = vld [vmem:[%s3 + $0x518] sm:$0xff]
  %v1772 = vld [vmem:[%s3 + $0x520] sm:$0xff]
  %v1773 = vld [vmem:[%s3 + $0x528] sm:$0xff]
  %v1774 = vld [vmem:[%s3 + $0x530] sm:$0xff]
  %v1775 = vld [vmem:[%s3 + $0x538] sm:$0xff]
  %v1776 = vld [vmem:[%s3 + $0x540] sm:$0xff]
  %v1777 = vld [vmem:[%s3 + $0x548] sm:$0xff]
  %v1778 = vld [vmem:[%s3 + $0x550] sm:$0xff]
  %v1779 = vld [vmem:[%s3 + $0x558] sm:$0xff]
  %v1780 = vld [vmem:[%s3 + $0x560] sm:$0xff]
  %v1781 = vld [vmem:[%s3 + $0x568] sm:$0xff]
  %v1782 = vld [vmem:[%s3 + $0x570] sm:$0xff]
  %v1783 = vld [vmem:[%s3 + $0x578] sm:$0xff]
  %v1784 = vld [vmem:[%s3 + $0x580] sm:$0xff]
  %v1785 = vld [vmem:[%s3 + $0x588] sm:$0xff]
  %v1786 = vld [vmem:[%s3 + $0x590] sm:$0xff]
  %v1787 = vld [vmem:[%s3 + $0x598] sm:$0xff]
  %v1788 = vld [vmem:[%s3 + $0x5a0] sm:$0xff]
  %v1789 = vld [vmem:[%s3 + $0x5a8] sm:$0xff]
  %v1790 = vld [vmem:[%s3 + $0x5b0] sm:$0xff]
  %v1791 = vld [vmem:[%s3 + $0x5b8] sm:$0xff]
  %v1792 = vld [vmem:[%s3 + $0x5c0] sm:$0xff]
  %v1793 = vld [vmem:[%s3 + $0x5c8] sm:$0xff]
  %v1794 = vld [vmem:[%s3 + $0x5d0] sm:$0xff]
  %v1795 = vld [vmem:[%s3 + $0x5d8] sm:$0xff]
  %v1796 = vld [vmem:[%s3 + $0x5e0] sm:$0xff]
  %v1797 = vld [vmem:[%s3 + $0x5e8] sm:$0xff]
  %v1798 = vld [vmem:[%s3 + $0x5f0] sm:$0xff]
  %v1799 = vld [vmem:[%s3 + $0x5f8] sm:$0xff]
  %v1800 = vld [vmem:[%s3 + $0x600] sm:$0xff]
  %v1801 = vld [vmem:[%s3 + $0x608] sm:$0xff]
  %v1802 = vld [vmem:[%s3 + $0x610] sm:$0xff]
  %v1803 = vld [vmem:[%s3 + $0x618] sm:$0xff]
  %v1804 = vld [vmem:[%s3 + $0x620] sm:$0xff]
  %v1805 = vld [vmem:[%s3 + $0x628] sm:$0xff]
  %v1806 = vld [vmem:[%s3 + $0x630] sm:$0xff]
  %v1807 = vld [vmem:[%s3 + $0x638] sm:$0xff]
  %v1808 = vld [vmem:[%s3 + $0x640] sm:$0xff]
  %v1809 = vld [vmem:[%s3 + $0x648] sm:$0xff]
  %v1810 = vld [vmem:[%s3 + $0x650] sm:$0xff]
  %v1811 = vld [vmem:[%s3 + $0x658] sm:$0xff]
  %v1812 = vld [vmem:[%s3 + $0x660] sm:$0xff]
  %v1813 = vld [vmem:[%s3 + $0x668] sm:$0xff]
  %v1814 = vld [vmem:[%s3 + $0x670] sm:$0xff]
  %v1815 = vld [vmem:[%s3 + $0x678] sm:$0xff]
  %v1816 = vld [vmem:[%s3 + $0x680] sm:$0xff]
  %v1817 = vld [vmem:[%s3 + $0x688] sm:$0xff]
  %v1818 = vld [vmem:[%s3 + $0x690] sm:$0xff]
  %v1819 = vld [vmem:[%s3 + $0x698] sm:$0xff]
  %v1820 = vld [vmem:[%s3 + $0x6a0] sm:$0xff]
  %v1821 = vld [vmem:[%s3 + $0x6a8] sm:$0xff]
  %v1822 = vld [vmem:[%s3 + $0x6b0] sm:$0xff]
  %v1823 = vld [vmem:[%s3 + $0x6b8] sm:$0xff]
  %v1824 = vld [vmem:[%s3 + $0x6c0] sm:$0xff]
  %v1825 = vld [vmem:[%s3 + $0x6c8] sm:$0xff]
  %v1826 = vld [vmem:[%s3 + $0x6d0] sm:$0xff]
  %v1827 = vld [vmem:[%s3 + $0x6d8] sm:$0xff]
  %v1828 = vld [vmem:[%s3 + $0x6e0] sm:$0xff]
  %v1829 = vld [vmem:[%s3 + $0x6e8] sm:$0xff]
  %v1830 = vld [vmem:[%s3 + $0x6f0] sm:$0xff]
  %v1831 = vld [vmem:[%s3 + $0x6f8] sm:$0xff]
  %v1832 = vld [vmem:[%s3 + $0x700] sm:$0xff]
  %v1833 = vld [vmem:[%s3 + $0x708] sm:$0xff]
  %v1834 = vld [vmem:[%s3 + $0x710] sm:$0xff]
  %v1835 = vld [vmem:[%s3 + $0x718] sm:$0xff]
  %v1836 = vld [vmem:[%s3 + $0x720] sm:$0xff]
  %v1837 = vld [vmem:[%s3 + $0x728] sm:$0xff]
  %v1838 = vld [vmem:[%s3 + $0x730] sm:$0xff]
  %v1839 = vld [vmem:[%s3 + $0x738] sm:$0xff]
  %v1840 = vld [vmem:[%s3 + $0x740] sm:$0xff]
  %v1841 = vld [vmem:[%s3 + $0x748] sm:$0xff]
  %v1842 = vld [vmem:[%s3 + $0x750] sm:$0xff]
  %v1843 = vld [vmem:[%s3 + $0x758] sm:$0xff]
  %v1844 = vld [vmem:[%s3 + $0x760] sm:$0xff]
  %v1845 = vld [vmem:[%s3 + $0x768] sm:$0xff]
  %v1846 = vld [vmem:[%s3 + $0x770] sm:$0xff]
  %v1847 = vld [vmem:[%s3 + $0x778] sm:$0xff]
  %v1848 = vld [vmem:[%s3 + $0x780] sm:$0xff]
  %v1849 = vld [vmem:[%s3 + $0x788] sm:$0xff]
  %v1850 = vld [vmem:[%s3 + $0x790] sm:$0xff]
  %v1851 = vld [vmem:[%s3 + $0x798] sm:$0xff]
  %v1852 = vld [vmem:[%s3 + $0x7a0] sm:$0xff]
  %v1853 = vld [vmem:[%s3 + $0x7a8] sm:$0xff]
  %v1854 = vld [vmem:[%s3 + $0x7b0] sm:$0xff]
  %v1855 = vld [vmem:[%s3 + $0x7b8] sm:$0xff]
  %v1856 = vld [vmem:[%s3 + $0x7c0] sm:$0xff]
  %v1857 = vld [vmem:[%s3 + $0x7c8] sm:$0xff]
  %v1858 = vld [vmem:[%s3 + $0x7d0] sm:$0xff]
  %v1859 = vld [vmem:[%s3 + $0x7d8] sm:$0xff]
  %v1860 = vld [vmem:[%s3 + $0x7e0] sm:$0xff]
  %v1861 = vld [vmem:[%s3 + $0x7e8] sm:$0xff]
  %v1862 = vld [vmem:[%s3 + $0x7f0] sm:$0xff]
  %v1863 = vld [vmem:[%s3 + $0x7f8] sm:$0xff]
  %v1864 = vld [vmem:[%s3 + $0x800] sm:$0xff]
  %v1865 = vld [vmem:[%s3 + $0x808] sm:$0xff]
  %v1866 = vld [vmem:[%s3 + $0x810] sm:$0xff]
  %v1867 = vld [vmem:[%s3 + $0x818] sm:$0xff]
  %v1868 = vld [vmem:[%s3 + $0x820] sm:$0xff]
  %v1869 = vld [vmem:[%s3 + $0x828] sm:$0xff]
  %v1870 = vld [vmem:[%s3 + $0x830] sm:$0xff]
  %v1871 = vld [vmem:[%s3 + $0x838] sm:$0xff]
  %v1872 = vld [vmem:[%s3 + $0x840] sm:$0xff]
  %v1873 = vld [vmem:[%s3 + $0x848] sm:$0xff]
  %v1874 = vld [vmem:[%s3 + $0x850] sm:$0xff]
  %v1875 = vld [vmem:[%s3 + $0x858] sm:$0xff]
  %v1876 = vld [vmem:[%s3 + $0x860] sm:$0xff]
  %v1877 = vld [vmem:[%s3 + $0x868] sm:$0xff]
  %v1878 = vld [vmem:[%s3 + $0x870] sm:$0xff]
  %v1879 = vld [vmem:[%s3 + $0x878] sm:$0xff]
  %v1880 = vld [vmem:[%s3 + $0x880] sm:$0xff]
  %v1881 = vld [vmem:[%s3 + $0x888] sm:$0xff]
  %v1882 = vld [vmem:[%s3 + $0x890] sm:$0xff]
  %v1883 = vld [vmem:[%s3 + $0x898] sm:$0xff]
  %v1884 = vld [vmem:[%s3 + $0x8a0] sm:$0xff]
  %v1885 = vld [vmem:[%s3 + $0x8a8] sm:$0xff]
  %v1886 = vld [vmem:[%s3 + $0x8b0] sm:$0xff]
  %v1887 = vld [vmem:[%s3 + $0x8b8] sm:$0xff]
  %v1888 = vld [vmem:[%s3 + $0x8c0] sm:$0xff]
  %v1889 = vld [vmem:[%s3 + $0x8c8] sm:$0xff]
  %v1890 = vld [vmem:[%s3 + $0x8d0] sm:$0xff]
  %v1891 = vld [vmem:[%s3 + $0x8d8] sm:$0xff]
  %v1892 = vld [vmem:[%s3 + $0x8e0] sm:$0xff]
  %v1893 = vld [vmem:[%s3 + $0x8e8] sm:$0xff]
  %v1894 = vld [vmem:[%s3 + $0x8f0] sm:$0xff]
  %v1895 = vld [vmem:[%s3 + $0x8f8] sm:$0xff]
  %v1896 = vld [vmem:[%s3 + $0x900] sm:$0xff]
  %v1897 = vld [vmem:[%s3 + $0x908] sm:$0xff]
  %v1898 = vld [vmem:[%s3 + $0x910] sm:$0xff]
  %v1899 = vld [vmem:[%s3 + $0x918] sm:$0xff]
  %v1900 = vld [vmem:[%s3 + $0x920] sm:$0xff]
  %v1901 = vld [vmem:[%s3 + $0x928] sm:$0xff]
  %v1902 = vld [vmem:[%s3 + $0x930] sm:$0xff]
  %v1903 = vld [vmem:[%s3 + $0x938] sm:$0xff]
  %v1904 = vld [vmem:[%s3 + $0x940] sm:$0xff]
  %v1905 = vld [vmem:[%s3 + $0x948] sm:$0xff]
  %v1906 = vld [vmem:[%s3 + $0x950] sm:$0xff]
  %v1907 = vld [vmem:[%s3 + $0x958] sm:$0xff]
  %v1908 = vld [vmem:[%s3 + $0x960] sm:$0xff]
  %v1909 = vld [vmem:[%s3 + $0x968] sm:$0xff]
  %v1910 = vld [vmem:[%s3 + $0x970] sm:$0xff]
  %v1911 = vld [vmem:[%s3 + $0x978] sm:$0xff]
  %v1912 = vld [vmem:[%s3 + $0x980] sm:$0xff]
  %v1913 = vld [vmem:[%s3 + $0x988] sm:$0xff]
  %v1914 = vld [vmem:[%s3 + $0x990] sm:$0xff]
  %v1915 = vld [vmem:[%s3 + $0x998] sm:$0xff]
  %v1916 = vld [vmem:[%s3 + $0x9a0] sm:$0xff]
  %v1917 = vld [vmem:[%s3 + $0x9a8] sm:$0xff]
  %v1918 = vld [vmem:[%s3 + $0x9b0] sm:$0xff]
  %v1919 = vld [vmem:[%s3 + $0x9b8] sm:$0xff]
  %v1920 = vld [vmem:[%s3 + $0x9c0] sm:$0xff]
  %v1921 = vld [vmem:[%s3 + $0x9c8] sm:$0xff]
  %v1922 = vld [vmem:[%s3 + $0x9d0] sm:$0xff]
  %v1923 = vld [vmem:[%s3 + $0x9d8] sm:$0xff]
  %v1924 = vld [vmem:[%s3 + $0x9e0] sm:$0xff]
  %v1925 = vld [vmem:[%s3 + $0x9e8] sm:$0xff]
  %v1926 = vld [vmem:[%s3 + $0x9f0] sm:$0xff]
  %v1927 = vld [vmem:[%s3 + $0x9f8] sm:$0xff]
  %v1928 = vld [vmem:[%s3 + $0xa00] sm:$0xff]
  %v1929 = vld [vmem:[%s3 + $0xa08] sm:$0xff]
  %v1930 = vld [vmem:[%s3 + $0xa10] sm:$0xff]
  %v1931 = vld [vmem:[%s3 + $0xa18] sm:$0xff]
  %v1932 = vld [vmem:[%s3 + $0xa20] sm:$0xff]
  %v1933 = vld [vmem:[%s3 + $0xa28] sm:$0xff]
  %v1934 = vld [vmem:[%s3 + $0xa30] sm:$0xff]
  %v1935 = vld [vmem:[%s3 + $0xa38] sm:$0xff]
  %v1936 = vld [vmem:[%s3 + $0xa40] sm:$0xff]
  %v1937 = vld [vmem:[%s3 + $0xa48] sm:$0xff]
  %v1938 = vld [vmem:[%s3 + $0xa50] sm:$0xff]
  %v1939 = vld [vmem:[%s3 + $0xa58] sm:$0xff]
  %v1940 = vld [vmem:[%s3 + $0xa60] sm:$0xff]
  %v1941 = vld [vmem:[%s3 + $0xa68] sm:$0xff]
  %v1942 = vld [vmem:[%s3 + $0xa70] sm:$0xff]
  %v1943 = vld [vmem:[%s3 + $0xa78] sm:$0xff]
  %v1944 = vld [vmem:[%s3 + $0xa80] sm:$0xff]
  %v1945 = vld [vmem:[%s3 + $0xa88] sm:$0xff]
  %v1946 = vld [vmem:[%s3 + $0xa90] sm:$0xff]
  %v1947 = vld [vmem:[%s3 + $0xa98] sm:$0xff]
  %v1948 = vld [vmem:[%s3 + $0xaa0] sm:$0xff]
  %v1949 = vld [vmem:[%s3 + $0xaa8] sm:$0xff]
  %v1950 = vld [vmem:[%s3 + $0xab0] sm:$0xff]
  %v1951 = vld [vmem:[%s3 + $0xab8] sm:$0xff]
  %v1952 = vld [vmem:[%s3 + $0xac0] sm:$0xff]
  %v1953 = vld [vmem:[%s3 + $0xac8] sm:$0xff]
  %v1954 = vld [vmem:[%s3 + $0xad0] sm:$0xff]
  %v1955 = vld [vmem:[%s3 + $0xad8] sm:$0xff]
  %v1956 = vld [vmem:[%s3 + $0xae0] sm:$0xff]
  %v1957 = vld [vmem:[%s3 + $0xae8] sm:$0xff]
  %v1958 = vld [vmem:[%s3 + $0xaf0] sm:$0xff]
  %v1959 = vld [vmem:[%s3 + $0xaf8] sm:$0xff]
  %v1960 = vld [vmem:[%s3 + $0xb00] sm:$0xff]
  %v1961 = vld [vmem:[%s3 + $0xb08] sm:$0xff]
  %v1962 = vld [vmem:[%s3 + $0xb10] sm:$0xff]
  %v1963 = vld [vmem:[%s3 + $0xb18] sm:$0xff]
  %v1964 = vld [vmem:[%s3 + $0xb20] sm:$0xff]
  %v1965 = vld [vmem:[%s3 + $0xb28] sm:$0xff]
  %v1966 = vld [vmem:[%s3 + $0xb30] sm:$0xff]
  %v1967 = vld [vmem:[%s3 + $0xb38] sm:$0xff]
  %v1968 = vld [vmem:[%s3 + $0xb40] sm:$0xff]
  %v1969 = vld [vmem:[%s3 + $0xb48] sm:$0xff]
  %v1970 = vld [vmem:[%s3 + $0xb50] sm:$0xff]
  %v1971 = vld [vmem:[%s3 + $0xb58] sm:$0xff]
  %v1972 = vld [vmem:[%s3 + $0xb60] sm:$0xff]
  %v1973 = vld [vmem:[%s3 + $0xb68] sm:$0xff]
  %v1974 = vld [vmem:[%s3 + $0xb70] sm:$0xff]
  %v1975 = vld [vmem:[%s3 + $0xb78] sm:$0xff]
  %v1976 = vld [vmem:[%s3 + $0xb80] sm:$0xff]
  %v1977 = vld [vmem:[%s3 + $0xb88] sm:$0xff]
  %v1978 = vld [vmem:[%s3 + $0xb90] sm:$0xff]
  %v1979 = vld [vmem:[%s3 + $0xb98] sm:$0xff]
  %v1980 = vld [vmem:[%s3 + $0xba0] sm:$0xff]
  %v1981 = vld [vmem:[%s3 + $0xba8] sm:$0xff]
  %v1982 = vld [vmem:[%s3 + $0xbb0] sm:$0xff]
  %v1983 = vld [vmem:[%s3 + $0xbb8] sm:$0xff]
  %v1984 = vld [vmem:[%s3 + $0xbc0] sm:$0xff]
  %v1985 = vld [vmem:[%s3 + $0xbc8] sm:$0xff]
  %v1986 = vld [vmem:[%s3 + $0xbd0] sm:$0xff]
  %v1987 = vld [vmem:[%s3 + $0xbd8] sm:$0xff]
  %v1988 = vld [vmem:[%s3 + $0xbe0] sm:$0xff]
  %v1989 = vld [vmem:[%s3 + $0xbe8] sm:$0xff]
  %v1990 = vld [vmem:[%s3 + $0xbf0] sm:$0xff]
  %v1991 = vld [vmem:[%s3 + $0xbf8] sm:$0xff]
  %v1992 = vld [vmem:[%s3 + $0xc00] sm:$0xff]
  %v1993 = vld [vmem:[%s3 + $0xc08] sm:$0xff]
  %v1994 = vld [vmem:[%s3 + $0xc10] sm:$0xff]
  %v1995 = vld [vmem:[%s3 + $0xc18] sm:$0xff]
  %v1996 = vld [vmem:[%s3 + $0xc20] sm:$0xff]
  %v1997 = vld [vmem:[%s3 + $0xc28] sm:$0xff]
  %v1998 = vld [vmem:[%s3 + $0xc30] sm:$0xff]
  %v1999 = vld [vmem:[%s3 + $0xc38] sm:$0xff]
  %v2000 = vld [vmem:[%s3 + $0xc40] sm:$0xff]
  %v2001 = vld [vmem:[%s3 + $0xc48] sm:$0xff]
  %v2002 = vld [vmem:[%s3 + $0xc50] sm:$0xff]
  %v2003 = vld [vmem:[%s3 + $0xc58] sm:$0xff]
  %v2004 = vld [vmem:[%s3 + $0xc60] sm:$0xff]
  %v2005 = vld [vmem:[%s3 + $0xc68] sm:$0xff]
  %v2006 = vld [vmem:[%s3 + $0xc70] sm:$0xff]
  %v2007 = vld [vmem:[%s3 + $0xc78] sm:$0xff]
  %v2008 = vld [vmem:[%s3 + $0xc80] sm:$0xff]
  %v2009 = vld [vmem:[%s3 + $0xc88] sm:$0xff]
  %v2010 = vld [vmem:[%s3 + $0xc90] sm:$0xff]
  %v2011 = vld [vmem:[%s3 + $0xc98] sm:$0xff]
  %v2012 = vld [vmem:[%s3 + $0xca0] sm:$0xff]
  %v2013 = vld [vmem:[%s3 + $0xca8] sm:$0xff]
  %v2014 = vld [vmem:[%s3 + $0xcb0] sm:$0xff]
  %v2015 = vld [vmem:[%s3 + $0xcb8] sm:$0xff]
  %v2016 = vld [vmem:[%s3 + $0xcc0] sm:$0xff]
  %v2017 = vld [vmem:[%s3 + $0xcc8] sm:$0xff]
  %v2018 = vld [vmem:[%s3 + $0xcd0] sm:$0xff]
  %v2019 = vld [vmem:[%s3 + $0xcd8] sm:$0xff]
  %v2020 = vld [vmem:[%s3 + $0xce0] sm:$0xff]
  %v2021 = vld [vmem:[%s3 + $0xce8] sm:$0xff]
  %v2022 = vld [vmem:[%s3 + $0xcf0] sm:$0xff]
  %v2023 = vld [vmem:[%s3 + $0xcf8] sm:$0xff]
  %v2024 = vld [vmem:[%s3 + $0xd00] sm:$0xff]
  %v2025 = vld [vmem:[%s3 + $0xd08] sm:$0xff]
  %v2026 = vld [vmem:[%s3 + $0xd10] sm:$0xff]
  %v2027 = vld [vmem:[%s3 + $0xd18] sm:$0xff]
  %v2028 = vld [vmem:[%s3 + $0xd20] sm:$0xff]
  %v2029 = vld [vmem:[%s3 + $0xd28] sm:$0xff]
  %v2030 = vld [vmem:[%s3 + $0xd30] sm:$0xff]
  %v2031 = vld [vmem:[%s3 + $0xd38] sm:$0xff]
  %v2032 = vld [vmem:[%s3 + $0xd40] sm:$0xff]
  %v2033 = vld [vmem:[%s3 + $0xd48] sm:$0xff]
  %v2034 = vld [vmem:[%s3 + $0xd50] sm:$0xff]
  %v2035 = vld [vmem:[%s3 + $0xd58] sm:$0xff]
  %v2036 = vld [vmem:[%s3 + $0xd60] sm:$0xff]
  %v2037 = vld [vmem:[%s3 + $0xd68] sm:$0xff]
  %v2038 = vld [vmem:[%s3 + $0xd70] sm:$0xff]
  %v2039 = vld [vmem:[%s3 + $0xd78] sm:$0xff]
  %v2040 = vld [vmem:[%s3 + $0xd80] sm:$0xff]
  %v2041 = vld [vmem:[%s3 + $0xd88] sm:$0xff]
  %v2042 = vld [vmem:[%s3 + $0xd90] sm:$0xff]
  %v2043 = vld [vmem:[%s3 + $0xd98] sm:$0xff]
  %v2044 = vld [vmem:[%s3 + $0xda0] sm:$0xff]
  %v2045 = vld [vmem:[%s3 + $0xda8] sm:$0xff]
  %v2046 = vld [vmem:[%s3 + $0xdb0] sm:$0xff]
  %v2047 = vld [vmem:[%s3 + $0xdb8] sm:$0xff]
  %v2048 = vld [vmem:[%s3 + $0xdc0] sm:$0xff]
  %v2049 = vld [vmem:[%s3 + $0xdc8] sm:$0xff]
  %v2050 = vld [vmem:[%s3 + $0xdd0] sm:$0xff]
  %v2051 = vld [vmem:[%s3 + $0xdd8] sm:$0xff]
  %v2052 = vld [vmem:[%s3 + $0xde0] sm:$0xff]
  %v2053 = vld [vmem:[%s3 + $0xde8] sm:$0xff]
  %v2054 = vld [vmem:[%s3 + $0xdf0] sm:$0xff]
  %v2055 = vld [vmem:[%s3 + $0xdf8] sm:$0xff]
  %v2056 = vld [vmem:[%s3 + $0xe00] sm:$0xff]
  %v2057 = vld [vmem:[%s3 + $0xe08] sm:$0xff]
  %v2058 = vld [vmem:[%s3 + $0xe10] sm:$0xff]
  %v2059 = vld [vmem:[%s3 + $0xe18] sm:$0xff]
  %v2060 = vld [vmem:[%s3 + $0xe20] sm:$0xff]
  %v2061 = vld [vmem:[%s3 + $0xe28] sm:$0xff]
  %v2062 = vld [vmem:[%s3 + $0xe30] sm:$0xff]
  %v2063 = vld [vmem:[%s3 + $0xe38] sm:$0xff]
  %v2064 = vld [vmem:[%s3 + $0xe40] sm:$0xff]
  %v2065 = vld [vmem:[%s3 + $0xe48] sm:$0xff]
  %v2066 = vld [vmem:[%s3 + $0xe50] sm:$0xff]
  %v2067 = vld [vmem:[%s3 + $0xe58] sm:$0xff]
  %v2068 = vld [vmem:[%s3 + $0xe60] sm:$0xff]
  %v2069 = vld [vmem:[%s3 + $0xe68] sm:$0xff]
  %v2070 = vld [vmem:[%s3 + $0xe70] sm:$0xff]
  %v2071 = vld [vmem:[%s3 + $0xe78] sm:$0xff]
  %v2072 = vld [vmem:[%s3 + $0xe80] sm:$0xff]
  %v2073 = vld [vmem:[%s3 + $0xe88] sm:$0xff]
  %v2074 = vld [vmem:[%s3 + $0xe90] sm:$0xff]
  %v2075 = vld [vmem:[%s3 + $0xe98] sm:$0xff]
  %v2076 = vld [vmem:[%s3 + $0xea0] sm:$0xff]
  %v2077 = vld [vmem:[%s3 + $0xea8] sm:$0xff]
  %v2078 = vld [vmem:[%s3 + $0xeb0] sm:$0xff]
  %v2079 = vld [vmem:[%s3 + $0xeb8] sm:$0xff]
  %v2080 = vld [vmem:[%s3 + $0xec0] sm:$0xff]
  %v2081 = vld [vmem:[%s3 + $0xec8] sm:$0xff]
  %v2082 = vld [vmem:[%s3 + $0xed0] sm:$0xff]
  %v2083 = vld [vmem:[%s3 + $0xed8] sm:$0xff]
  %v2084 = vld [vmem:[%s3 + $0xee0] sm:$0xff]
  %v2085 = vld [vmem:[%s3 + $0xee8] sm:$0xff]
  %v2086 = vld [vmem:[%s3 + $0xef0] sm:$0xff]
  %v2087 = vld [vmem:[%s3 + $0xef8] sm:$0xff]
  %v2088 = vld [vmem:[%s3 + $0xf00] sm:$0xff]
  %v2089 = vld [vmem:[%s3 + $0xf08] sm:$0xff]
  %v2090 = vld [vmem:[%s3 + $0xf10] sm:$0xff]
  %v2091 = vld [vmem:[%s3 + $0xf18] sm:$0xff]
  %v2092 = vld [vmem:[%s3 + $0xf20] sm:$0xff]
  %v2093 = vld [vmem:[%s3 + $0xf28] sm:$0xff]
  %v2094 = vld [vmem:[%s3 + $0xf30] sm:$0xff]
  %v2095 = vld [vmem:[%s3 + $0xf38] sm:$0xff]
  %v2096 = vld [vmem:[%s3 + $0xf40] sm:$0xff]
  %v2097 = vld [vmem:[%s3 + $0xf48] sm:$0xff]
  %v2098 = vld [vmem:[%s3 + $0xf50] sm:$0xff]
  %v2099 = vld [vmem:[%s3 + $0xf58] sm:$0xff]
  %v2100 = vld [vmem:[%s3 + $0xf60] sm:$0xff]
  %v2101 = vld [vmem:[%s3 + $0xf68] sm:$0xff]
  %v2102 = vld [vmem:[%s3 + $0xf70] sm:$0xff]
  %v2103 = vld [vmem:[%s3 + $0xf78] sm:$0xff]
  %v2104 = vld [vmem:[%s3 + $0xf80] sm:$0xff]
  %v2105 = vld [vmem:[%s3 + $0xf88] sm:$0xff]
  %v2106 = vld [vmem:[%s3 + $0xf90] sm:$0xff]
  %v2107 = vld [vmem:[%s3 + $0xf98] sm:$0xff]
  %v2108 = vld [vmem:[%s3 + $0xfa0] sm:$0xff]
  %v2109 = vld [vmem:[%s3 + $0xfa8] sm:$0xff]
  %v2110 = vld [vmem:[%s3 + $0xfb0] sm:$0xff]
  %v2111 = vld [vmem:[%s3 + $0xfb8] sm:$0xff]
  %v2112 = vld [vmem:[%s3 + $0xfc0] sm:$0xff]
  %v2113 = vld [vmem:[%s3 + $0xfc8] sm:$0xff]
  %v2114 = vld [vmem:[%s3 + $0xfd0] sm:$0xff]
  %v2115 = vld [vmem:[%s3 + $0xfd8] sm:$0xff]
  %v2116 = vld [vmem:[%s3 + $0xfe0] sm:$0xff]
  %v2117 = vld [vmem:[%s3 + $0xfe8] sm:$0xff]
  %v2118 = vld [vmem:[%s3 + $0xff0] sm:$0xff]
  %v2119 = vld [vmem:[%s3 + $0xff8] sm:$0xff]
  %v2120 = vld [vmem:[%s3 + $0x1000] sm:$0xff]
  %v2121 = vld [vmem:[%s3 + $0x1008] sm:$0xff]
  %v2122 = vld [vmem:[%s3 + $0x1010] sm:$0xff]
  %v2123 = vld [vmem:[%s3 + $0x1018] sm:$0xff]
  %v2124 = vld [vmem:[%s3 + $0x1020] sm:$0xff]
  %v2125 = vld [vmem:[%s3 + $0x1028] sm:$0xff]
  %v2126 = vld [vmem:[%s3 + $0x1030] sm:$0xff]
  %v2127 = vld [vmem:[%s3 + $0x1038] sm:$0xff]
  %v2128 = vld [vmem:[%s3 + $0x1040] sm:$0xff]
  %v2129 = vld [vmem:[%s3 + $0x1048] sm:$0xff]
  %v2130 = vld [vmem:[%s3 + $0x1050] sm:$0xff]
  %v2131 = vld [vmem:[%s3 + $0x1058] sm:$0xff]
  %v2132 = vld [vmem:[%s3 + $0x1060] sm:$0xff]
  %v2133 = vld [vmem:[%s3 + $0x1068] sm:$0xff]
  %v2134 = vld [vmem:[%s3 + $0x1070] sm:$0xff]
  %v2135 = vld [vmem:[%s3 + $0x1078] sm:$0xff]
  %v2136 = vld [vmem:[%s3 + $0x1080] sm:$0xff]
  %v2137 = vld [vmem:[%s3 + $0x1088] sm:$0xff]
  %v2138 = vld [vmem:[%s3 + $0x1090] sm:$0xff]
  %v2139 = vld [vmem:[%s3 + $0x1098] sm:$0xff]
  %v2140 = vld [vmem:[%s3 + $0x10a0] sm:$0xff]
  %v2141 = vld [vmem:[%s3 + $0x10a8] sm:$0xff]
  %v2142 = vld [vmem:[%s3 + $0x10b0] sm:$0xff]
  %v2143 = vld [vmem:[%s3 + $0x10b8] sm:$0xff]
  %v2144 = vld [vmem:[%s3 + $0x10c0] sm:$0xff]
  %v2145 = vld [vmem:[%s3 + $0x10c8] sm:$0xff]
  %v2146 = vld [vmem:[%s3 + $0x10d0] sm:$0xff]
  %v2147 = vld [vmem:[%s3 + $0x10d8] sm:$0xff]
  %v2148 = vld [vmem:[%s3 + $0x10e0] sm:$0xff]
  %v2149 = vld [vmem:[%s3 + $0x10e8] sm:$0xff]
  %v2150 = vld [vmem:[%s3 + $0x10f0] sm:$0xff]
  %v2151 = vld [vmem:[%s3 + $0x10f8] sm:$0xff]
  %v2152 = vld [vmem:[%s3 + $0x1100] sm:$0xff]
  %v2153 = vld [vmem:[%s3 + $0x1108] sm:$0xff]
  %v2154 = vld [vmem:[%s3 + $0x1110] sm:$0xff]
  %v2155 = vld [vmem:[%s3 + $0x1118] sm:$0xff]
  %v2156 = vld [vmem:[%s3 + $0x1120] sm:$0xff]
  %v2157 = vld [vmem:[%s3 + $0x1128] sm:$0xff]
  %v2158 = vld [vmem:[%s3 + $0x1130] sm:$0xff]
  %v2159 = vld [vmem:[%s3 + $0x1138] sm:$0xff]
  %v2160 = vld [vmem:[%s3 + $0x1140] sm:$0xff]
  %v2161 = vld [vmem:[%s3 + $0x1148] sm:$0xff]
  %v2162 = vld [vmem:[%s3 + $0x1150] sm:$0xff]
  %v2163 = vld [vmem:[%s3 + $0x1158] sm:$0xff]
  %v2164 = vld [vmem:[%s3 + $0x1160] sm:$0xff]
  %v2165 = vld [vmem:[%s3 + $0x1168] sm:$0xff]
  %v2166 = vld [vmem:[%s3 + $0x1170] sm:$0xff]
  %v2167 = vld [vmem:[%s3 + $0x1178] sm:$0xff]
  %v2168 = vld [vmem:[%s3 + $0x1180] sm:$0xff]
  %v2169 = vld [vmem:[%s3 + $0x1188] sm:$0xff]
  %v2170 = vld [vmem:[%s3 + $0x1190] sm:$0xff]
  %v2171 = vld [vmem:[%s3 + $0x1198] sm:$0xff]
  %v2172 = vld [vmem:[%s3 + $0x11a0] sm:$0xff]
  %v2173 = vld [vmem:[%s3 + $0x11a8] sm:$0xff]
  %v2174 = vld [vmem:[%s3 + $0x11b0] sm:$0xff]
  %v2175 = vld [vmem:[%s3 + $0x11b8] sm:$0xff]
  %v2176 = vld [vmem:[%s3 + $0x11c0] sm:$0xff]
  %v2177 = vld [vmem:[%s3 + $0x11c8] sm:$0xff]
  %v2178 = vld [vmem:[%s3 + $0x11d0] sm:$0xff]
  %v2179 = vld [vmem:[%s3 + $0x11d8] sm:$0xff]
  %v2180 = vld [vmem:[%s3 + $0x11e0] sm:$0xff]
  %v2181 = vld [vmem:[%s3 + $0x11e8] sm:$0xff]
  %v2182 = vld [vmem:[%s3 + $0x11f0] sm:$0xff]
  %v2183 = vld [vmem:[%s3 + $0x11f8] sm:$0xff]
  %v2184 = vld [vmem:[%s3 + $0x1200] sm:$0xff]
  %v2185 = vld [vmem:[%s3 + $0x1208] sm:$0xff]
  %v2186 = vld [vmem:[%s3 + $0x1210] sm:$0xff]
  %v2187 = vld [vmem:[%s3 + $0x1218] sm:$0xff]
  %v2188 = vld [vmem:[%s3 + $0x1220] sm:$0xff]
  %v2189 = vld [vmem:[%s3 + $0x1228] sm:$0xff]
  %v2190 = vld [vmem:[%s3 + $0x1230] sm:$0xff]
  %v2191 = vld [vmem:[%s3 + $0x1238] sm:$0xff]
  %v2192 = vld [vmem:[%s3 + $0x1240] sm:$0xff]
  %v2193 = vld [vmem:[%s3 + $0x1248] sm:$0xff]
  %v2194 = vld [vmem:[%s3 + $0x1250] sm:$0xff]
  %v2195 = vld [vmem:[%s3 + $0x1258] sm:$0xff]
  %v2196 = vld [vmem:[%s3 + $0x1260] sm:$0xff]
  %v2197 = vld [vmem:[%s3 + $0x1268] sm:$0xff]
  %v2198 = vld [vmem:[%s3 + $0x1270] sm:$0xff]
  %v2199 = vld [vmem:[%s3 + $0x1278] sm:$0xff]
  %v2200 = vld [vmem:[%s3 + $0x1280] sm:$0xff]
  %v2201 = vld [vmem:[%s3 + $0x1288] sm:$0xff]
  %v2202 = vld [vmem:[%s3 + $0x1290] sm:$0xff]
  %v2203 = vld [vmem:[%s3 + $0x1298] sm:$0xff]
  %v2204 = vld [vmem:[%s3 + $0x12a0] sm:$0xff]
  %v2205 = vld [vmem:[%s3 + $0x12a8] sm:$0xff]
  %v2206 = vld [vmem:[%s3 + $0x12b0] sm:$0xff]
  %v2207 = vld [vmem:[%s3 + $0x12b8] sm:$0xff]
  %v2208 = vld [vmem:[%s3 + $0x12c0] sm:$0xff]
  %v2209 = vld [vmem:[%s3 + $0x12c8] sm:$0xff]
  %v2210 = vld [vmem:[%s3 + $0x12d0] sm:$0xff]
  %v2211 = vld [vmem:[%s3 + $0x12d8] sm:$0xff]
  %v2212 = vld [vmem:[%s3 + $0x12e0] sm:$0xff]
  %v2213 = vld [vmem:[%s3 + $0x12e8] sm:$0xff]
  %v2214 = vld [vmem:[%s3 + $0x12f0] sm:$0xff]
  %v2215 = vld [vmem:[%s3 + $0x12f8] sm:$0xff]
  %v2216 = vld [vmem:[%s3 + $0x1300] sm:$0xff]
  %v2217 = vld [vmem:[%s3 + $0x1308] sm:$0xff]
  %v2218 = vld [vmem:[%s3 + $0x1310] sm:$0xff]
  %v2219 = vld [vmem:[%s3 + $0x1318] sm:$0xff]
  %v2220 = vld [vmem:[%s3 + $0x1320] sm:$0xff]
  %v2221 = vld [vmem:[%s3 + $0x1328] sm:$0xff]
  %v2222 = vld [vmem:[%s3 + $0x1330] sm:$0xff]
  %v2223 = vld [vmem:[%s3 + $0x1338] sm:$0xff]
  %v2224 = vld [vmem:[%s3 + $0x1340] sm:$0xff]
  %v2225 = vld [vmem:[%s3 + $0x1348] sm:$0xff]
  %v2226 = vld [vmem:[%s3 + $0x1350] sm:$0xff]
  %v2227 = vld [vmem:[%s3 + $0x1358] sm:$0xff]
  %v2228 = vld [vmem:[%s3 + $0x1360] sm:$0xff]
  %v2229 = vld [vmem:[%s3 + $0x1368] sm:$0xff]
  %v2230 = vld [vmem:[%s3 + $0x1370] sm:$0xff]
  %v2231 = vld [vmem:[%s3 + $0x1378] sm:$0xff]
  %v2232 = vld [vmem:[%s3 + $0x1380] sm:$0xff]
  %v2233 = vld [vmem:[%s3 + $0x1388] sm:$0xff]
  %v2234 = vld [vmem:[%s3 + $0x1390] sm:$0xff]
  %v2235 = vld [vmem:[%s3 + $0x1398] sm:$0xff]
  %v2236 = vld [vmem:[%s3 + $0x13a0] sm:$0xff]
  %v2237 = vld [vmem:[%s3 + $0x13a8] sm:$0xff]
  %v2238 = vld [vmem:[%s3 + $0x13b0] sm:$0xff]
  %v2239 = vld [vmem:[%s3 + $0x13b8] sm:$0xff]
  %v2240 = vld [vmem:[%s3 + $0x13c0] sm:$0xff]
  %v2241 = vld [vmem:[%s3 + $0x13c8] sm:$0xff]
  %v2242 = vld [vmem:[%s3 + $0x13d0] sm:$0xff]
  %v2243 = vld [vmem:[%s3 + $0x13d8] sm:$0xff]
  %v2244 = vld [vmem:[%s3 + $0x13e0] sm:$0xff]
  %v2245 = vld [vmem:[%s3 + $0x13e8] sm:$0xff]
  %v2246 = vld [vmem:[%s3 + $0x13f0] sm:$0xff]
  %v2247 = vld [vmem:[%s3 + $0x13f8] sm:$0xff]
  %v2248 = vld [vmem:[%s3 + $0x1400] sm:$0xff]
  %v2249 = vld [vmem:[%s3 + $0x1408] sm:$0xff]
  %v2250 = vld [vmem:[%s3 + $0x1410] sm:$0xff]
  %v2251 = vld [vmem:[%s3 + $0x1418] sm:$0xff]
  %v2252 = vld [vmem:[%s3 + $0x1420] sm:$0xff]
  %v2253 = vld [vmem:[%s3 + $0x1428] sm:$0xff]
  %v2254 = vld [vmem:[%s3 + $0x1430] sm:$0xff]
  %v2255 = vld [vmem:[%s3 + $0x1438] sm:$0xff]
  %v2256 = vld [vmem:[%s3 + $0x1440] sm:$0xff]
  %v2257 = vld [vmem:[%s3 + $0x1448] sm:$0xff]
  %v2258 = vld [vmem:[%s3 + $0x1450] sm:$0xff]
  %v2259 = vld [vmem:[%s3 + $0x1458] sm:$0xff]
  %v2260 = vld [vmem:[%s3 + $0x1460] sm:$0xff]
  %v2261 = vld [vmem:[%s3 + $0x1468] sm:$0xff]
  %v2262 = vld [vmem:[%s3 + $0x1470] sm:$0xff]
  %v2263 = vld [vmem:[%s3 + $0x1478] sm:$0xff]
  %v2264 = vld [vmem:[%s3 + $0x1480] sm:$0xff]
  %v2265 = vld [vmem:[%s3 + $0x1488] sm:$0xff]
  %v2266 = vld [vmem:[%s3 + $0x1490] sm:$0xff]
  %v2267 = vld [vmem:[%s3 + $0x1498] sm:$0xff]
  %v2268 = vld [vmem:[%s3 + $0x14a0] sm:$0xff]
  %v2269 = vld [vmem:[%s3 + $0x14a8] sm:$0xff]
  %v2270 = vld [vmem:[%s3 + $0x14b0] sm:$0xff]
  %v2271 = vld [vmem:[%s3 + $0x14b8] sm:$0xff]
  %v2272 = vld [vmem:[%s3 + $0x14c0] sm:$0xff]
  %v2273 = vld [vmem:[%s3 + $0x14c8] sm:$0xff]
  %v2274 = vld [vmem:[%s3 + $0x14d0] sm:$0xff]
  %v2275 = vld [vmem:[%s3 + $0x14d8] sm:$0xff]
  %v2276 = vld [vmem:[%s3 + $0x14e0] sm:$0xff]
  %v2277 = vld [vmem:[%s3 + $0x14e8] sm:$0xff]
  %v2278 = vld [vmem:[%s3 + $0x14f0] sm:$0xff]
  %v2279 = vld [vmem:[%s3 + $0x14f8] sm:$0xff]
  %v2280 = vld [vmem:[%s4] sm:$0x3]
  %v2282 = vperm.slane %v2280, 0
  %v2283 = vperm.slane %v2280, 1
  %2286 = vmatpush.msra.mxu0 %v1638
  %2287 = vmatpush.msra.mxu0 %v1636
  %2288 = vmatpush.msra.mxu0 %v1634
  %2289 = vmatpush.msra.mxu0 %v1632
  %2290 = vmatpush.msra.mxu0 %v1630
  %2291 = vmatpush.msra.mxu0 %v1628
  %2292 = vmatpush.msra.mxu0 %v1626
  %2293 = vmatpush.msra.mxu0 %v1624
  %2294 = vmatpush.msra.mxu0 %v1622
  %2295 = vmatpush.msra.mxu0 %v1620
  %2296 = vmatpush.msra.mxu0 %v1618
  %2297 = vmatpush.msra.mxu0 %v1616
  %2298 = vmatpush.msra.mxu0 %v1614
  %2299 = vmatpush.msra.mxu0 %v1612
  %2300 = vmatpush.msra.mxu0 %v1610
  %2301 = vmatpush.msra.mxu0 %v1608
  %2302 = vmatmul.f32.gmra.mxu0 %v1524
  %v2303 = vpop.f32.mrf.mxu0
  %v2304 = vadd.f32 %v2282, %v2303
  %2305 = vmatmul.f32.gmra.mxu0 %v1545
  %v2306 = vpop.f32.mrf.mxu0
  %v2307 = vadd.f32 %v2282, %v2306
  %2308 = vmatmul.f32.gmra.mxu0 %v1566
  %v2309 = vpop.f32.mrf.mxu0
  %v2310 = vadd.f32 %v2282, %v2309
  %2311 = vmatmul.f32.gmra.mxu0 %v1587
  %v2312 = vpop.f32.mrf.mxu0
  %v2313 = vadd.f32 %v2282, %v2312
  %2314 = vdwg.mxu0
  %2315 = vmatpush.msra.mxu0 %v1670
  %2316 = vmatpush.msra.mxu0 %v1668
  %2317 = vmatpush.msra.mxu0 %v1666
  %2318 = vmatpush.msra.mxu0 %v1664
  %2319 = vmatpush.msra.mxu0 %v1662
  %2320 = vmatpush.msra.mxu0 %v1660
  %2321 = vmatpush.msra.mxu0 %v1658
  %2322 = vmatpush.msra.mxu0 %v1656
  %2323 = vmatpush.msra.mxu0 %v1654
  %2324 = vmatpush.msra.mxu0 %v1652
  %2325 = vmatpush.msra.mxu0 %v1650
  %2326 = vmatpush.msra.mxu0 %v1648
  %2327 = vmatpush.msra.mxu0 %v1646
  %2328 = vmatpush.msra.mxu0 %v1644
  %2329 = vmatpush.msra.mxu0 %v1642
  %2330 = vmatpush.msra.mxu0 %v1640
  %2331 = vmatmul.f32.gmra.mxu0 %v1525
  %v2332 = vpop.f32.mrf.mxu0
  %v2333 = vadd.f32 %v2304, %v2332
  %2334 = vmatmul.f32.gmra.mxu0 %v1546
  %v2335 = vpop.f32.mrf.mxu0
  %v2336 = vadd.f32 %v2307, %v2335
  %2337 = vmatmul.f32.gmra.mxu0 %v1567
  %v2338 = vpop.f32.mrf.mxu0
  %v2339 = vadd.f32 %v2310, %v2338
  %2340 = vmatmul.f32.gmra.mxu0 %v1588
  %v2341 = vpop.f32.mrf.mxu0
  %v2342 = vadd.f32 %v2313, %v2341
  %2343 = vdwg.mxu0
  %2344 = vmatpush.msra.mxu0 %v1702
  %2345 = vmatpush.msra.mxu0 %v1700
  %2346 = vmatpush.msra.mxu0 %v1698
  %2347 = vmatpush.msra.mxu0 %v1696
  %2348 = vmatpush.msra.mxu0 %v1694
  %2349 = vmatpush.msra.mxu0 %v1692
  %2350 = vmatpush.msra.mxu0 %v1690
  %2351 = vmatpush.msra.mxu0 %v1688
  %2352 = vmatpush.msra.mxu0 %v1686
  %2353 = vmatpush.msra.mxu0 %v1684
  %2354 = vmatpush.msra.mxu0 %v1682
  %2355 = vmatpush.msra.mxu0 %v1680
  %2356 = vmatpush.msra.mxu0 %v1678
  %2357 = vmatpush.msra.mxu0 %v1676
  %2358 = vmatpush.msra.mxu0 %v1674
  %2359 = vmatpush.msra.mxu0 %v1672
  %2360 = vmatmul.f32.gmra.mxu0 %v1526
  %v2361 = vpop.f32.mrf.mxu0
  %v2362 = vadd.f32 %v2333, %v2361
  %2363 = vmatmul.f32.gmra.mxu0 %v1547
  %v2364 = vpop.f32.mrf.mxu0
  %v2365 = vadd.f32 %v2336, %v2364
  %2366 = vmatmul.f32.gmra.mxu0 %v1568
  %v2367 = vpop.f32.mrf.mxu0
  %v2368 = vadd.f32 %v2339, %v2367
  %2369 = vmatmul.f32.gmra.mxu0 %v1589
  %v2370 = vpop.f32.mrf.mxu0
  %v2371 = vadd.f32 %v2342, %v2370
  %2372 = vdwg.mxu0
  %2373 = vmatpush.msra.mxu0 %v1734
  %2374 = vmatpush.msra.mxu0 %v1732
  %2375 = vmatpush.msra.mxu0 %v1730
  %2376 = vmatpush.msra.mxu0 %v1728
  %2377 = vmatpush.msra.mxu0 %v1726
  %2378 = vmatpush.msra.mxu0 %v1724
  %2379 = vmatpush.msra.mxu0 %v1722
  %2380 = vmatpush.msra.mxu0 %v1720
  %2381 = vmatpush.msra.mxu0 %v1718
  %2382 = vmatpush.msra.mxu0 %v1716
  %2383 = vmatpush.msra.mxu0 %v1714
  %2384 = vmatpush.msra.mxu0 %v1712
  %2385 = vmatpush.msra.mxu0 %v1710
  %2386 = vmatpush.msra.mxu0 %v1708
  %2387 = vmatpush.msra.mxu0 %v1706
  %2388 = vmatpush.msra.mxu0 %v1704
  %2389 = vmatmul.f32.gmra.mxu0 %v1527
  %v2390 = vpop.f32.mrf.mxu0
  %v2391 = vadd.f32 %v2362, %v2390
  %2392 = vmatmul.f32.gmra.mxu0 %v1548
  %v2393 = vpop.f32.mrf.mxu0
  %v2394 = vadd.f32 %v2365, %v2393
  %2395 = vmatmul.f32.gmra.mxu0 %v1569
  %v2396 = vpop.f32.mrf.mxu0
  %v2397 = vadd.f32 %v2368, %v2396
  %2398 = vmatmul.f32.gmra.mxu0 %v1590
  %v2399 = vpop.f32.mrf.mxu0
  %v2400 = vadd.f32 %v2371, %v2399
  %2401 = vdwg.mxu0
  %2402 = vmatpush.msra.mxu0 %v1766
  %2403 = vmatpush.msra.mxu0 %v1764
  %2404 = vmatpush.msra.mxu0 %v1762
  %2405 = vmatpush.msra.mxu0 %v1760
  %2406 = vmatpush.msra.mxu0 %v1758
  %2407 = vmatpush.msra.mxu0 %v1756
  %2408 = vmatpush.msra.mxu0 %v1754
  %2409 = vmatpush.msra.mxu0 %v1752
  %2410 = vmatpush.msra.mxu0 %v1750
  %2411 = vmatpush.msra.mxu0 %v1748
  %2412 = vmatpush.msra.mxu0 %v1746
  %2413 = vmatpush.msra.mxu0 %v1744
  %2414 = vmatpush.msra.mxu0 %v1742
  %2415 = vmatpush.msra.mxu0 %v1740
  %2416 = vmatpush.msra.mxu0 %v1738
  %2417 = vmatpush.msra.mxu0 %v1736
  %2418 = vmatmul.f32.gmra.mxu0 %v1528
  %v2419 = vpop.f32.mrf.mxu0
  %v2420 = vadd.f32 %v2391, %v2419
  %2421 = vmatmul.f32.gmra.mxu0 %v1549
  %v2422 = vpop.f32.mrf.mxu0
  %v2423 = vadd.f32 %v2394, %v2422
  %2424 = vmatmul.f32.gmra.mxu0 %v1570
  %v2425 = vpop.f32.mrf.mxu0
  %v2426 = vadd.f32 %v2397, %v2425
  %2427 = vmatmul.f32.gmra.mxu0 %v1591
  %v2428 = vpop.f32.mrf.mxu0
  %v2429 = vadd.f32 %v2400, %v2428
  %2430 = vdwg.mxu0
  %2431 = vmatpush.msra.mxu0 %v1798
  %2432 = vmatpush.msra.mxu0 %v1796
  %2433 = vmatpush.msra.mxu0 %v1794
  %2434 = vmatpush.msra.mxu0 %v1792
  %2435 = vmatpush.msra.mxu0 %v1790
  %2436 = vmatpush.msra.mxu0 %v1788
  %2437 = vmatpush.msra.mxu0 %v1786
  %2438 = vmatpush.msra.mxu0 %v1784
  %2439 = vmatpush.msra.mxu0 %v1782
  %2440 = vmatpush.msra.mxu0 %v1780
  %2441 = vmatpush.msra.mxu0 %v1778
  %2442 = vmatpush.msra.mxu0 %v1776
  %2443 = vmatpush.msra.mxu0 %v1774
  %2444 = vmatpush.msra.mxu0 %v1772
  %2445 = vmatpush.msra.mxu0 %v1770
  %2446 = vmatpush.msra.mxu0 %v1768
  %2447 = vmatmul.f32.gmra.mxu0 %v1529
  %v2448 = vpop.f32.mrf.mxu0
  %v2449 = vadd.f32 %v2420, %v2448
  %2450 = vmatmul.f32.gmra.mxu0 %v1550
  %v2451 = vpop.f32.mrf.mxu0
  %v2452 = vadd.f32 %v2423, %v2451
  %2453 = vmatmul.f32.gmra.mxu0 %v1571
  %v2454 = vpop.f32.mrf.mxu0
  %v2455 = vadd.f32 %v2426, %v2454
  %2456 = vmatmul.f32.gmra.mxu0 %v1592
  %v2457 = vpop.f32.mrf.mxu0
  %v2458 = vadd.f32 %v2429, %v2457
  %2459 = vdwg.mxu0
  %2460 = vmatpush.msra.mxu0 %v1830
  %2461 = vmatpush.msra.mxu0 %v1828
  %2462 = vmatpush.msra.mxu0 %v1826
  %2463 = vmatpush.msra.mxu0 %v1824
  %2464 = vmatpush.msra.mxu0 %v1822
  %2465 = vmatpush.msra.mxu0 %v1820
  %2466 = vmatpush.msra.mxu0 %v1818
  %2467 = vmatpush.msra.mxu0 %v1816
  %2468 = vmatpush.msra.mxu0 %v1814
  %2469 = vmatpush.msra.mxu0 %v1812
  %2470 = vmatpush.msra.mxu0 %v1810
  %2471 = vmatpush.msra.mxu0 %v1808
  %2472 = vmatpush.msra.mxu0 %v1806
  %2473 = vmatpush.msra.mxu0 %v1804
  %2474 = vmatpush.msra.mxu0 %v1802
  %2475 = vmatpush.msra.mxu0 %v1800
  %2476 = vmatmul.f32.gmra.mxu0 %v1530
  %v2477 = vpop.f32.mrf.mxu0
  %v2478 = vadd.f32 %v2449, %v2477
  %2479 = vmatmul.f32.gmra.mxu0 %v1551
  %v2480 = vpop.f32.mrf.mxu0
  %v2481 = vadd.f32 %v2452, %v2480
  %2482 = vmatmul.f32.gmra.mxu0 %v1572
  %v2483 = vpop.f32.mrf.mxu0
  %v2484 = vadd.f32 %v2455, %v2483
  %2485 = vmatmul.f32.gmra.mxu0 %v1593
  %v2486 = vpop.f32.mrf.mxu0
  %v2487 = vadd.f32 %v2458, %v2486
  %2488 = vdwg.mxu0
  %2489 = vmatpush.msra.mxu0 %v1862
  %2490 = vmatpush.msra.mxu0 %v1860
  %2491 = vmatpush.msra.mxu0 %v1858
  %2492 = vmatpush.msra.mxu0 %v1856
  %2493 = vmatpush.msra.mxu0 %v1854
  %2494 = vmatpush.msra.mxu0 %v1852
  %2495 = vmatpush.msra.mxu0 %v1850
  %2496 = vmatpush.msra.mxu0 %v1848
  %2497 = vmatpush.msra.mxu0 %v1846
  %2498 = vmatpush.msra.mxu0 %v1844
  %2499 = vmatpush.msra.mxu0 %v1842
  %2500 = vmatpush.msra.mxu0 %v1840
  %2501 = vmatpush.msra.mxu0 %v1838
  %2502 = vmatpush.msra.mxu0 %v1836
  %2503 = vmatpush.msra.mxu0 %v1834
  %2504 = vmatpush.msra.mxu0 %v1832
  %2505 = vmatmul.f32.gmra.mxu0 %v1531
  %v2506 = vpop.f32.mrf.mxu0
  %v2507 = vadd.f32 %v2478, %v2506
  %2508 = vmatmul.f32.gmra.mxu0 %v1552
  %v2509 = vpop.f32.mrf.mxu0
  %v2510 = vadd.f32 %v2481, %v2509
  %2511 = vmatmul.f32.gmra.mxu0 %v1573
  %v2512 = vpop.f32.mrf.mxu0
  %v2513 = vadd.f32 %v2484, %v2512
  %2514 = vmatmul.f32.gmra.mxu0 %v1594
  %v2515 = vpop.f32.mrf.mxu0
  %v2516 = vadd.f32 %v2487, %v2515
  %2517 = vdwg.mxu0
  %2518 = vmatpush.msra.mxu0 %v1894
  %2519 = vmatpush.msra.mxu0 %v1892
  %2520 = vmatpush.msra.mxu0 %v1890
  %2521 = vmatpush.msra.mxu0 %v1888
  %2522 = vmatpush.msra.mxu0 %v1886
  %2523 = vmatpush.msra.mxu0 %v1884
  %2524 = vmatpush.msra.mxu0 %v1882
  %2525 = vmatpush.msra.mxu0 %v1880
  %2526 = vmatpush.msra.mxu0 %v1878
  %2527 = vmatpush.msra.mxu0 %v1876
  %2528 = vmatpush.msra.mxu0 %v1874
  %2529 = vmatpush.msra.mxu0 %v1872
  %2530 = vmatpush.msra.mxu0 %v1870
  %2531 = vmatpush.msra.mxu0 %v1868
  %2532 = vmatpush.msra.mxu0 %v1866
  %2533 = vmatpush.msra.mxu0 %v1864
  %2534 = vmatmul.f32.gmra.mxu0 %v1532
  %v2535 = vpop.f32.mrf.mxu0
  %v2536 = vadd.f32 %v2507, %v2535
  %2537 = vmatmul.f32.gmra.mxu0 %v1553
  %v2538 = vpop.f32.mrf.mxu0
  %v2539 = vadd.f32 %v2510, %v2538
  %2540 = vmatmul.f32.gmra.mxu0 %v1574
  %v2541 = vpop.f32.mrf.mxu0
  %v2542 = vadd.f32 %v2513, %v2541
  %2543 = vmatmul.f32.gmra.mxu0 %v1595
  %v2544 = vpop.f32.mrf.mxu0
  %v2545 = vadd.f32 %v2516, %v2544
  %2546 = vdwg.mxu0
  %2547 = vmatpush.msra.mxu0 %v1926
  %2548 = vmatpush.msra.mxu0 %v1924
  %2549 = vmatpush.msra.mxu0 %v1922
  %2550 = vmatpush.msra.mxu0 %v1920
  %2551 = vmatpush.msra.mxu0 %v1918
  %2552 = vmatpush.msra.mxu0 %v1916
  %2553 = vmatpush.msra.mxu0 %v1914
  %2554 = vmatpush.msra.mxu0 %v1912
  %2555 = vmatpush.msra.mxu0 %v1910
  %2556 = vmatpush.msra.mxu0 %v1908
  %2557 = vmatpush.msra.mxu0 %v1906
  %2558 = vmatpush.msra.mxu0 %v1904
  %2559 = vmatpush.msra.mxu0 %v1902
  %2560 = vmatpush.msra.mxu0 %v1900
  %2561 = vmatpush.msra.mxu0 %v1898
  %2562 = vmatpush.msra.mxu0 %v1896
  %2563 = vmatmul.f32.gmra.mxu0 %v1533
  %v2564 = vpop.f32.mrf.mxu0
  %v2565 = vadd.f32 %v2536, %v2564
  %2566 = vmatmul.f32.gmra.mxu0 %v1554
  %v2567 = vpop.f32.mrf.mxu0
  %v2568 = vadd.f32 %v2539, %v2567
  %2569 = vmatmul.f32.gmra.mxu0 %v1575
  %v2570 = vpop.f32.mrf.mxu0
  %v2571 = vadd.f32 %v2542, %v2570
  %2572 = vmatmul.f32.gmra.mxu0 %v1596
  %v2573 = vpop.f32.mrf.mxu0
  %v2574 = vadd.f32 %v2545, %v2573
  %2575 = vdwg.mxu0
  %2576 = vmatpush.msra.mxu0 %v1958
  %2577 = vmatpush.msra.mxu0 %v1956
  %2578 = vmatpush.msra.mxu0 %v1954
  %2579 = vmatpush.msra.mxu0 %v1952
  %2580 = vmatpush.msra.mxu0 %v1950
  %2581 = vmatpush.msra.mxu0 %v1948
  %2582 = vmatpush.msra.mxu0 %v1946
  %2583 = vmatpush.msra.mxu0 %v1944
  %2584 = vmatpush.msra.mxu0 %v1942
  %2585 = vmatpush.msra.mxu0 %v1940
  %2586 = vmatpush.msra.mxu0 %v1938
  %2587 = vmatpush.msra.mxu0 %v1936
  %2588 = vmatpush.msra.mxu0 %v1934
  %2589 = vmatpush.msra.mxu0 %v1932
  %2590 = vmatpush.msra.mxu0 %v1930
  %2591 = vmatpush.msra.mxu0 %v1928
  %2592 = vmatmul.f32.gmra.mxu0 %v1534
  %v2593 = vpop.f32.mrf.mxu0
  %v2594 = vadd.f32 %v2565, %v2593
  %2595 = vmatmul.f32.gmra.mxu0 %v1555
  %v2596 = vpop.f32.mrf.mxu0
  %v2597 = vadd.f32 %v2568, %v2596
  %2598 = vmatmul.f32.gmra.mxu0 %v1576
  %v2599 = vpop.f32.mrf.mxu0
  %v2600 = vadd.f32 %v2571, %v2599
  %2601 = vmatmul.f32.gmra.mxu0 %v1597
  %v2602 = vpop.f32.mrf.mxu0
  %v2603 = vadd.f32 %v2574, %v2602
  %2604 = vdwg.mxu0
  %2605 = vmatpush.msra.mxu0 %v1990
  %2606 = vmatpush.msra.mxu0 %v1988
  %2607 = vmatpush.msra.mxu0 %v1986
  %2608 = vmatpush.msra.mxu0 %v1984
  %2609 = vmatpush.msra.mxu0 %v1982
  %2610 = vmatpush.msra.mxu0 %v1980
  %2611 = vmatpush.msra.mxu0 %v1978
  %2612 = vmatpush.msra.mxu0 %v1976
  %2613 = vmatpush.msra.mxu0 %v1974
  %2614 = vmatpush.msra.mxu0 %v1972
  %2615 = vmatpush.msra.mxu0 %v1970
  %2616 = vmatpush.msra.mxu0 %v1968
  %2617 = vmatpush.msra.mxu0 %v1966
  %2618 = vmatpush.msra.mxu0 %v1964
  %2619 = vmatpush.msra.mxu0 %v1962
  %2620 = vmatpush.msra.mxu0 %v1960
  %2621 = vmatmul.f32.gmra.mxu0 %v1535
  %v2622 = vpop.f32.mrf.mxu0
  %v2623 = vadd.f32 %v2594, %v2622
  %2624 = vmatmul.f32.gmra.mxu0 %v1556
  %v2625 = vpop.f32.mrf.mxu0
  %v2626 = vadd.f32 %v2597, %v2625
  %2627 = vmatmul.f32.gmra.mxu0 %v1577
  %v2628 = vpop.f32.mrf.mxu0
  %v2629 = vadd.f32 %v2600, %v2628
  %2630 = vmatmul.f32.gmra.mxu0 %v1598
  %v2631 = vpop.f32.mrf.mxu0
  %v2632 = vadd.f32 %v2603, %v2631
  %2633 = vdwg.mxu0
  %2634 = vmatpush.msra.mxu0 %v2022
  %2635 = vmatpush.msra.mxu0 %v2020
  %2636 = vmatpush.msra.mxu0 %v2018
  %2637 = vmatpush.msra.mxu0 %v2016
  %2638 = vmatpush.msra.mxu0 %v2014
  %2639 = vmatpush.msra.mxu0 %v2012
  %2640 = vmatpush.msra.mxu0 %v2010
  %2641 = vmatpush.msra.mxu0 %v2008
  %2642 = vmatpush.msra.mxu0 %v2006
  %2643 = vmatpush.msra.mxu0 %v2004
  %2644 = vmatpush.msra.mxu0 %v2002
  %2645 = vmatpush.msra.mxu0 %v2000
  %2646 = vmatpush.msra.mxu0 %v1998
  %2647 = vmatpush.msra.mxu0 %v1996
  %2648 = vmatpush.msra.mxu0 %v1994
  %2649 = vmatpush.msra.mxu0 %v1992
  %2650 = vmatmul.f32.gmra.mxu0 %v1536
  %v2651 = vpop.f32.mrf.mxu0
  %v2652 = vadd.f32 %v2623, %v2651
  %2653 = vmatmul.f32.gmra.mxu0 %v1557
  %v2654 = vpop.f32.mrf.mxu0
  %v2655 = vadd.f32 %v2626, %v2654
  %2656 = vmatmul.f32.gmra.mxu0 %v1578
  %v2657 = vpop.f32.mrf.mxu0
  %v2658 = vadd.f32 %v2629, %v2657
  %2659 = vmatmul.f32.gmra.mxu0 %v1599
  %v2660 = vpop.f32.mrf.mxu0
  %v2661 = vadd.f32 %v2632, %v2660
  %2662 = vdwg.mxu0
  %2663 = vmatpush.msra.mxu0 %v2054
  %2664 = vmatpush.msra.mxu0 %v2052
  %2665 = vmatpush.msra.mxu0 %v2050
  %2666 = vmatpush.msra.mxu0 %v2048
  %2667 = vmatpush.msra.mxu0 %v2046
  %2668 = vmatpush.msra.mxu0 %v2044
  %2669 = vmatpush.msra.mxu0 %v2042
  %2670 = vmatpush.msra.mxu0 %v2040
  %2671 = vmatpush.msra.mxu0 %v2038
  %2672 = vmatpush.msra.mxu0 %v2036
  %2673 = vmatpush.msra.mxu0 %v2034
  %2674 = vmatpush.msra.mxu0 %v2032
  %2675 = vmatpush.msra.mxu0 %v2030
  %2676 = vmatpush.msra.mxu0 %v2028
  %2677 = vmatpush.msra.mxu0 %v2026
  %2678 = vmatpush.msra.mxu0 %v2024
  %2679 = vmatmul.f32.gmra.mxu0 %v1537
  %v2680 = vpop.f32.mrf.mxu0
  %v2681 = vadd.f32 %v2652, %v2680
  %2682 = vmatmul.f32.gmra.mxu0 %v1558
  %v2683 = vpop.f32.mrf.mxu0
  %v2684 = vadd.f32 %v2655, %v2683
  %2685 = vmatmul.f32.gmra.mxu0 %v1579
  %v2686 = vpop.f32.mrf.mxu0
  %v2687 = vadd.f32 %v2658, %v2686
  %2688 = vmatmul.f32.gmra.mxu0 %v1600
  %v2689 = vpop.f32.mrf.mxu0
  %v2690 = vadd.f32 %v2661, %v2689
  %2691 = vdwg.mxu0
  %2692 = vmatpush.msra.mxu0 %v2086
  %2693 = vmatpush.msra.mxu0 %v2084
  %2694 = vmatpush.msra.mxu0 %v2082
  %2695 = vmatpush.msra.mxu0 %v2080
  %2696 = vmatpush.msra.mxu0 %v2078
  %2697 = vmatpush.msra.mxu0 %v2076
  %2698 = vmatpush.msra.mxu0 %v2074
  %2699 = vmatpush.msra.mxu0 %v2072
  %2700 = vmatpush.msra.mxu0 %v2070
  %2701 = vmatpush.msra.mxu0 %v2068
  %2702 = vmatpush.msra.mxu0 %v2066
  %2703 = vmatpush.msra.mxu0 %v2064
  %2704 = vmatpush.msra.mxu0 %v2062
  %2705 = vmatpush.msra.mxu0 %v2060
  %2706 = vmatpush.msra.mxu0 %v2058
  %2707 = vmatpush.msra.mxu0 %v2056
  %2708 = vmatmul.f32.gmra.mxu0 %v1538
  %v2709 = vpop.f32.mrf.mxu0
  %v2710 = vadd.f32 %v2681, %v2709
  %2711 = vmatmul.f32.gmra.mxu0 %v1559
  %v2712 = vpop.f32.mrf.mxu0
  %v2713 = vadd.f32 %v2684, %v2712
  %2714 = vmatmul.f32.gmra.mxu0 %v1580
  %v2715 = vpop.f32.mrf.mxu0
  %v2716 = vadd.f32 %v2687, %v2715
  %2717 = vmatmul.f32.gmra.mxu0 %v1601
  %v2718 = vpop.f32.mrf.mxu0
  %v2719 = vadd.f32 %v2690, %v2718
  %2720 = vdwg.mxu0
  %2721 = vmatpush.msra.mxu0 %v2118
  %2722 = vmatpush.msra.mxu0 %v2116
  %2723 = vmatpush.msra.mxu0 %v2114
  %2724 = vmatpush.msra.mxu0 %v2112
  %2725 = vmatpush.msra.mxu0 %v2110
  %2726 = vmatpush.msra.mxu0 %v2108
  %2727 = vmatpush.msra.mxu0 %v2106
  %2728 = vmatpush.msra.mxu0 %v2104
  %2729 = vmatpush.msra.mxu0 %v2102
  %2730 = vmatpush.msra.mxu0 %v2100
  %2731 = vmatpush.msra.mxu0 %v2098
  %2732 = vmatpush.msra.mxu0 %v2096
  %2733 = vmatpush.msra.mxu0 %v2094
  %2734 = vmatpush.msra.mxu0 %v2092
  %2735 = vmatpush.msra.mxu0 %v2090
  %2736 = vmatpush.msra.mxu0 %v2088
  %2737 = vmatmul.f32.gmra.mxu0 %v1539
  %v2738 = vpop.f32.mrf.mxu0
  %v2739 = vadd.f32 %v2710, %v2738
  %2740 = vmatmul.f32.gmra.mxu0 %v1560
  %v2741 = vpop.f32.mrf.mxu0
  %v2742 = vadd.f32 %v2713, %v2741
  %2743 = vmatmul.f32.gmra.mxu0 %v1581
  %v2744 = vpop.f32.mrf.mxu0
  %v2745 = vadd.f32 %v2716, %v2744
  %2746 = vmatmul.f32.gmra.mxu0 %v1602
  %v2747 = vpop.f32.mrf.mxu0
  %v2748 = vadd.f32 %v2719, %v2747
  %2749 = vdwg.mxu0
  %2750 = vmatpush.msra.mxu0 %v2150
  %2751 = vmatpush.msra.mxu0 %v2148
  %2752 = vmatpush.msra.mxu0 %v2146
  %2753 = vmatpush.msra.mxu0 %v2144
  %2754 = vmatpush.msra.mxu0 %v2142
  %2755 = vmatpush.msra.mxu0 %v2140
  %2756 = vmatpush.msra.mxu0 %v2138
  %2757 = vmatpush.msra.mxu0 %v2136
  %2758 = vmatpush.msra.mxu0 %v2134
  %2759 = vmatpush.msra.mxu0 %v2132
  %2760 = vmatpush.msra.mxu0 %v2130
  %2761 = vmatpush.msra.mxu0 %v2128
  %2762 = vmatpush.msra.mxu0 %v2126
  %2763 = vmatpush.msra.mxu0 %v2124
  %2764 = vmatpush.msra.mxu0 %v2122
  %2765 = vmatpush.msra.mxu0 %v2120
  %2766 = vmatmul.f32.gmra.mxu0 %v1540
  %v2767 = vpop.f32.mrf.mxu0
  %v2768 = vadd.f32 %v2739, %v2767
  %2769 = vmatmul.f32.gmra.mxu0 %v1561
  %v2770 = vpop.f32.mrf.mxu0
  %v2771 = vadd.f32 %v2742, %v2770
  %2772 = vmatmul.f32.gmra.mxu0 %v1582
  %v2773 = vpop.f32.mrf.mxu0
  %v2774 = vadd.f32 %v2745, %v2773
  %2775 = vmatmul.f32.gmra.mxu0 %v1603
  %v2776 = vpop.f32.mrf.mxu0
  %v2777 = vadd.f32 %v2748, %v2776
  %2778 = vdwg.mxu0
  %2779 = vmatpush.msra.mxu0 %v2182
  %2780 = vmatpush.msra.mxu0 %v2180
  %2781 = vmatpush.msra.mxu0 %v2178
  %2782 = vmatpush.msra.mxu0 %v2176
  %2783 = vmatpush.msra.mxu0 %v2174
  %2784 = vmatpush.msra.mxu0 %v2172
  %2785 = vmatpush.msra.mxu0 %v2170
  %2786 = vmatpush.msra.mxu0 %v2168
  %2787 = vmatpush.msra.mxu0 %v2166
  %2788 = vmatpush.msra.mxu0 %v2164
  %2789 = vmatpush.msra.mxu0 %v2162
  %2790 = vmatpush.msra.mxu0 %v2160
  %2791 = vmatpush.msra.mxu0 %v2158
  %2792 = vmatpush.msra.mxu0 %v2156
  %2793 = vmatpush.msra.mxu0 %v2154
  %2794 = vmatpush.msra.mxu0 %v2152
  %2795 = vmatmul.f32.gmra.mxu0 %v1541
  %v2796 = vpop.f32.mrf.mxu0
  %v2797 = vadd.f32 %v2768, %v2796
  %2798 = vmatmul.f32.gmra.mxu0 %v1562
  %v2799 = vpop.f32.mrf.mxu0
  %v2800 = vadd.f32 %v2771, %v2799
  %2801 = vmatmul.f32.gmra.mxu0 %v1583
  %v2802 = vpop.f32.mrf.mxu0
  %v2803 = vadd.f32 %v2774, %v2802
  %2804 = vmatmul.f32.gmra.mxu0 %v1604
  %v2805 = vpop.f32.mrf.mxu0
  %v2806 = vadd.f32 %v2777, %v2805
  %2807 = vdwg.mxu0
  %2808 = vmatpush.msra.mxu0 %v2214
  %2809 = vmatpush.msra.mxu0 %v2212
  %2810 = vmatpush.msra.mxu0 %v2210
  %2811 = vmatpush.msra.mxu0 %v2208
  %2812 = vmatpush.msra.mxu0 %v2206
  %2813 = vmatpush.msra.mxu0 %v2204
  %2814 = vmatpush.msra.mxu0 %v2202
  %2815 = vmatpush.msra.mxu0 %v2200
  %2816 = vmatpush.msra.mxu0 %v2198
  %2817 = vmatpush.msra.mxu0 %v2196
  %2818 = vmatpush.msra.mxu0 %v2194
  %2819 = vmatpush.msra.mxu0 %v2192
  %2820 = vmatpush.msra.mxu0 %v2190
  %2821 = vmatpush.msra.mxu0 %v2188
  %2822 = vmatpush.msra.mxu0 %v2186
  %2823 = vmatpush.msra.mxu0 %v2184
  %2824 = vmatmul.f32.gmra.mxu0 %v1542
  %v2825 = vpop.f32.mrf.mxu0
  %v2826 = vadd.f32 %v2797, %v2825
  %2827 = vmatmul.f32.gmra.mxu0 %v1563
  %v2828 = vpop.f32.mrf.mxu0
  %v2829 = vadd.f32 %v2800, %v2828
  %2830 = vmatmul.f32.gmra.mxu0 %v1584
  %v2831 = vpop.f32.mrf.mxu0
  %v2832 = vadd.f32 %v2803, %v2831
  %2833 = vmatmul.f32.gmra.mxu0 %v1605
  %v2834 = vpop.f32.mrf.mxu0
  %v2835 = vadd.f32 %v2806, %v2834
  %2836 = vdwg.mxu0
  %2837 = vmatpush.msra.mxu0 %v2246
  %2838 = vmatpush.msra.mxu0 %v2244
  %2839 = vmatpush.msra.mxu0 %v2242
  %2840 = vmatpush.msra.mxu0 %v2240
  %2841 = vmatpush.msra.mxu0 %v2238
  %2842 = vmatpush.msra.mxu0 %v2236
  %2843 = vmatpush.msra.mxu0 %v2234
  %2844 = vmatpush.msra.mxu0 %v2232
  %2845 = vmatpush.msra.mxu0 %v2230
  %2846 = vmatpush.msra.mxu0 %v2228
  %2847 = vmatpush.msra.mxu0 %v2226
  %2848 = vmatpush.msra.mxu0 %v2224
  %2849 = vmatpush.msra.mxu0 %v2222
  %2850 = vmatpush.msra.mxu0 %v2220
  %2851 = vmatpush.msra.mxu0 %v2218
  %2852 = vmatpush.msra.mxu0 %v2216
  %2853 = vmatmul.f32.gmra.mxu0 %v1543
  %v2854 = vpop.f32.mrf.mxu0
  %v2855 = vadd.f32 %v2826, %v2854
  %2856 = vmatmul.f32.gmra.mxu0 %v1564
  %v2857 = vpop.f32.mrf.mxu0
  %v2858 = vadd.f32 %v2829, %v2857
  %2859 = vmatmul.f32.gmra.mxu0 %v1585
  %v2860 = vpop.f32.mrf.mxu0
  %v2861 = vadd.f32 %v2832, %v2860
  %2862 = vmatmul.f32.gmra.mxu0 %v1606
  %v2863 = vpop.f32.mrf.mxu0
  %v2864 = vadd.f32 %v2835, %v2863
  %2865 = vdwg.mxu0
  %2866 = vmatpush.msra.mxu0 %v2278
  %2867 = vmatpush.msra.mxu0 %v2276
  %2868 = vmatpush.msra.mxu0 %v2274
  %2869 = vmatpush.msra.mxu0 %v2272
  %2870 = vmatpush.msra.mxu0 %v2270
  %2871 = vmatpush.msra.mxu0 %v2268
  %2872 = vmatpush.msra.mxu0 %v2266
  %2873 = vmatpush.msra.mxu0 %v2264
  %2874 = vmatpush.msra.mxu0 %v2262
  %2875 = vmatpush.msra.mxu0 %v2260
  %2876 = vmatpush.msra.mxu0 %v2258
  %2877 = vmatpush.msra.mxu0 %v2256
  %2878 = vmatpush.msra.mxu0 %v2254
  %2879 = vmatpush.msra.mxu0 %v2252
  %2880 = vmatpush.msra.mxu0 %v2250
  %2881 = vmatpush.msra.mxu0 %v2248
  %2882 = vmatmul.f32.gmra.mxu0 %v1544
  %v2883 = vpop.f32.mrf.mxu0
  %v2884 = vadd.f32 %v2855, %v2883
  %2885 = vmatmul.f32.gmra.mxu0 %v1565
  %v2886 = vpop.f32.mrf.mxu0
  %v2887 = vadd.f32 %v2858, %v2886
  %2888 = vmatmul.f32.gmra.mxu0 %v1586
  %v2889 = vpop.f32.mrf.mxu0
  %v2890 = vadd.f32 %v2861, %v2889
  %2891 = vmatmul.f32.gmra.mxu0 %v1607
  %v2892 = vpop.f32.mrf.mxu0
  %v2893 = vadd.f32 %v2864, %v2892
  %2894 = vdwg.mxu0
  %2895 = vmatpush.msra.mxu0 %v1639
  %2896 = vmatpush.msra.mxu0 %v1637
  %2897 = vmatpush.msra.mxu0 %v1635
  %2898 = vmatpush.msra.mxu0 %v1633
  %2899 = vmatpush.msra.mxu0 %v1631
  %2900 = vmatpush.msra.mxu0 %v1629
  %2901 = vmatpush.msra.mxu0 %v1627
  %2902 = vmatpush.msra.mxu0 %v1625
  %2903 = vmatpush.msra.mxu0 %v1623
  %2904 = vmatpush.msra.mxu0 %v1621
  %2905 = vmatpush.msra.mxu0 %v1619
  %2906 = vmatpush.msra.mxu0 %v1617
  %2907 = vmatpush.msra.mxu0 %v1615
  %2908 = vmatpush.msra.mxu0 %v1613
  %2909 = vmatpush.msra.mxu0 %v1611
  %2910 = vmatpush.msra.mxu0 %v1609
  %2911 = vmatmul.f32.gmra.mxu0 %v1524
  %v2912 = vpop.f32.mrf.mxu0
  %v2913 = vadd.f32 %v2283, %v2912
  %2914 = vmatmul.f32.gmra.mxu0 %v1545
  %v2915 = vpop.f32.mrf.mxu0
  %v2916 = vadd.f32 %v2283, %v2915
  %2917 = vmatmul.f32.gmra.mxu0 %v1566
  %v2918 = vpop.f32.mrf.mxu0
  %v2919 = vadd.f32 %v2283, %v2918
  %2920 = vmatmul.f32.gmra.mxu0 %v1587
  %v2921 = vpop.f32.mrf.mxu0
  %v2922 = vadd.f32 %v2283, %v2921
  %2923 = vdwg.mxu0
  %2924 = vmatpush.msra.mxu0 %v1671
  %2925 = vmatpush.msra.mxu0 %v1669
  %2926 = vmatpush.msra.mxu0 %v1667
  %2927 = vmatpush.msra.mxu0 %v1665
  %2928 = vmatpush.msra.mxu0 %v1663
  %2929 = vmatpush.msra.mxu0 %v1661
  %2930 = vmatpush.msra.mxu0 %v1659
  %2931 = vmatpush.msra.mxu0 %v1657
  %2932 = vmatpush.msra.mxu0 %v1655
  %2933 = vmatpush.msra.mxu0 %v1653
  %2934 = vmatpush.msra.mxu0 %v1651
  %2935 = vmatpush.msra.mxu0 %v1649
  %2936 = vmatpush.msra.mxu0 %v1647
  %2937 = vmatpush.msra.mxu0 %v1645
  %2938 = vmatpush.msra.mxu0 %v1643
  %2939 = vmatpush.msra.mxu0 %v1641
  %2940 = vmatmul.f32.gmra.mxu0 %v1525
  %v2941 = vpop.f32.mrf.mxu0
  %v2942 = vadd.f32 %v2913, %v2941
  %2943 = vmatmul.f32.gmra.mxu0 %v1546
  %v2944 = vpop.f32.mrf.mxu0
  %v2945 = vadd.f32 %v2916, %v2944
  %2946 = vmatmul.f32.gmra.mxu0 %v1567
  %v2947 = vpop.f32.mrf.mxu0
  %v2948 = vadd.f32 %v2919, %v2947
  %2949 = vmatmul.f32.gmra.mxu0 %v1588
  %v2950 = vpop.f32.mrf.mxu0
  %v2951 = vadd.f32 %v2922, %v2950
  %2952 = vdwg.mxu0
  %2953 = vmatpush.msra.mxu0 %v1703
  %2954 = vmatpush.msra.mxu0 %v1701
  %2955 = vmatpush.msra.mxu0 %v1699
  %2956 = vmatpush.msra.mxu0 %v1697
  %2957 = vmatpush.msra.mxu0 %v1695
  %2958 = vmatpush.msra.mxu0 %v1693
  %2959 = vmatpush.msra.mxu0 %v1691
  %2960 = vmatpush.msra.mxu0 %v1689
  %2961 = vmatpush.msra.mxu0 %v1687
  %2962 = vmatpush.msra.mxu0 %v1685
  %2963 = vmatpush.msra.mxu0 %v1683
  %2964 = vmatpush.msra.mxu0 %v1681
  %2965 = vmatpush.msra.mxu0 %v1679
  %2966 = vmatpush.msra.mxu0 %v1677
  %2967 = vmatpush.msra.mxu0 %v1675
  %2968 = vmatpush.msra.mxu0 %v1673
  %2969 = vmatmul.f32.gmra.mxu0 %v1526
  %v2970 = vpop.f32.mrf.mxu0
  %v2971 = vadd.f32 %v2942, %v2970
  %2972 = vmatmul.f32.gmra.mxu0 %v1547
  %v2973 = vpop.f32.mrf.mxu0
  %v2974 = vadd.f32 %v2945, %v2973
  %2975 = vmatmul.f32.gmra.mxu0 %v1568
  %v2976 = vpop.f32.mrf.mxu0
  %v2977 = vadd.f32 %v2948, %v2976
  %2978 = vmatmul.f32.gmra.mxu0 %v1589
  %v2979 = vpop.f32.mrf.mxu0
  %v2980 = vadd.f32 %v2951, %v2979
  %2981 = vdwg.mxu0
  %2982 = vmatpush.msra.mxu0 %v1735
  %2983 = vmatpush.msra.mxu0 %v1733
  %2984 = vmatpush.msra.mxu0 %v1731
  %2985 = vmatpush.msra.mxu0 %v1729
  %2986 = vmatpush.msra.mxu0 %v1727
  %2987 = vmatpush.msra.mxu0 %v1725
  %2988 = vmatpush.msra.mxu0 %v1723
  %2989 = vmatpush.msra.mxu0 %v1721
  %2990 = vmatpush.msra.mxu0 %v1719
  %2991 = vmatpush.msra.mxu0 %v1717
  %2992 = vmatpush.msra.mxu0 %v1715
  %2993 = vmatpush.msra.mxu0 %v1713
  %2994 = vmatpush.msra.mxu0 %v1711
  %2995 = vmatpush.msra.mxu0 %v1709
  %2996 = vmatpush.msra.mxu0 %v1707
  %2997 = vmatpush.msra.mxu0 %v1705
  %2998 = vmatmul.f32.gmra.mxu0 %v1527
  %v2999 = vpop.f32.mrf.mxu0
  %v3000 = vadd.f32 %v2971, %v2999
  %3001 = vmatmul.f32.gmra.mxu0 %v1548
  %v3002 = vpop.f32.mrf.mxu0
  %v3003 = vadd.f32 %v2974, %v3002
  %3004 = vmatmul.f32.gmra.mxu0 %v1569
  %v3005 = vpop.f32.mrf.mxu0
  %v3006 = vadd.f32 %v2977, %v3005
  %3007 = vmatmul.f32.gmra.mxu0 %v1590
  %v3008 = vpop.f32.mrf.mxu0
  %v3009 = vadd.f32 %v2980, %v3008
  %3010 = vdwg.mxu0
  %3011 = vmatpush.msra.mxu0 %v1767
  %3012 = vmatpush.msra.mxu0 %v1765
  %3013 = vmatpush.msra.mxu0 %v1763
  %3014 = vmatpush.msra.mxu0 %v1761
  %3015 = vmatpush.msra.mxu0 %v1759
  %3016 = vmatpush.msra.mxu0 %v1757
  %3017 = vmatpush.msra.mxu0 %v1755
  %3018 = vmatpush.msra.mxu0 %v1753
  %3019 = vmatpush.msra.mxu0 %v1751
  %3020 = vmatpush.msra.mxu0 %v1749
  %3021 = vmatpush.msra.mxu0 %v1747
  %3022 = vmatpush.msra.mxu0 %v1745
  %3023 = vmatpush.msra.mxu0 %v1743
  %3024 = vmatpush.msra.mxu0 %v1741
  %3025 = vmatpush.msra.mxu0 %v1739
  %3026 = vmatpush.msra.mxu0 %v1737
  %3027 = vmatmul.f32.gmra.mxu0 %v1528
  %v3028 = vpop.f32.mrf.mxu0
  %v3029 = vadd.f32 %v3000, %v3028
  %3030 = vmatmul.f32.gmra.mxu0 %v1549
  %v3031 = vpop.f32.mrf.mxu0
  %v3032 = vadd.f32 %v3003, %v3031
  %3033 = vmatmul.f32.gmra.mxu0 %v1570
  %v3034 = vpop.f32.mrf.mxu0
  %v3035 = vadd.f32 %v3006, %v3034
  %3036 = vmatmul.f32.gmra.mxu0 %v1591
  %v3037 = vpop.f32.mrf.mxu0
  %v3038 = vadd.f32 %v3009, %v3037
  %3039 = vdwg.mxu0
  %3040 = vmatpush.msra.mxu0 %v1799
  %3041 = vmatpush.msra.mxu0 %v1797
  %3042 = vmatpush.msra.mxu0 %v1795
  %3043 = vmatpush.msra.mxu0 %v1793
  %3044 = vmatpush.msra.mxu0 %v1791
  %3045 = vmatpush.msra.mxu0 %v1789
  %3046 = vmatpush.msra.mxu0 %v1787
  %3047 = vmatpush.msra.mxu0 %v1785
  %3048 = vmatpush.msra.mxu0 %v1783
  %3049 = vmatpush.msra.mxu0 %v1781
  %3050 = vmatpush.msra.mxu0 %v1779
  %3051 = vmatpush.msra.mxu0 %v1777
  %3052 = vmatpush.msra.mxu0 %v1775
  %3053 = vmatpush.msra.mxu0 %v1773
  %3054 = vmatpush.msra.mxu0 %v1771
  %3055 = vmatpush.msra.mxu0 %v1769
  %3056 = vmatmul.f32.gmra.mxu0 %v1529
  %v3057 = vpop.f32.mrf.mxu0
  %v3058 = vadd.f32 %v3029, %v3057
  %3059 = vmatmul.f32.gmra.mxu0 %v1550
  %v3060 = vpop.f32.mrf.mxu0
  %v3061 = vadd.f32 %v3032, %v3060
  %3062 = vmatmul.f32.gmra.mxu0 %v1571
  %v3063 = vpop.f32.mrf.mxu0
  %v3064 = vadd.f32 %v3035, %v3063
  %3065 = vmatmul.f32.gmra.mxu0 %v1592
  %v3066 = vpop.f32.mrf.mxu0
  %v3067 = vadd.f32 %v3038, %v3066
  %3068 = vdwg.mxu0
  %3069 = vmatpush.msra.mxu0 %v1831
  %3070 = vmatpush.msra.mxu0 %v1829
  %3071 = vmatpush.msra.mxu0 %v1827
  %3072 = vmatpush.msra.mxu0 %v1825
  %3073 = vmatpush.msra.mxu0 %v1823
  %3074 = vmatpush.msra.mxu0 %v1821
  %3075 = vmatpush.msra.mxu0 %v1819
  %3076 = vmatpush.msra.mxu0 %v1817
  %3077 = vmatpush.msra.mxu0 %v1815
  %3078 = vmatpush.msra.mxu0 %v1813
  %3079 = vmatpush.msra.mxu0 %v1811
  %3080 = vmatpush.msra.mxu0 %v1809
  %3081 = vmatpush.msra.mxu0 %v1807
  %3082 = vmatpush.msra.mxu0 %v1805
  %3083 = vmatpush.msra.mxu0 %v1803
  %3084 = vmatpush.msra.mxu0 %v1801
  %3085 = vmatmul.f32.gmra.mxu0 %v1530
  %v3086 = vpop.f32.mrf.mxu0
  %v3087 = vadd.f32 %v3058, %v3086
  %3088 = vmatmul.f32.gmra.mxu0 %v1551
  %v3089 = vpop.f32.mrf.mxu0
  %v3090 = vadd.f32 %v3061, %v3089
  %3091 = vmatmul.f32.gmra.mxu0 %v1572
  %v3092 = vpop.f32.mrf.mxu0
  %v3093 = vadd.f32 %v3064, %v3092
  %3094 = vmatmul.f32.gmra.mxu0 %v1593
  %v3095 = vpop.f32.mrf.mxu0
  %v3096 = vadd.f32 %v3067, %v3095
  %3097 = vdwg.mxu0
  %3098 = vmatpush.msra.mxu0 %v1863
  %3099 = vmatpush.msra.mxu0 %v1861
  %3100 = vmatpush.msra.mxu0 %v1859
  %3101 = vmatpush.msra.mxu0 %v1857
  %3102 = vmatpush.msra.mxu0 %v1855
  %3103 = vmatpush.msra.mxu0 %v1853
  %3104 = vmatpush.msra.mxu0 %v1851
  %3105 = vmatpush.msra.mxu0 %v1849
  %3106 = vmatpush.msra.mxu0 %v1847
  %3107 = vmatpush.msra.mxu0 %v1845
  %3108 = vmatpush.msra.mxu0 %v1843
  %3109 = vmatpush.msra.mxu0 %v1841
  %3110 = vmatpush.msra.mxu0 %v1839
  %3111 = vmatpush.msra.mxu0 %v1837
  %3112 = vmatpush.msra.mxu0 %v1835
  %3113 = vmatpush.msra.mxu0 %v1833
  %3114 = vmatmul.f32.gmra.mxu0 %v1531
  %v3115 = vpop.f32.mrf.mxu0
  %v3116 = vadd.f32 %v3087, %v3115
  %3117 = vmatmul.f32.gmra.mxu0 %v1552
  %v3118 = vpop.f32.mrf.mxu0
  %v3119 = vadd.f32 %v3090, %v3118
  %3120 = vmatmul.f32.gmra.mxu0 %v1573
  %v3121 = vpop.f32.mrf.mxu0
  %v3122 = vadd.f32 %v3093, %v3121
  %3123 = vmatmul.f32.gmra.mxu0 %v1594
  %v3124 = vpop.f32.mrf.mxu0
  %v3125 = vadd.f32 %v3096, %v3124
  %3126 = vdwg.mxu0
  %3127 = vmatpush.msra.mxu0 %v1895
  %3128 = vmatpush.msra.mxu0 %v1893
  %3129 = vmatpush.msra.mxu0 %v1891
  %3130 = vmatpush.msra.mxu0 %v1889
  %3131 = vmatpush.msra.mxu0 %v1887
  %3132 = vmatpush.msra.mxu0 %v1885
  %3133 = vmatpush.msra.mxu0 %v1883
  %3134 = vmatpush.msra.mxu0 %v1881
  %3135 = vmatpush.msra.mxu0 %v1879
  %3136 = vmatpush.msra.mxu0 %v1877
  %3137 = vmatpush.msra.mxu0 %v1875
  %3138 = vmatpush.msra.mxu0 %v1873
  %3139 = vmatpush.msra.mxu0 %v1871
  %3140 = vmatpush.msra.mxu0 %v1869
  %3141 = vmatpush.msra.mxu0 %v1867
  %3142 = vmatpush.msra.mxu0 %v1865
  %3143 = vmatmul.f32.gmra.mxu0 %v1532
  %v3144 = vpop.f32.mrf.mxu0
  %v3145 = vadd.f32 %v3116, %v3144
  %3146 = vmatmul.f32.gmra.mxu0 %v1553
  %v3147 = vpop.f32.mrf.mxu0
  %v3148 = vadd.f32 %v3119, %v3147
  %3149 = vmatmul.f32.gmra.mxu0 %v1574
  %v3150 = vpop.f32.mrf.mxu0
  %v3151 = vadd.f32 %v3122, %v3150
  %3152 = vmatmul.f32.gmra.mxu0 %v1595
  %v3153 = vpop.f32.mrf.mxu0
  %v3154 = vadd.f32 %v3125, %v3153
  %3155 = vdwg.mxu0
  %3156 = vmatpush.msra.mxu0 %v1927
  %3157 = vmatpush.msra.mxu0 %v1925
  %3158 = vmatpush.msra.mxu0 %v1923
  %3159 = vmatpush.msra.mxu0 %v1921
  %3160 = vmatpush.msra.mxu0 %v1919
  %3161 = vmatpush.msra.mxu0 %v1917
  %3162 = vmatpush.msra.mxu0 %v1915
  %3163 = vmatpush.msra.mxu0 %v1913
  %3164 = vmatpush.msra.mxu0 %v1911
  %3165 = vmatpush.msra.mxu0 %v1909
  %3166 = vmatpush.msra.mxu0 %v1907
  %3167 = vmatpush.msra.mxu0 %v1905
  %3168 = vmatpush.msra.mxu0 %v1903
  %3169 = vmatpush.msra.mxu0 %v1901
  %3170 = vmatpush.msra.mxu0 %v1899
  %3171 = vmatpush.msra.mxu0 %v1897
  %3172 = vmatmul.f32.gmra.mxu0 %v1533
  %v3173 = vpop.f32.mrf.mxu0
  %v3174 = vadd.f32 %v3145, %v3173
  %3175 = vmatmul.f32.gmra.mxu0 %v1554
  %v3176 = vpop.f32.mrf.mxu0
  %v3177 = vadd.f32 %v3148, %v3176
  %3178 = vmatmul.f32.gmra.mxu0 %v1575
  %v3179 = vpop.f32.mrf.mxu0
  %v3180 = vadd.f32 %v3151, %v3179
  %3181 = vmatmul.f32.gmra.mxu0 %v1596
  %v3182 = vpop.f32.mrf.mxu0
  %v3183 = vadd.f32 %v3154, %v3182
  %3184 = vdwg.mxu0
  %3185 = vmatpush.msra.mxu0 %v1959
  %3186 = vmatpush.msra.mxu0 %v1957
  %3187 = vmatpush.msra.mxu0 %v1955
  %3188 = vmatpush.msra.mxu0 %v1953
  %3189 = vmatpush.msra.mxu0 %v1951
  %3190 = vmatpush.msra.mxu0 %v1949
  %3191 = vmatpush.msra.mxu0 %v1947
  %3192 = vmatpush.msra.mxu0 %v1945
  %3193 = vmatpush.msra.mxu0 %v1943
  %3194 = vmatpush.msra.mxu0 %v1941
  %3195 = vmatpush.msra.mxu0 %v1939
  %3196 = vmatpush.msra.mxu0 %v1937
  %3197 = vmatpush.msra.mxu0 %v1935
  %3198 = vmatpush.msra.mxu0 %v1933
  %3199 = vmatpush.msra.mxu0 %v1931
  %3200 = vmatpush.msra.mxu0 %v1929
  %3201 = vmatmul.f32.gmra.mxu0 %v1534
  %v3202 = vpop.f32.mrf.mxu0
  %v3203 = vadd.f32 %v3174, %v3202
  %3204 = vmatmul.f32.gmra.mxu0 %v1555
  %v3205 = vpop.f32.mrf.mxu0
  %v3206 = vadd.f32 %v3177, %v3205
  %3207 = vmatmul.f32.gmra.mxu0 %v1576
  %v3208 = vpop.f32.mrf.mxu0
  %v3209 = vadd.f32 %v3180, %v3208
  %3210 = vmatmul.f32.gmra.mxu0 %v1597
  %v3211 = vpop.f32.mrf.mxu0
  %v3212 = vadd.f32 %v3183, %v3211
  %3213 = vdwg.mxu0
  %3214 = vmatpush.msra.mxu0 %v1991
  %3215 = vmatpush.msra.mxu0 %v1989
  %3216 = vmatpush.msra.mxu0 %v1987
  %3217 = vmatpush.msra.mxu0 %v1985
  %3218 = vmatpush.msra.mxu0 %v1983
  %3219 = vmatpush.msra.mxu0 %v1981
  %3220 = vmatpush.msra.mxu0 %v1979
  %3221 = vmatpush.msra.mxu0 %v1977
  %3222 = vmatpush.msra.mxu0 %v1975
  %3223 = vmatpush.msra.mxu0 %v1973
  %3224 = vmatpush.msra.mxu0 %v1971
  %3225 = vmatpush.msra.mxu0 %v1969
  %3226 = vmatpush.msra.mxu0 %v1967
  %3227 = vmatpush.msra.mxu0 %v1965
  %3228 = vmatpush.msra.mxu0 %v1963
  %3229 = vmatpush.msra.mxu0 %v1961
  %3230 = vmatmul.f32.gmra.mxu0 %v1535
  %v3231 = vpop.f32.mrf.mxu0
  %v3232 = vadd.f32 %v3203, %v3231
  %3233 = vmatmul.f32.gmra.mxu0 %v1556
  %v3234 = vpop.f32.mrf.mxu0
  %v3235 = vadd.f32 %v3206, %v3234
  %3236 = vmatmul.f32.gmra.mxu0 %v1577
  %v3237 = vpop.f32.mrf.mxu0
  %v3238 = vadd.f32 %v3209, %v3237
  %3239 = vmatmul.f32.gmra.mxu0 %v1598
  %v3240 = vpop.f32.mrf.mxu0
  %v3241 = vadd.f32 %v3212, %v3240
  %3242 = vdwg.mxu0
  %3243 = vmatpush.msra.mxu0 %v2023
  %3244 = vmatpush.msra.mxu0 %v2021
  %3245 = vmatpush.msra.mxu0 %v2019
  %3246 = vmatpush.msra.mxu0 %v2017
  %3247 = vmatpush.msra.mxu0 %v2015
  %3248 = vmatpush.msra.mxu0 %v2013
  %3249 = vmatpush.msra.mxu0 %v2011
  %3250 = vmatpush.msra.mxu0 %v2009
  %3251 = vmatpush.msra.mxu0 %v2007
  %3252 = vmatpush.msra.mxu0 %v2005
  %3253 = vmatpush.msra.mxu0 %v2003
  %3254 = vmatpush.msra.mxu0 %v2001
  %3255 = vmatpush.msra.mxu0 %v1999
  %3256 = vmatpush.msra.mxu0 %v1997
  %3257 = vmatpush.msra.mxu0 %v1995
  %3258 = vmatpush.msra.mxu0 %v1993
  %3259 = vmatmul.f32.gmra.mxu0 %v1536
  %v3260 = vpop.f32.mrf.mxu0
  %v3261 = vadd.f32 %v3232, %v3260
  %3262 = vmatmul.f32.gmra.mxu0 %v1557
  %v3263 = vpop.f32.mrf.mxu0
  %v3264 = vadd.f32 %v3235, %v3263
  %3265 = vmatmul.f32.gmra.mxu0 %v1578
  %v3266 = vpop.f32.mrf.mxu0
  %v3267 = vadd.f32 %v3238, %v3266
  %3268 = vmatmul.f32.gmra.mxu0 %v1599
  %v3269 = vpop.f32.mrf.mxu0
  %v3270 = vadd.f32 %v3241, %v3269
  %3271 = vdwg.mxu0
  %3272 = vmatpush.msra.mxu0 %v2055
  %3273 = vmatpush.msra.mxu0 %v2053
  %3274 = vmatpush.msra.mxu0 %v2051
  %3275 = vmatpush.msra.mxu0 %v2049
  %3276 = vmatpush.msra.mxu0 %v2047
  %3277 = vmatpush.msra.mxu0 %v2045
  %3278 = vmatpush.msra.mxu0 %v2043
  %3279 = vmatpush.msra.mxu0 %v2041
  %3280 = vmatpush.msra.mxu0 %v2039
  %3281 = vmatpush.msra.mxu0 %v2037
  %3282 = vmatpush.msra.mxu0 %v2035
  %3283 = vmatpush.msra.mxu0 %v2033
  %3284 = vmatpush.msra.mxu0 %v2031
  %3285 = vmatpush.msra.mxu0 %v2029
  %3286 = vmatpush.msra.mxu0 %v2027
  %3287 = vmatpush.msra.mxu0 %v2025
  %3288 = vmatmul.f32.gmra.mxu0 %v1537
  %v3289 = vpop.f32.mrf.mxu0
  %v3290 = vadd.f32 %v3261, %v3289
  %3291 = vmatmul.f32.gmra.mxu0 %v1558
  %v3292 = vpop.f32.mrf.mxu0
  %v3293 = vadd.f32 %v3264, %v3292
  %3294 = vmatmul.f32.gmra.mxu0 %v1579
  %v3295 = vpop.f32.mrf.mxu0
  %v3296 = vadd.f32 %v3267, %v3295
  %3297 = vmatmul.f32.gmra.mxu0 %v1600
  %v3298 = vpop.f32.mrf.mxu0
  %v3299 = vadd.f32 %v3270, %v3298
  %3300 = vdwg.mxu0
  %3301 = vmatpush.msra.mxu0 %v2087
  %3302 = vmatpush.msra.mxu0 %v2085
  %3303 = vmatpush.msra.mxu0 %v2083
  %3304 = vmatpush.msra.mxu0 %v2081
  %3305 = vmatpush.msra.mxu0 %v2079
  %3306 = vmatpush.msra.mxu0 %v2077
  %3307 = vmatpush.msra.mxu0 %v2075
  %3308 = vmatpush.msra.mxu0 %v2073
  %3309 = vmatpush.msra.mxu0 %v2071
  %3310 = vmatpush.msra.mxu0 %v2069
  %3311 = vmatpush.msra.mxu0 %v2067
  %3312 = vmatpush.msra.mxu0 %v2065
  %3313 = vmatpush.msra.mxu0 %v2063
  %3314 = vmatpush.msra.mxu0 %v2061
  %3315 = vmatpush.msra.mxu0 %v2059
  %3316 = vmatpush.msra.mxu0 %v2057
  %3317 = vmatmul.f32.gmra.mxu0 %v1538
  %v3318 = vpop.f32.mrf.mxu0
  %v3319 = vadd.f32 %v3290, %v3318
  %3320 = vmatmul.f32.gmra.mxu0 %v1559
  %v3321 = vpop.f32.mrf.mxu0
  %v3322 = vadd.f32 %v3293, %v3321
  %3323 = vmatmul.f32.gmra.mxu0 %v1580
  %v3324 = vpop.f32.mrf.mxu0
  %v3325 = vadd.f32 %v3296, %v3324
  %3326 = vmatmul.f32.gmra.mxu0 %v1601
  %v3327 = vpop.f32.mrf.mxu0
  %v3328 = vadd.f32 %v3299, %v3327
  %3329 = vdwg.mxu0
  %3330 = vmatpush.msra.mxu0 %v2119
  %3331 = vmatpush.msra.mxu0 %v2117
  %3332 = vmatpush.msra.mxu0 %v2115
  %3333 = vmatpush.msra.mxu0 %v2113
  %3334 = vmatpush.msra.mxu0 %v2111
  %3335 = vmatpush.msra.mxu0 %v2109
  %3336 = vmatpush.msra.mxu0 %v2107
  %3337 = vmatpush.msra.mxu0 %v2105
  %3338 = vmatpush.msra.mxu0 %v2103
  %3339 = vmatpush.msra.mxu0 %v2101
  %3340 = vmatpush.msra.mxu0 %v2099
  %3341 = vmatpush.msra.mxu0 %v2097
  %3342 = vmatpush.msra.mxu0 %v2095
  %3343 = vmatpush.msra.mxu0 %v2093
  %3344 = vmatpush.msra.mxu0 %v2091
  %3345 = vmatpush.msra.mxu0 %v2089
  %3346 = vmatmul.f32.gmra.mxu0 %v1539
  %v3347 = vpop.f32.mrf.mxu0
  %v3348 = vadd.f32 %v3319, %v3347
  %3349 = vmatmul.f32.gmra.mxu0 %v1560
  %v3350 = vpop.f32.mrf.mxu0
  %v3351 = vadd.f32 %v3322, %v3350
  %3352 = vmatmul.f32.gmra.mxu0 %v1581
  %v3353 = vpop.f32.mrf.mxu0
  %v3354 = vadd.f32 %v3325, %v3353
  %3355 = vmatmul.f32.gmra.mxu0 %v1602
  %v3356 = vpop.f32.mrf.mxu0
  %v3357 = vadd.f32 %v3328, %v3356
  %3358 = vdwg.mxu0
  %3359 = vmatpush.msra.mxu0 %v2151
  %3360 = vmatpush.msra.mxu0 %v2149
  %3361 = vmatpush.msra.mxu0 %v2147
  %3362 = vmatpush.msra.mxu0 %v2145
  %3363 = vmatpush.msra.mxu0 %v2143
  %3364 = vmatpush.msra.mxu0 %v2141
  %3365 = vmatpush.msra.mxu0 %v2139
  %3366 = vmatpush.msra.mxu0 %v2137
  %3367 = vmatpush.msra.mxu0 %v2135
  %3368 = vmatpush.msra.mxu0 %v2133
  %3369 = vmatpush.msra.mxu0 %v2131
  %3370 = vmatpush.msra.mxu0 %v2129
  %3371 = vmatpush.msra.mxu0 %v2127
  %3372 = vmatpush.msra.mxu0 %v2125
  %3373 = vmatpush.msra.mxu0 %v2123
  %3374 = vmatpush.msra.mxu0 %v2121
  %3375 = vmatmul.f32.gmra.mxu0 %v1540
  %v3376 = vpop.f32.mrf.mxu0
  %v3377 = vadd.f32 %v3348, %v3376
  %3378 = vmatmul.f32.gmra.mxu0 %v1561
  %v3379 = vpop.f32.mrf.mxu0
  %v3380 = vadd.f32 %v3351, %v3379
  %3381 = vmatmul.f32.gmra.mxu0 %v1582
  %v3382 = vpop.f32.mrf.mxu0
  %v3383 = vadd.f32 %v3354, %v3382
  %3384 = vmatmul.f32.gmra.mxu0 %v1603
  %v3385 = vpop.f32.mrf.mxu0
  %v3386 = vadd.f32 %v3357, %v3385
  %3387 = vdwg.mxu0
  %3388 = vmatpush.msra.mxu0 %v2183
  %3389 = vmatpush.msra.mxu0 %v2181
  %3390 = vmatpush.msra.mxu0 %v2179
  %3391 = vmatpush.msra.mxu0 %v2177
  %3392 = vmatpush.msra.mxu0 %v2175
  %3393 = vmatpush.msra.mxu0 %v2173
  %3394 = vmatpush.msra.mxu0 %v2171
  %3395 = vmatpush.msra.mxu0 %v2169
  %3396 = vmatpush.msra.mxu0 %v2167
  %3397 = vmatpush.msra.mxu0 %v2165
  %3398 = vmatpush.msra.mxu0 %v2163
  %3399 = vmatpush.msra.mxu0 %v2161
  %3400 = vmatpush.msra.mxu0 %v2159
  %3401 = vmatpush.msra.mxu0 %v2157
  %3402 = vmatpush.msra.mxu0 %v2155
  %3403 = vmatpush.msra.mxu0 %v2153
  %3404 = vmatmul.f32.gmra.mxu0 %v1541
  %v3405 = vpop.f32.mrf.mxu0
  %v3406 = vadd.f32 %v3377, %v3405
  %3407 = vmatmul.f32.gmra.mxu0 %v1562
  %v3408 = vpop.f32.mrf.mxu0
  %v3409 = vadd.f32 %v3380, %v3408
  %3410 = vmatmul.f32.gmra.mxu0 %v1583
  %v3411 = vpop.f32.mrf.mxu0
  %v3412 = vadd.f32 %v3383, %v3411
  %3413 = vmatmul.f32.gmra.mxu0 %v1604
  %v3414 = vpop.f32.mrf.mxu0
  %v3415 = vadd.f32 %v3386, %v3414
  %3416 = vdwg.mxu0
  %3417 = vmatpush.msra.mxu0 %v2215
  %3418 = vmatpush.msra.mxu0 %v2213
  %3419 = vmatpush.msra.mxu0 %v2211
  %3420 = vmatpush.msra.mxu0 %v2209
  %3421 = vmatpush.msra.mxu0 %v2207
  %3422 = vmatpush.msra.mxu0 %v2205
  %3423 = vmatpush.msra.mxu0 %v2203
  %3424 = vmatpush.msra.mxu0 %v2201
  %3425 = vmatpush.msra.mxu0 %v2199
  %3426 = vmatpush.msra.mxu0 %v2197
  %3427 = vmatpush.msra.mxu0 %v2195
  %3428 = vmatpush.msra.mxu0 %v2193
  %3429 = vmatpush.msra.mxu0 %v2191
  %3430 = vmatpush.msra.mxu0 %v2189
  %3431 = vmatpush.msra.mxu0 %v2187
  %3432 = vmatpush.msra.mxu0 %v2185
  %3433 = vmatmul.f32.gmra.mxu0 %v1542
  %v3434 = vpop.f32.mrf.mxu0
  %v3435 = vadd.f32 %v3406, %v3434
  %3436 = vmatmul.f32.gmra.mxu0 %v1563
  %v3437 = vpop.f32.mrf.mxu0
  %v3438 = vadd.f32 %v3409, %v3437
  %3439 = vmatmul.f32.gmra.mxu0 %v1584
  %v3440 = vpop.f32.mrf.mxu0
  %v3441 = vadd.f32 %v3412, %v3440
  %3442 = vmatmul.f32.gmra.mxu0 %v1605
  %v3443 = vpop.f32.mrf.mxu0
  %v3444 = vadd.f32 %v3415, %v3443
  %3445 = vdwg.mxu0
  %3446 = vmatpush.msra.mxu0 %v2247
  %3447 = vmatpush.msra.mxu0 %v2245
  %3448 = vmatpush.msra.mxu0 %v2243
  %3449 = vmatpush.msra.mxu0 %v2241
  %3450 = vmatpush.msra.mxu0 %v2239
  %3451 = vmatpush.msra.mxu0 %v2237
  %3452 = vmatpush.msra.mxu0 %v2235
  %3453 = vmatpush.msra.mxu0 %v2233
  %3454 = vmatpush.msra.mxu0 %v2231
  %3455 = vmatpush.msra.mxu0 %v2229
  %3456 = vmatpush.msra.mxu0 %v2227
  %3457 = vmatpush.msra.mxu0 %v2225
  %3458 = vmatpush.msra.mxu0 %v2223
  %3459 = vmatpush.msra.mxu0 %v2221
  %3460 = vmatpush.msra.mxu0 %v2219
  %3461 = vmatpush.msra.mxu0 %v2217
  %3462 = vmatmul.f32.gmra.mxu0 %v1543
  %v3463 = vpop.f32.mrf.mxu0
  %v3464 = vadd.f32 %v3435, %v3463
  %3465 = vmatmul.f32.gmra.mxu0 %v1564
  %v3466 = vpop.f32.mrf.mxu0
  %v3467 = vadd.f32 %v3438, %v3466
  %3468 = vmatmul.f32.gmra.mxu0 %v1585
  %v3469 = vpop.f32.mrf.mxu0
  %v3470 = vadd.f32 %v3441, %v3469
  %3471 = vmatmul.f32.gmra.mxu0 %v1606
  %v3472 = vpop.f32.mrf.mxu0
  %v3473 = vadd.f32 %v3444, %v3472
  %3474 = vdwg.mxu0
  %3475 = vmatpush.msra.mxu0 %v2279
  %3476 = vmatpush.msra.mxu0 %v2277
  %3477 = vmatpush.msra.mxu0 %v2275
  %3478 = vmatpush.msra.mxu0 %v2273
  %3479 = vmatpush.msra.mxu0 %v2271
  %3480 = vmatpush.msra.mxu0 %v2269
  %3481 = vmatpush.msra.mxu0 %v2267
  %3482 = vmatpush.msra.mxu0 %v2265
  %3483 = vmatpush.msra.mxu0 %v2263
  %3484 = vmatpush.msra.mxu0 %v2261
  %3485 = vmatpush.msra.mxu0 %v2259
  %3486 = vmatpush.msra.mxu0 %v2257
  %3487 = vmatpush.msra.mxu0 %v2255
  %3488 = vmatpush.msra.mxu0 %v2253
  %3489 = vmatpush.msra.mxu0 %v2251
  %3490 = vmatpush.msra.mxu0 %v2249
  %3491 = vmatmul.f32.gmra.mxu0 %v1544
  %v3492 = vpop.f32.mrf.mxu0
  %v3493 = vadd.f32 %v3464, %v3492
  %3494 = vmatmul.f32.gmra.mxu0 %v1565
  %v3495 = vpop.f32.mrf.mxu0
  %v3496 = vadd.f32 %v3467, %v3495
  %3497 = vmatmul.f32.gmra.mxu0 %v1586
  %v3498 = vpop.f32.mrf.mxu0
  %v3499 = vadd.f32 %v3470, %v3498
  %3500 = vmatmul.f32.gmra.mxu0 %v1607
  %v3501 = vpop.f32.mrf.mxu0
  %v3502 = vadd.f32 %v3473, %v3501
  %3503 = vdwg.mxu0
  %v3504 = vmax.f32 %v2884, 0.0
  %v3505 = vmax.f32 %v3493, 0.0
  %v3506 = vmax.f32 %v2887, 0.0
  %v3507 = vmax.f32 %v3496, 0.0
  %v3508 = vmax.f32 %v2890, 0.0
  %v3509 = vmax.f32 %v3499, 0.0
  %v3510 = vmax.f32 %v2893, 0.0
  %v3511 = vmax.f32 %v3502, 0.0
  %v3512 = vld [vmem:[%s5] sm:$0xff]
  %v3513 = vld [vmem:[%s5 + $0x8] sm:$0xff]
  %v3514 = vld [vmem:[%s5 + $0x10] sm:$0xff]
  %v3515 = vld [vmem:[%s5 + $0x18] sm:$0xff]
  %v3516 = vld [vmem:[%s5 + $0x20] sm:$0xff]
  %v3517 = vld [vmem:[%s5 + $0x28] sm:$0xff]
  %v3518 = vld [vmem:[%s5 + $0x30] sm:$0xff]
  %v3519 = vld [vmem:[%s5 + $0x38] sm:$0xff]
  %v3520 = vld [vmem:[%s5 + $0x40] sm:$0xff]
  %v3521 = vld [vmem:[%s5 + $0x48] sm:$0xff]
  %v3522 = vld [vmem:[%s5 + $0x50] sm:$0xff]
  %v3523 = vld [vmem:[%s5 + $0x58] sm:$0xff]
  %v3524 = vld [vmem:[%s5 + $0x60] sm:$0xff]
  %v3525 = vld [vmem:[%s5 + $0x68] sm:$0xff]
  %v3526 = vld [vmem:[%s5 + $0x70] sm:$0xff]
  %v3527 = vld [vmem:[%s5 + $0x78] sm:$0xff]
  %v3528 = vld [vmem:[%s5 + $0x80] sm:$0xff]
  %v3529 = vld [vmem:[%s5 + $0x88] sm:$0xff]
  %v3530 = vld [vmem:[%s5 + $0x90] sm:$0xff]
  %v3531 = vld [vmem:[%s5 + $0x98] sm:$0xff]
  %v3532 = vld [vmem:[%s5 + $0xa0] sm:$0xff]
  %v3533 = vld [vmem:[%s5 + $0xa8] sm:$0xff]
  %v3534 = vld [vmem:[%s5 + $0xb0] sm:$0xff]
  %v3535 = vld [vmem:[%s5 + $0xb8] sm:$0xff]
  %v3536 = vld [vmem:[%s5 + $0xc0] sm:$0xff]
  %v3537 = vld [vmem:[%s5 + $0xc8] sm:$0xff]
  %v3538 = vld [vmem:[%s5 + $0xd0] sm:$0xff]
  %v3539 = vld [vmem:[%s5 + $0xd8] sm:$0xff]
  %v3540 = vld [vmem:[%s5 + $0xe0] sm:$0xff]
  %v3541 = vld [vmem:[%s5 + $0xe8] sm:$0xff]
  %v3542 = vld [vmem:[%s5 + $0xf0] sm:$0xff]
  %v3543 = vld [vmem:[%s5 + $0xf8] sm:$0xff]
  %v3544 = vld [vmem:[%s6] sm:$0x1]
  %v3546 = vperm.slane %v3544, 0
  %3548 = vmatpush.msra.mxu0 %v3527
  %3549 = vmatpush.msra.mxu0 %v3526
  %3550 = vmatpush.msra.mxu0 %v3525
  %3551 = vmatpush.msra.mxu0 %v3524
  %3552 = vmatpush.msra.mxu0 %v3523
  %3553 = vmatpush.msra.mxu0 %v3522
  %3554 = vmatpush.msra.mxu0 %v3521
  %3555 = vmatpush.msra.mxu0 %v3520
  %3556 = vmatpush.msra.mxu0 %v3519
  %3557 = vmatpush.msra.mxu0 %v3518
  %3558 = vmatpush.msra.mxu0 %v3517
  %3559 = vmatpush.msra.mxu0 %v3516
  %3560 = vmatpush.msra.mxu0 %v3515
  %3561 = vmatpush.msra.mxu0 %v3514
  %3562 = vmatpush.msra.mxu0 %v3513
  %3563 = vmatpush.msra.mxu0 %v3512
  %3564 = vmatmul.f32.gmra.mxu0 %v3504
  %v3565 = vpop.f32.mrf.mxu0
  %v3566 = vadd.f32 %v3546, %v3565
  %3567 = vmatmul.f32.gmra.mxu0 %v3506
  %v3568 = vpop.f32.mrf.mxu0
  %v3569 = vadd.f32 %v3546, %v3568
  %3570 = vmatmul.f32.gmra.mxu0 %v3508
  %v3571 = vpop.f32.mrf.mxu0
  %v3572 = vadd.f32 %v3546, %v3571
  %3573 = vmatmul.f32.gmra.mxu0 %v3510
  %v3574 = vpop.f32.mrf.mxu0
  %v3575 = vadd.f32 %v3546, %v3574
  %3576 = vdwg.mxu0
  %3577 = vmatpush.msra.mxu0 %v3543
  %3578 = vmatpush.msra.mxu0 %v3542
  %3579 = vmatpush.msra.mxu0 %v3541
  %3580 = vmatpush.msra.mxu0 %v3540
  %3581 = vmatpush.msra.mxu0 %v3539
  %3582 = vmatpush.msra.mxu0 %v3538
  %3583 = vmatpush.msra.mxu0 %v3537
  %3584 = vmatpush.msra.mxu0 %v3536
  %3585 = vmatpush.msra.mxu0 %v3535
  %3586 = vmatpush.msra.mxu0 %v3534
  %3587 = vmatpush.msra.mxu0 %v3533
  %3588 = vmatpush.msra.mxu0 %v3532
  %3589 = vmatpush.msra.mxu0 %v3531
  %3590 = vmatpush.msra.mxu0 %v3530
  %3591 = vmatpush.msra.mxu0 %v3529
  %3592 = vmatpush.msra.mxu0 %v3528
  %3593 = vmatmul.f32.gmra.mxu0 %v3505
  %v3594 = vpop.f32.mrf.mxu0
  %v3595 = vadd.f32 %v3566, %v3594
  %3596 = vmatmul.f32.gmra.mxu0 %v3507
  %v3597 = vpop.f32.mrf.mxu0
  %v3598 = vadd.f32 %v3569, %v3597
  %3599 = vmatmul.f32.gmra.mxu0 %v3509
  %v3600 = vpop.f32.mrf.mxu0
  %v3601 = vadd.f32 %v3572, %v3600
  %3602 = vmatmul.f32.gmra.mxu0 %v3511
  %v3603 = vpop.f32.mrf.mxu0
  %v3604 = vadd.f32 %v3575, %v3603
  %3605 = vdwg.mxu0
  %3606 = vst [vmem:[%s7] sm:$0xff] %v3595
  %3607 = vst [vmem:[%s7 + $0x8] sm:$0xff] %v3598
  %s3608 = scalar_lea.vmem %s7, 16
  %3609 = vst [vmem:[%s3608] sm:$0xff] %v3601
  %3610 = vst [vmem:[%s3608 + $0x8] sm:$0xff] %v3604
  // Predicated region
  $region30: #{conv_3_1_forward.1} parent=0 // pred_check
    _
  $region31: #{conv_3_1_forward.1} parent=0 // pred_check_branch
    %3612 = sbr.rel (0) target = $region33
  $region32: #{conv_3_1_forward.1} parent=0 // pred_region
    _
  $region33: #{conv_3_1_forward.1} parent=0 // pred_fallthru
    _
  // Predicated region
  $region34: #{conv_3_1_forward.1} parent=0 // pred_check
    _
  $region35: #{conv_3_1_forward.1} parent=0 // pred_check_branch
    %3614 = sbr.rel (0) target = $region37
  $region36: #{conv_3_1_forward.1} parent=0 // pred_region
    _
  $region37: #{conv_3_1_forward.1} parent=0 // pred_fallthru
    _

</llo_original>
